<compile_context>
chip_gen: v5e
topology: v5e:2x2
jax: 0.10.0
libtpu: 0.0.40
codegen_flags: <defaults>
</compile_context>

<pallas_src>
import numpy as np

import jax
import jax.numpy as jnp
from jax.experimental import pallas as pl
from jax.experimental.pallas import tpu as pltpu


_EPS = 1e-5


# ----------------------------------------------------------------------------
# Deterministic synthetic "natural" parameters (BatchNorm folded, eval mode).
# ----------------------------------------------------------------------------
def _fold_bn(kg, kb, km, kv, c):
    gamma = jax.random.uniform(kg, (1, c), minval=0.5, maxval=1.5)
    beta = jax.random.normal(kb, (1, c)) * 0.1
    mean = jax.random.normal(km, (1, c)) * 0.1
    var = jax.random.uniform(kv, (1, c), minval=0.5, maxval=1.5)
    scale = gamma / jnp.sqrt(var + _EPS)
    bias = beta - mean * scale
    return scale.astype(jnp.float32), bias.astype(jnp.float32)


def make_dw_block_params(key, cin, cout):
    ks = jax.random.split(key, 10)
    dw_w = (jax.random.normal(ks[0], (9, cin)) * 0.3).astype(jnp.float32)
    dw_s, dw_b = _fold_bn(ks[1], ks[2], ks[3], ks[4], cin)
    pw_w = (jax.random.normal(ks[5], (cin, cout)) /
            jnp.sqrt(float(cin))).astype(jnp.float32)
    pw_s, pw_b = _fold_bn(ks[6], ks[7], ks[8], ks[9], cout)
    return dict(dw_w=dw_w, dw_s=dw_s, dw_b=dw_b,
                pw_w=pw_w, pw_s=pw_s, pw_b=pw_b)


def make_head_params(key, num_tags):
    ks = jax.random.split(key, 7)
    w1 = (jax.random.normal(ks[0], (48, 128)) / jnp.sqrt(48.0)).astype(jnp.float32)
    s1, b1 = _fold_bn(ks[1], ks[2], ks[3], ks[4], 128)
    wl = (jax.random.normal(ks[5], (128, num_tags)) /
          jnp.sqrt(128.0)).astype(jnp.float32)
    bl = (jax.random.normal(ks[6], (1, num_tags)) * 0.1).astype(jnp.float32)
    return dict(w1=w1, s1=s1, b1=b1, wl=wl, bl=bl)


def create_params(key, num_tags):
    keys = jax.random.split(key, 8)
    return {
        "prep1_left_0": make_dw_block_params(keys[0], 12, 12),
        "prep1_left_1": make_dw_block_params(keys[1], 12, 12),
        # prep1_right exists in the PyTorch __init__ but is unused in forward.
        "stage1_0": make_dw_block_params(keys[2], 24, 48),
        "stage1_1": make_dw_block_params(keys[3], 48, 48),
        "bottleneck1_0": make_dw_block_params(keys[4], 24, 48),
        "stage2_0": make_dw_block_params(keys[5], 48, 48),
        "stage2_1": make_dw_block_params(keys[6], 48, 48),
        "head": make_head_params(keys[7], num_tags),
    }


# ----------------------------------------------------------------------------
# One-time packing: natural params -> structured bf16/f32 slabs.
# ----------------------------------------------------------------------------
def _out_size(n, stride):
    return (n - 1) // stride + 1


def _row_gather_single(hin, ho, stride, ky):
    r = np.zeros((ho, hin), np.float32)
    for jo in range(ho):
        h = stride * jo + ky - 1
        if 0 <= h < hin:
            r[jo, h] = 1.0
    return r


def _sel_matrix(win, wo, stride, kx):
    s = np.zeros((win, wo), np.float32)
    for io in range(wo):
        i = stride * io + kx - 1
        if 0 <= i < win:
            s[i, io] = 1.0
    return s


def _pack_block(p, hin, win, stride, nstack, include_r):
    cin = int(np.asarray(p["dw_w"]).shape[1])
    cout = int(np.asarray(p["pw_w"]).shape[1])
    ho, wo = _out_size(hin, stride), _out_size(win, stride)
    dw_fold = np.asarray(p["dw_w"], np.float32) * np.asarray(p["dw_s"], np.float32)
    out = {}
    if include_r:
        # Tap-major stacking: rows ordered (ky, sample_slot, out_row).
        r_taps = [np.kron(np.eye(nstack, dtype=np.float32),
                          _row_gather_single(hin, ho, stride, ky))
                  for ky in range(3)]
        out["r"] = np.concatenate(r_taps, axis=0)        # (3*N*Ho, N*Hin)
    ms = []
    for ky in range(3):
        mk = np.zeros((win * cin, wo * cin), np.float32)
        for kx in range(3):
            sel = _sel_matrix(win, wo, stride, kx)
            mk += np.kron(sel, np.diag(dw_fold[ky * 3 + kx]))
        ms.append(mk)                                    # (Win*Cin, Wo*Cin)
    out["m"] = ms
    out["dwb"] = np.tile(np.asarray(p["dw_b"], np.float32), (1, wo))
    out["pw"] = np.kron(np.eye(wo, dtype=np.float32),
                        np.asarray(p["pw_w"], np.float32) *
                        np.asarray(p["pw_s"], np.float32))   # (Wo*Cin, Wo*Cout)
    out["pwb"] = np.tile(np.asarray(p["pw_b"], np.float32), (1, wo))
    return out, dict(ho=ho, wo=wo, cin=cin, cout=cout)


def pack_params(nat, batch_size):
    B = batch_size
    geom = {
        # blk: (source params, Hin, Win, stride, nstack, has_own_row_gather)
        "prep0": ("prep1_left_0", 16, 16, 2, 2 * B, True),
        "prep1": ("prep1_left_1", 8, 8, 1, 2 * B, True),
        "s1a":   ("stage1_0", 8, 8, 2, B, True),
        "s1b":   ("stage1_1", 4, 4, 1, B, True),
        "bn1":   ("bottleneck1_0", 8, 8, 2, B, False),  # shares s1a's row gather
        "s2a":   ("stage2_0", 4, 4, 2, B, True),
        "s2b":   ("stage2_1", 2, 2, 1, B, True),
    }

    weights = {}   # bf16 2-D matrices
    biases = {}    # f32 (1, c) rows

    for blk, (src, hin, win, stride, nstack, has_r) in geom.items():
        sub, dims = _pack_block(nat[src], hin, win, stride, nstack, has_r)
        if has_r:
            weights[f"{blk}_r"] = sub["r"]
        for ky in range(3):
            weights[f"{blk}_m{ky}"] = sub["m"][ky]
        biases[f"{blk}_dwb"] = sub["dwb"]
        if blk == "prep1":
            # Fold torch.cat((left_p, right_p), dim=1) into prep1's pointwise
            # conv: cat is a 0/1 lane injection, so it commutes with ReLU.
            wo, cout = dims["wo"], dims["cout"]
            cat_l = np.zeros((wo * cout, wo * 2 * cout), np.float32)
            cat_r = np.zeros((wo * cout, wo * 2 * cout), np.float32)
            for w in range(wo):
                for c in range(cout):
                    cat_l[w * cout + c, w * 2 * cout + c] = 1.0
                    cat_r[w * cout + c, w * 2 * cout + cout + c] = 1.0
            weights["prep1_pwcat_l"] = sub["pw"] @ cat_l
            weights["prep1_pwcat_r"] = sub["pw"] @ cat_r
            biases["prep1_pwbcat_l"] = sub["pwb"] @ cat_l
            biases["prep1_pwbcat_r"] = sub["pwb"] @ cat_r
        else:
            weights[f"{blk}_pw"] = sub["pw"]
            biases[f"{blk}_pwb"] = sub["pwb"]

    # Head: 1x1 conv (48->128) + BN + ReLU, avg-pool(2x2), Linear, sigmoid.
    hp = nat["head"]
    num_tags = int(np.asarray(hp["wl"]).shape[1])
    assert num_tags <= 128
    pool_scale = 1.0 / 4.0                               # 2x2 avg pool, folded
    w1 = np.asarray(hp["w1"], np.float32) * np.asarray(hp["s1"], np.float32)
    weights["head_w1"] = np.kron(np.eye(2, dtype=np.float32), w1) * pool_scale
    biases["head_b1"] = np.tile(np.asarray(hp["b1"], np.float32),
                                (1, 2)) * pool_scale     # (1, 256)
    wl = np.asarray(hp["wl"], np.float32)
    wl2 = np.zeros((2 * wl.shape[0], 128), np.float32)   # sum the 2 W positions
    wl2[:wl.shape[0], :num_tags] = wl
    wl2[wl.shape[0]:, :num_tags] = wl
    weights["head_wl2"] = wl2                            # (256, 128) lane-padded
    blp = np.zeros((1, 128), np.float32)
    blp[:, :num_tags] = np.asarray(hp["bl"], np.float32)
    biases["head_bl"] = blp

    # --- consolidate into a handful of slabs (static in-kernel slicing) ---
    slabs = {}
    layout = {}

    def add_slab(key, entries, width, dtype):
        rows = []
        off = 0
        for name, mat in entries:
            r, c = mat.shape
            rp = ((r + 7) // 8) * 8                      # 8-aligned entry starts
            padded = np.zeros((rp, width), np.float32)
            padded[:r, :c] = mat
            rows.append(padded)
            layout[name] = (key, off, r, c)
            off += rp
        slabs[key] = jnp.asarray(np.concatenate(rows, axis=0), dtype=dtype)

    r_entries = sorted((n, m) for n, m in weights.items() if n.endswith("_r"))
    other = [(n, m) for n, m in weights.items() if not n.endswith("_r")]
    add_slab("rgat", r_entries, max(m.shape[1] for _, m in r_entries),
             jnp.bfloat16)
    for w in sorted({m.shape[1] for _, m in other}):
        add_slab(f"w{w}", sorted((n, m) for n, m in other if m.shape[1] == w),
                 w, jnp.bfloat16)
    add_slab("bias", sorted(biases.items()),
             max(m.shape[1] for m in biases.values()), jnp.float32)

    meta = dict(batch=B, num_tags=num_tags,
                slab_order=list(slabs.keys()), layout=layout)
    return slabs, meta


# ----------------------------------------------------------------------------
# The fused Pallas kernel + wrapper (single pallas_call, single grid step).
# ----------------------------------------------------------------------------
def make_forward(meta):
    order = list(meta["slab_order"])
    layout = dict(meta["layout"])
    B = int(meta["batch"])
    num_tags = int(meta["num_tags"])

    def kernel(x_ref, *rest):
        refs = dict(zip(order, rest[:len(order)]))
        out_ref = rest[len(order)]

        def getw(name):
            key, off, r, c = layout[name]
            return refs[key][off:off + r, 0:c]

        def row_gather(x, blk):
            # 0/1 row gather: vertical taps + stride + zero padding (exact in bf16).
            y = jnp.dot(getw(f"{blk}_r"), x, preferred_element_type=jnp.float32)
            return y.astype(jnp.bfloat16)

        def dw_part(y, blk):
            # y: (3*N*Ho, Win*Cin) bf16, taps stacked along rows.
            nho = y.shape[0] // 3
            acc = getw(f"{blk}_dwb")                     # (1, Wo*Cin) f32
            for ky in range(3):
                acc = acc + jnp.dot(y[ky * nho:(ky + 1) * nho, :],
                                    getw(f"{blk}_m{ky}"),
                                    preferred_element_type=jnp.float32)
            return jnp.maximum(acc, 0.0).astype(jnp.bfloat16)   # dw+BN+ReLU

        def pw_part(t, blk):
            z = jnp.dot(t, getw(f"{blk}_pw"),
                        preferred_element_type=jnp.float32) + getw(f"{blk}_pwb")
            return jnp.maximum(z, 0.0).astype(jnp.bfloat16)     # pw+BN+ReLU

        def conv_dw(x, blk):
            return pw_part(dw_part(row_gather(x, blk), blk), blk)

        # prep: left & right stacked along sublanes; prep1_left applied to both.
        x = x_ref[...]                                   # (2B*16, 16*12) bf16
        x = conv_dw(x, "prep0")                          # (2B*8, 8*12)
        t = dw_part(row_gather(x, "prep1"), "prep1")     # (2B*8, 8*12)

        # prep1 pointwise with the channel-concat folded in (left | right).
        half = t.shape[0] // 2
        zl = jnp.dot(t[:half], getw("prep1_pwcat_l"),
                     preferred_element_type=jnp.float32) + getw("prep1_pwbcat_l")
        zr = jnp.dot(t[half:], getw("prep1_pwcat_r"),
                     preferred_element_type=jnp.float32) + getw("prep1_pwbcat_r")
        prev = (jnp.maximum(zl, 0.0) +
                jnp.maximum(zr, 0.0)).astype(jnp.bfloat16)      # (B*8, 8*24)

        # stage1_0 and bottleneck1_0 share the row gather of `prev`.
        y_prev = row_gather(prev, "s1a")                 # (3*B*4, 8*24)
        cur = pw_part(dw_part(y_prev, "s1a"), "s1a")     # (B*4, 4*48)
        cur = conv_dw(cur, "s1b")                        # (B*4, 4*48)
        bottle = pw_part(dw_part(y_prev, "bn1"), "bn1")  # (B*4, 4*48)
        x2 = cur + bottle                                # cur + bottle1

        x2 = conv_dw(x2, "s2a")                          # (B*2, 2*48)
        x2 = conv_dw(x2, "s2b")                          # (B*2, 2*48)

        # head: 1x1 conv + BN + ReLU (pool scale folded), W-sum folded into
        # the final Linear (rows duplicated), lanes padded to 128.
        yh = jnp.dot(x2, getw("head_w1"),
                     preferred_element_type=jnp.float32) + getw("head_b1")
        yh = jnp.maximum(yh, 0.0).astype(jnp.bfloat16)   # (B*2, 2*128)
        L = jnp.dot(yh, getw("head_wl2"),
                    preferred_element_type=jnp.float32)  # (B*2, 128)
        bl = getw("head_bl")                             # (1, 128)
        rows_per_sample = L.shape[0] // B
        outs = []
        for b in range(B):
            acc = L[b * rows_per_sample:b * rows_per_sample + 1, :]
            for h in range(1, rows_per_sample):
                idx = b * rows_per_sample + h
                acc = acc + L[idx:idx + 1, :]
            logits = acc + bl
            outs.append(1.0 / (1.0 + jnp.exp(-logits)))  # sigmoid (exp on EUP)
        out_ref[...] = jnp.concatenate(outs, axis=0)     # (B, 128) lane-dense

    def forward(slabs, left_nchw, right_nchw):
        Bq, C, H, W = left_nchw.shape
        assert Bq == B and left_nchw.shape == right_nchw.shape

        def to_slab(x):
            # NCHW -> stacked per-sample (H, W*C) rows (channels along lanes).
            return jnp.transpose(x, (0, 2, 3, 1)).reshape(Bq * H, W * C)

        x0 = jnp.concatenate([to_slab(left_nchw), to_slab(right_nchw)],
                             axis=0).astype(jnp.bfloat16)        # (2B*H, W*C)
        slab_list = [slabs[k] for k in order]

        def full_spec(shape):
            n = len(shape)
            return pl.BlockSpec(tuple(shape), lambda i, _n=n: (0,) * _n)

        out_shape = jax.ShapeDtypeStruct((B, 128), jnp.float32)
        out = pl.pallas_call(
            kernel,
            out_shape=out_shape,
            grid=(1,),
            in_specs=[full_spec(x0.shape)] + [full_spec(s.shape)
                                              for s in slab_list],
            out_specs=full_spec(out_shape.shape),
            compiler_params=pltpu.CompilerParams(
                dimension_semantics=("arbitrary",)),
        )(x0, *slab_list)
        return out[:, :num_tags]

    return forward


# ----------------------------------------------------------------------------
if __name__ == "__main__":
    key = jax.random.PRNGKey(0)
    k_left, k_right, k_par = jax.random.split(key, 3)

    num_tags = 10
    B = 2
    left = jax.random.normal(k_left, (B, 12, 16, 16), dtype=jnp.float32)
    right = jax.random.normal(k_right, (B, 12, 16, 16), dtype=jnp.float32)

    nat = create_params(k_par, num_tags)
    slabs, meta = pack_params(nat, batch_size=B)     # one-time, outside the jit

    fwd = jax.jit(make_forward(meta))
    out = jax.block_until_ready(fwd(slabs, left, right))

    assert out.shape == (B, num_tags), out.shape
    assert bool(jnp.all(jnp.isfinite(out)))
    assert bool(jnp.all((out >= 0.0) & (out <= 1.0)))
    print("KERNEL_OK")
</pallas_src>

<mosaic_0001>
module attributes {stable_mosaic.version = 11 : i64} {
  func.func @kernel(%arg0: i32, %arg1: memref<64x192xbf16, #tpu.memory_space<vmem>>, %arg2: memref<368x192xbf16, #tpu.memory_space<vmem>>, %arg3: memref<3168x96xbf16, #tpu.memory_space<vmem>>, %arg4: memref<256x128xbf16, #tpu.memory_space<vmem>>, %arg5: memref<1056x192xbf16, #tpu.memory_space<vmem>>, %arg6: memref<96x256xbf16, #tpu.memory_space<vmem>>, %arg7: memref<136x256xf32, #tpu.memory_space<vmem>>, %arg8: memref<2x128xf32, #tpu.memory_space<vmem>>) attributes {dimension_semantics = [#tpu.dimension_semantics<arbitrary>], iteration_bounds = array<i64: 1>, scalar_prefetch = 0 : i64, scratch_operands = 0 : i64, tpu.core_type = #tpu.core_type<tc>, window_params = [{pipeline_mode = #tpu.pipeline_mode<synchronous>, transform_indices = @transform_0, window_bounds = array<i64: 64, 192>}, {pipeline_mode = #tpu.pipeline_mode<synchronous>, transform_indices = @transform_1, window_bounds = array<i64: 368, 192>}, {pipeline_mode = #tpu.pipeline_mode<synchronous>, transform_indices = @transform_2, window_bounds = array<i64: 3168, 96>}, {pipeline_mode = #tpu.pipeline_mode<synchronous>, transform_indices = @transform_3, window_bounds = array<i64: 256, 128>}, {pipeline_mode = #tpu.pipeline_mode<synchronous>, transform_indices = @transform_4, window_bounds = array<i64: 1056, 192>}, {pipeline_mode = #tpu.pipeline_mode<synchronous>, transform_indices = @transform_5, window_bounds = array<i64: 96, 256>}, {pipeline_mode = #tpu.pipeline_mode<synchronous>, transform_indices = @transform_6, window_bounds = array<i64: 136, 256>}, {pipeline_mode = #tpu.pipeline_mode<synchronous>, transform_indices = @transform_7, window_bounds = array<i64: 2, 128>}]} {
    %c0 = arith.constant 0 : index
    %c0_0 = arith.constant 0 : index
    %0 = vector.load %arg1[%c0, %c0_0] : memref<64x192xbf16, #tpu.memory_space<vmem>>, vector<64x192xbf16>
    %c0_1 = arith.constant 0 : index
    %c0_2 = arith.constant 0 : index
    %1 = vector.load %arg2[%c0_1, %c0_2] : memref<368x192xbf16, #tpu.memory_space<vmem>>, vector<96x64xbf16>
    %cst = arith.constant dense<0.000000e+00> : vector<96x192xf32>
    %2 = tpu.matmul %1, %0, %cst {dimension_numbers = #tpu.dot_dimension_numbers<[1], [0], [0], [1], [0, 0, 1, 1], [], []>} : vector<96x64xbf16>, vector<64x192xbf16>, vector<96x192xf32> -> vector<96x192xf32>
    %3 = arith.truncf %2 : vector<96x192xf32> to vector<96x192xbf16>
    %c32 = arith.constant 32 : index
    %c0_3 = arith.constant 0 : index
    %4 = vector.load %arg7[%c32, %c0_3] : memref<136x256xf32, #tpu.memory_space<vmem>>, vector<1x96xf32>
    %5 = vector.extract_strided_slice %3 {offsets = [0, 0], sizes = [32, 192], strides = [1, 1]} : vector<96x192xbf16> to vector<32x192xbf16>
    %c576 = arith.constant 576 : index
    %c0_4 = arith.constant 0 : index
    %6 = vector.load %arg3[%c576, %c0_4] : memref<3168x96xbf16, #tpu.memory_space<vmem>>, vector<192x96xbf16>
    %cst_5 = arith.constant dense<0.000000e+00> : vector<32x96xf32>
    %7 = tpu.matmul %5, %6, %cst_5 {dimension_numbers = #tpu.dot_dimension_numbers<[1], [0], [0], [1], [0, 0, 1, 1], [], []>} : vector<32x192xbf16>, vector<192x96xbf16>, vector<32x96xf32> -> vector<32x96xf32>
    %8 = vector.broadcast %4 : vector<1x96xf32> to vector<32x96xf32>
    %9 = arith.addf %8, %7 : vector<32x96xf32>
    %10 = vector.extract_strided_slice %3 {offsets = [32, 0], sizes = [32, 192], strides = [1, 1]} : vector<96x192xbf16> to vector<32x192xbf16>
    %c768 = arith.constant 768 : index
    %c0_6 = arith.constant 0 : index
    %11 = vector.load %arg3[%c768, %c0_6] : memref<3168x96xbf16, #tpu.memory_space<vmem>>, vector<192x96xbf16>
    %cst_7 = arith.constant dense<0.000000e+00> : vector<32x96xf32>
    %12 = tpu.matmul %10, %11, %cst_7 {dimension_numbers = #tpu.dot_dimension_numbers<[1], [0], [0], [1], [0, 0, 1, 1], [], []>} : vector<32x192xbf16>, vector<192x96xbf16>, vector<32x96xf32> -> vector<32x96xf32>
    %13 = arith.addf %9, %12 : vector<32x96xf32>
    %14 = vector.extract_strided_slice %3 {offsets = [64, 0], sizes = [32, 192], strides = [1, 1]} : vector<96x192xbf16> to vector<32x192xbf16>
    %c960 = arith.constant 960 : index
    %c0_8 = arith.constant 0 : index
    %15 = vector.load %arg3[%c960, %c0_8] : memref<3168x96xbf16, #tpu.memory_space<vmem>>, vector<192x96xbf16>
    %cst_9 = arith.constant dense<0.000000e+00> : vector<32x96xf32>
    %16 = tpu.matmul %14, %15, %cst_9 {dimension_numbers = #tpu.dot_dimension_numbers<[1], [0], [0], [1], [0, 0, 1, 1], [], []>} : vector<32x192xbf16>, vector<192x96xbf16>, vector<32x96xf32> -> vector<32x96xf32>
    %17 = arith.addf %13, %16 : vector<32x96xf32>
    %cst_10 = arith.constant 0.000000e+00 : f32
    %18 = vector.broadcast %cst_10 : f32 to vector<32x96xf32>
    %19 = arith.maximumf %17, %18 : vector<32x96xf32>
    %20 = arith.truncf %19 : vector<32x96xf32> to vector<32x96xbf16>
    %c1152 = arith.constant 1152 : index
    %c0_11 = arith.constant 0 : index
    %21 = vector.load %arg3[%c1152, %c0_11] : memref<3168x96xbf16, #tpu.memory_space<vmem>>, vector<96x96xbf16>
    %cst_12 = arith.constant dense<0.000000e+00> : vector<32x96xf32>
    %22 = tpu.matmul %20, %21, %cst_12 {dimension_numbers = #tpu.dot_dimension_numbers<[1], [0], [0], [1], [0, 0, 1, 1], [], []>} : vector<32x96xbf16>, vector<96x96xbf16>, vector<32x96xf32> -> vector<32x96xf32>
    %c40 = arith.constant 40 : index
    %c0_13 = arith.constant 0 : index
    %23 = vector.load %arg7[%c40, %c0_13] : memref<136x256xf32, #tpu.memory_space<vmem>>, vector<1x96xf32>
    %24 = vector.broadcast %23 : vector<1x96xf32> to vector<32x96xf32>
    %25 = arith.addf %22, %24 : vector<32x96xf32>
    %cst_14 = arith.constant 0.000000e+00 : f32
    %26 = vector.broadcast %cst_14 : f32 to vector<32x96xf32>
    %27 = arith.maximumf %25, %26 : vector<32x96xf32>
    %28 = arith.truncf %27 : vector<32x96xf32> to vector<32x96xbf16>
    %c192 = arith.constant 192 : index
    %c0_15 = arith.constant 0 : index
    %29 = vector.load %arg2[%c192, %c0_15] : memref<368x192xbf16, #tpu.memory_space<vmem>>, vector<96x32xbf16>
    %cst_16 = arith.constant dense<0.000000e+00> : vector<96x96xf32>
    %30 = tpu.matmul %29, %28, %cst_16 {dimension_numbers = #tpu.dot_dimension_numbers<[1], [0], [0], [1], [0, 0, 1, 1], [], []>} : vector<96x32xbf16>, vector<32x96xbf16>, vector<96x96xf32> -> vector<96x96xf32>
    %31 = arith.truncf %30 : vector<96x96xf32> to vector<96x96xbf16>
    %c48 = arith.constant 48 : index
    %c0_17 = arith.constant 0 : index
    %32 = vector.load %arg7[%c48, %c0_17] : memref<136x256xf32, #tpu.memory_space<vmem>>, vector<1x96xf32>
    %33 = vector.extract_strided_slice %31 {offsets = [0, 0], sizes = [32, 96], strides = [1, 1]} : vector<96x96xbf16> to vector<32x96xbf16>
    %c1248 = arith.constant 1248 : index
    %c0_18 = arith.constant 0 : index
    %34 = vector.load %arg3[%c1248, %c0_18] : memref<3168x96xbf16, #tpu.memory_space<vmem>>, vector<96x96xbf16>
    %cst_19 = arith.constant dense<0.000000e+00> : vector<32x96xf32>
    %35 = tpu.matmul %33, %34, %cst_19 {dimension_numbers = #tpu.dot_dimension_numbers<[1], [0], [0], [1], [0, 0, 1, 1], [], []>} : vector<32x96xbf16>, vector<96x96xbf16>, vector<32x96xf32> -> vector<32x96xf32>
    %36 = vector.broadcast %32 : vector<1x96xf32> to vector<32x96xf32>
    %37 = arith.addf %36, %35 : vector<32x96xf32>
    %38 = vector.extract_strided_slice %31 {offsets = [32, 0], sizes = [32, 96], strides = [1, 1]} : vector<96x96xbf16> to vector<32x96xbf16>
    %c1344 = arith.constant 1344 : index
    %c0_20 = arith.constant 0 : index
    %39 = vector.load %arg3[%c1344, %c0_20] : memref<3168x96xbf16, #tpu.memory_space<vmem>>, vector<96x96xbf16>
    %cst_21 = arith.constant dense<0.000000e+00> : vector<32x96xf32>
    %40 = tpu.matmul %38, %39, %cst_21 {dimension_numbers = #tpu.dot_dimension_numbers<[1], [0], [0], [1], [0, 0, 1, 1], [], []>} : vector<32x96xbf16>, vector<96x96xbf16>, vector<32x96xf32> -> vector<32x96xf32>
    %41 = arith.addf %37, %40 : vector<32x96xf32>
    %42 = vector.extract_strided_slice %31 {offsets = [64, 0], sizes = [32, 96], strides = [1, 1]} : vector<96x96xbf16> to vector<32x96xbf16>
    %c1440 = arith.constant 1440 : index
    %c0_22 = arith.constant 0 : index
    %43 = vector.load %arg3[%c1440, %c0_22] : memref<3168x96xbf16, #tpu.memory_space<vmem>>, vector<96x96xbf16>
    %cst_23 = arith.constant dense<0.000000e+00> : vector<32x96xf32>
    %44 = tpu.matmul %42, %43, %cst_23 {dimension_numbers = #tpu.dot_dimension_numbers<[1], [0], [0], [1], [0, 0, 1, 1], [], []>} : vector<32x96xbf16>, vector<96x96xbf16>, vector<32x96xf32> -> vector<32x96xf32>
    %45 = arith.addf %41, %44 : vector<32x96xf32>
    %cst_24 = arith.constant 0.000000e+00 : f32
    %46 = vector.broadcast %cst_24 : f32 to vector<32x96xf32>
    %47 = arith.maximumf %45, %46 : vector<32x96xf32>
    %48 = arith.truncf %47 : vector<32x96xf32> to vector<32x96xbf16>
    %49 = vector.extract_strided_slice %48 {offsets = [0, 0], sizes = [16, 96], strides = [1, 1]} : vector<32x96xbf16> to vector<16x96xbf16>
    %c96 = arith.constant 96 : index
    %c0_25 = arith.constant 0 : index
    %50 = vector.load %arg5[%c96, %c0_25] : memref<1056x192xbf16, #tpu.memory_space<vmem>>, vector<96x192xbf16>
    %cst_26 = arith.constant dense<0.000000e+00> : vector<16x192xf32>
    %51 = tpu.matmul %49, %50, %cst_26 {dimension_numbers = #tpu.dot_dimension_numbers<[1], [0], [0], [1], [0, 0, 1, 1], [], []>} : vector<16x96xbf16>, vector<96x192xbf16>, vector<16x192xf32> -> vector<16x192xf32>
    %c56 = arith.constant 56 : index
    %c0_27 = arith.constant 0 : index
    %52 = vector.load %arg7[%c56, %c0_27] : memref<136x256xf32, #tpu.memory_space<vmem>>, vector<1x192xf32>
    %53 = vector.broadcast %52 : vector<1x192xf32> to vector<16x192xf32>
    %54 = arith.addf %51, %53 : vector<16x192xf32>
    %55 = vector.extract_strided_slice %48 {offsets = [16, 0], sizes = [16, 96], strides = [1, 1]} : vector<32x96xbf16> to vector<16x96xbf16>
    %c96_28 = arith.constant 96 : index
    %c0_29 = arith.constant 0 : index
    %56 = vector.load %arg2[%c96_28, %c0_29] : memref<368x192xbf16, #tpu.memory_space<vmem>>, vector<96x192xbf16>
    %cst_30 = arith.constant dense<0.000000e+00> : vector<16x192xf32>
    %57 = tpu.matmul %55, %56, %cst_30 {dimension_numbers = #tpu.dot_dimension_numbers<[1], [0], [0], [1], [0, 0, 1, 1], [], []>} : vector<16x96xbf16>, vector<96x192xbf16>, vector<16x192xf32> -> vector<16x192xf32>
    %c64 = arith.constant 64 : index
    %c0_31 = arith.constant 0 : index
    %58 = vector.load %arg7[%c64, %c0_31] : memref<136x256xf32, #tpu.memory_space<vmem>>, vector<1x192xf32>
    %59 = vector.broadcast %58 : vector<1x192xf32> to vector<16x192xf32>
    %60 = arith.addf %57, %59 : vector<16x192xf32>
    %cst_32 = arith.constant 0.000000e+00 : f32
    %61 = vector.broadcast %cst_32 : f32 to vector<16x192xf32>
    %62 = arith.maximumf %54, %61 : vector<16x192xf32>
    %cst_33 = arith.constant 0.000000e+00 : f32
    %63 = vector.broadcast %cst_33 : f32 to vector<16x192xf32>
    %64 = arith.maximumf %60, %63 : vector<16x192xf32>
    %65 = arith.addf %62, %64 : vector<16x192xf32>
    %66 = arith.truncf %65 : vector<16x192xf32> to vector<16x192xbf16>
    %c288 = arith.constant 288 : index
    %c0_34 = arith.constant 0 : index
    %67 = vector.load %arg2[%c288, %c0_34] : memref<368x192xbf16, #tpu.memory_space<vmem>>, vector<24x16xbf16>
    %cst_35 = arith.constant dense<0.000000e+00> : vector<24x192xf32>
    %68 = tpu.matmul %67, %66, %cst_35 {dimension_numbers = #tpu.dot_dimension_numbers<[1], [0], [0], [1], [0, 0, 1, 1], [], []>} : vector<24x16xbf16>, vector<16x192xbf16>, vector<24x192xf32> -> vector<24x192xf32>
    %69 = arith.truncf %68 : vector<24x192xf32> to vector<24x192xbf16>
    %c72 = arith.constant 72 : index
    %c0_36 = arith.constant 0 : index
    %70 = vector.load %arg7[%c72, %c0_36] : memref<136x256xf32, #tpu.memory_space<vmem>>, vector<1x96xf32>
    %71 = vector.extract_strided_slice %69 {offsets = [0, 0], sizes = [8, 192], strides = [1, 1]} : vector<24x192xbf16> to vector<8x192xbf16>
    %c1536 = arith.constant 1536 : index
    %c0_37 = arith.constant 0 : index
    %72 = vector.load %arg3[%c1536, %c0_37] : memref<3168x96xbf16, #tpu.memory_space<vmem>>, vector<192x96xbf16>
    %cst_38 = arith.constant dense<0.000000e+00> : vector<8x96xf32>
    %73 = tpu.matmul %71, %72, %cst_38 {dimension_numbers = #tpu.dot_dimension_numbers<[1], [0], [0], [1], [0, 0, 1, 1], [], []>} : vector<8x192xbf16>, vector<192x96xbf16>, vector<8x96xf32> -> vector<8x96xf32>
    %74 = vector.broadcast %70 : vector<1x96xf32> to vector<8x96xf32>
    %75 = arith.addf %74, %73 : vector<8x96xf32>
    %76 = vector.extract_strided_slice %69 {offsets = [8, 0], sizes = [8, 192], strides = [1, 1]} : vector<24x192xbf16> to vector<8x192xbf16>
    %c1728 = arith.constant 1728 : index
    %c0_39 = arith.constant 0 : index
    %77 = vector.load %arg3[%c1728, %c0_39] : memref<3168x96xbf16, #tpu.memory_space<vmem>>, vector<192x96xbf16>
    %cst_40 = arith.constant dense<0.000000e+00> : vector<8x96xf32>
    %78 = tpu.matmul %76, %77, %cst_40 {dimension_numbers = #tpu.dot_dimension_numbers<[1], [0], [0], [1], [0, 0, 1, 1], [], []>} : vector<8x192xbf16>, vector<192x96xbf16>, vector<8x96xf32> -> vector<8x96xf32>
    %79 = arith.addf %75, %78 : vector<8x96xf32>
    %80 = vector.extract_strided_slice %69 {offsets = [16, 0], sizes = [8, 192], strides = [1, 1]} : vector<24x192xbf16> to vector<8x192xbf16>
    %c1920 = arith.constant 1920 : index
    %c0_41 = arith.constant 0 : index
    %81 = vector.load %arg3[%c1920, %c0_41] : memref<3168x96xbf16, #tpu.memory_space<vmem>>, vector<192x96xbf16>
    %cst_42 = arith.constant dense<0.000000e+00> : vector<8x96xf32>
    %82 = tpu.matmul %80, %81, %cst_42 {dimension_numbers = #tpu.dot_dimension_numbers<[1], [0], [0], [1], [0, 0, 1, 1], [], []>} : vector<8x192xbf16>, vector<192x96xbf16>, vector<8x96xf32> -> vector<8x96xf32>
    %83 = arith.addf %79, %82 : vector<8x96xf32>
    %cst_43 = arith.constant 0.000000e+00 : f32
    %84 = vector.broadcast %cst_43 : f32 to vector<8x96xf32>
    %85 = arith.maximumf %83, %84 : vector<8x96xf32>
    %86 = arith.truncf %85 : vector<8x96xf32> to vector<8x96xbf16>
    %c192_44 = arith.constant 192 : index
    %c0_45 = arith.constant 0 : index
    %87 = vector.load %arg5[%c192_44, %c0_45] : memref<1056x192xbf16, #tpu.memory_space<vmem>>, vector<96x192xbf16>
    %cst_46 = arith.constant dense<0.000000e+00> : vector<8x192xf32>
    %88 = tpu.matmul %86, %87, %cst_46 {dimension_numbers = #tpu.dot_dimension_numbers<[1], [0], [0], [1], [0, 0, 1, 1], [], []>} : vector<8x96xbf16>, vector<96x192xbf16>, vector<8x192xf32> -> vector<8x192xf32>
    %c80 = arith.constant 80 : index
    %c0_47 = arith.constant 0 : index
    %89 = vector.load %arg7[%c80, %c0_47] : memref<136x256xf32, #tpu.memory_space<vmem>>, vector<1x192xf32>
    %90 = vector.broadcast %89 : vector<1x192xf32> to vector<8x192xf32>
    %91 = arith.addf %88, %90 : vector<8x192xf32>
    %cst_48 = arith.constant 0.000000e+00 : f32
    %92 = vector.broadcast %cst_48 : f32 to vector<8x192xf32>
    %93 = arith.maximumf %91, %92 : vector<8x192xf32>
    %94 = arith.truncf %93 : vector<8x192xf32> to vector<8x192xbf16>
    %c312 = arith.constant 312 : index
    %c0_49 = arith.constant 0 : index
    %95 = vector.load %arg2[%c312, %c0_49] : memref<368x192xbf16, #tpu.memory_space<vmem>>, vector<24x8xbf16>
    %cst_50 = arith.constant dense<0.000000e+00> : vector<24x192xf32>
    %96 = tpu.matmul %95, %94, %cst_50 {dimension_numbers = #tpu.dot_dimension_numbers<[1], [0], [0], [1], [0, 0, 1, 1], [], []>} : vector<24x8xbf16>, vector<8x192xbf16>, vector<24x192xf32> -> vector<24x192xf32>
    %97 = arith.truncf %96 : vector<24x192xf32> to vector<24x192xbf16>
    %c88 = arith.constant 88 : index
    %c0_51 = arith.constant 0 : index
    %98 = vector.load %arg7[%c88, %c0_51] : memref<136x256xf32, #tpu.memory_space<vmem>>, vector<1x192xf32>
    %99 = vector.extract_strided_slice %97 {offsets = [0, 0], sizes = [8, 192], strides = [1, 1]} : vector<24x192xbf16> to vector<8x192xbf16>
    %c288_52 = arith.constant 288 : index
    %c0_53 = arith.constant 0 : index
    %100 = vector.load %arg5[%c288_52, %c0_53] : memref<1056x192xbf16, #tpu.memory_space<vmem>>, vector<192x192xbf16>
    %cst_54 = arith.constant dense<0.000000e+00> : vector<8x192xf32>
    %101 = tpu.matmul %99, %100, %cst_54 {dimension_numbers = #tpu.dot_dimension_numbers<[1], [0], [0], [1], [0, 0, 1, 1], [], []>} : vector<8x192xbf16>, vector<192x192xbf16>, vector<8x192xf32> -> vector<8x192xf32>
    %102 = vector.broadcast %98 : vector<1x192xf32> to vector<8x192xf32>
    %103 = arith.addf %102, %101 : vector<8x192xf32>
    %104 = vector.extract_strided_slice %97 {offsets = [8, 0], sizes = [8, 192], strides = [1, 1]} : vector<24x192xbf16> to vector<8x192xbf16>
    %c480 = arith.constant 480 : index
    %c0_55 = arith.constant 0 : index
    %105 = vector.load %arg5[%c480, %c0_55] : memref<1056x192xbf16, #tpu.memory_space<vmem>>, vector<192x192xbf16>
    %cst_56 = arith.constant dense<0.000000e+00> : vector<8x192xf32>
    %106 = tpu.matmul %104, %105, %cst_56 {dimension_numbers = #tpu.dot_dimension_numbers<[1], [0], [0], [1], [0, 0, 1, 1], [], []>} : vector<8x192xbf16>, vector<192x192xbf16>, vector<8x192xf32> -> vector<8x192xf32>
    %107 = arith.addf %103, %106 : vector<8x192xf32>
    %108 = vector.extract_strided_slice %97 {offsets = [16, 0], sizes = [8, 192], strides = [1, 1]} : vector<24x192xbf16> to vector<8x192xbf16>
    %c672 = arith.constant 672 : index
    %c0_57 = arith.constant 0 : index
    %109 = vector.load %arg5[%c672, %c0_57] : memref<1056x192xbf16, #tpu.memory_space<vmem>>, vector<192x192xbf16>
    %cst_58 = arith.constant dense<0.000000e+00> : vector<8x192xf32>
    %110 = tpu.matmul %108, %109, %cst_58 {dimension_numbers = #tpu.dot_dimension_numbers<[1], [0], [0], [1], [0, 0, 1, 1], [], []>} : vector<8x192xbf16>, vector<192x192xbf16>, vector<8x192xf32> -> vector<8x192xf32>
    %111 = arith.addf %107, %110 : vector<8x192xf32>
    %cst_59 = arith.constant 0.000000e+00 : f32
    %112 = vector.broadcast %cst_59 : f32 to vector<8x192xf32>
    %113 = arith.maximumf %111, %112 : vector<8x192xf32>
    %114 = arith.truncf %113 : vector<8x192xf32> to vector<8x192xbf16>
    %c864 = arith.constant 864 : index
    %c0_60 = arith.constant 0 : index
    %115 = vector.load %arg5[%c864, %c0_60] : memref<1056x192xbf16, #tpu.memory_space<vmem>>, vector<192x192xbf16>
    %cst_61 = arith.constant dense<0.000000e+00> : vector<8x192xf32>
    %116 = tpu.matmul %114, %115, %cst_61 {dimension_numbers = #tpu.dot_dimension_numbers<[1], [0], [0], [1], [0, 0, 1, 1], [], []>} : vector<8x192xbf16>, vector<192x192xbf16>, vector<8x192xf32> -> vector<8x192xf32>
    %c96_62 = arith.constant 96 : index
    %c0_63 = arith.constant 0 : index
    %117 = vector.load %arg7[%c96_62, %c0_63] : memref<136x256xf32, #tpu.memory_space<vmem>>, vector<1x192xf32>
    %118 = vector.broadcast %117 : vector<1x192xf32> to vector<8x192xf32>
    %119 = arith.addf %116, %118 : vector<8x192xf32>
    %cst_64 = arith.constant 0.000000e+00 : f32
    %120 = vector.broadcast %cst_64 : f32 to vector<8x192xf32>
    %121 = arith.maximumf %119, %120 : vector<8x192xf32>
    %122 = arith.truncf %121 : vector<8x192xf32> to vector<8x192xbf16>
    %c0_65 = arith.constant 0 : index
    %c0_66 = arith.constant 0 : index
    %123 = vector.load %arg7[%c0_65, %c0_66] : memref<136x256xf32, #tpu.memory_space<vmem>>, vector<1x96xf32>
    %124 = vector.extract_strided_slice %69 {offsets = [0, 0], sizes = [8, 192], strides = [1, 1]} : vector<24x192xbf16> to vector<8x192xbf16>
    %c0_67 = arith.constant 0 : index
    %c0_68 = arith.constant 0 : index
    %125 = vector.load %arg3[%c0_67, %c0_68] : memref<3168x96xbf16, #tpu.memory_space<vmem>>, vector<192x96xbf16>
    %cst_69 = arith.constant dense<0.000000e+00> : vector<8x96xf32>
    %126 = tpu.matmul %124, %125, %cst_69 {dimension_numbers = #tpu.dot_dimension_numbers<[1], [0], [0], [1], [0, 0, 1, 1], [], []>} : vector<8x192xbf16>, vector<192x96xbf16>, vector<8x96xf32> -> vector<8x96xf32>
    %127 = vector.broadcast %123 : vector<1x96xf32> to vector<8x96xf32>
    %128 = arith.addf %127, %126 : vector<8x96xf32>
    %129 = vector.extract_strided_slice %69 {offsets = [8, 0], sizes = [8, 192], strides = [1, 1]} : vector<24x192xbf16> to vector<8x192xbf16>
    %c192_70 = arith.constant 192 : index
    %c0_71 = arith.constant 0 : index
    %130 = vector.load %arg3[%c192_70, %c0_71] : memref<3168x96xbf16, #tpu.memory_space<vmem>>, vector<192x96xbf16>
    %cst_72 = arith.constant dense<0.000000e+00> : vector<8x96xf32>
    %131 = tpu.matmul %129, %130, %cst_72 {dimension_numbers = #tpu.dot_dimension_numbers<[1], [0], [0], [1], [0, 0, 1, 1], [], []>} : vector<8x192xbf16>, vector<192x96xbf16>, vector<8x96xf32> -> vector<8x96xf32>
    %132 = arith.addf %128, %131 : vector<8x96xf32>
    %133 = vector.extract_strided_slice %69 {offsets = [16, 0], sizes = [8, 192], strides = [1, 1]} : vector<24x192xbf16> to vector<8x192xbf16>
    %c384 = arith.constant 384 : index
    %c0_73 = arith.constant 0 : index
    %134 = vector.load %arg3[%c384, %c0_73] : memref<3168x96xbf16, #tpu.memory_space<vmem>>, vector<192x96xbf16>
    %cst_74 = arith.constant dense<0.000000e+00> : vector<8x96xf32>
    %135 = tpu.matmul %133, %134, %cst_74 {dimension_numbers = #tpu.dot_dimension_numbers<[1], [0], [0], [1], [0, 0, 1, 1], [], []>} : vector<8x192xbf16>, vector<192x96xbf16>, vector<8x96xf32> -> vector<8x96xf32>
    %136 = arith.addf %132, %135 : vector<8x96xf32>
    %cst_75 = arith.constant 0.000000e+00 : f32
    %137 = vector.broadcast %cst_75 : f32 to vector<8x96xf32>
    %138 = arith.maximumf %136, %137 : vector<8x96xf32>
    %139 = arith.truncf %138 : vector<8x96xf32> to vector<8x96xbf16>
    %c0_76 = arith.constant 0 : index
    %c0_77 = arith.constant 0 : index
    %140 = vector.load %arg5[%c0_76, %c0_77] : memref<1056x192xbf16, #tpu.memory_space<vmem>>, vector<96x192xbf16>
    %cst_78 = arith.constant dense<0.000000e+00> : vector<8x192xf32>
    %141 = tpu.matmul %139, %140, %cst_78 {dimension_numbers = #tpu.dot_dimension_numbers<[1], [0], [0], [1], [0, 0, 1, 1], [], []>} : vector<8x96xbf16>, vector<96x192xbf16>, vector<8x192xf32> -> vector<8x192xf32>
    %c8 = arith.constant 8 : index
    %c0_79 = arith.constant 0 : index
    %142 = vector.load %arg7[%c8, %c0_79] : memref<136x256xf32, #tpu.memory_space<vmem>>, vector<1x192xf32>
    %143 = vector.broadcast %142 : vector<1x192xf32> to vector<8x192xf32>
    %144 = arith.addf %141, %143 : vector<8x192xf32>
    %cst_80 = arith.constant 0.000000e+00 : f32
    %145 = vector.broadcast %cst_80 : f32 to vector<8x192xf32>
    %146 = arith.maximumf %144, %145 : vector<8x192xf32>
    %147 = arith.truncf %146 : vector<8x192xf32> to vector<8x192xbf16>
    %148 = arith.addf %122, %147 : vector<8x192xbf16>
    %c336 = arith.constant 336 : index
    %c0_81 = arith.constant 0 : index
    %149 = vector.load %arg2[%c336, %c0_81] : memref<368x192xbf16, #tpu.memory_space<vmem>>, vector<12x8xbf16>
    %cst_82 = arith.constant dense<0.000000e+00> : vector<12x192xf32>
    %150 = tpu.matmul %149, %148, %cst_82 {dimension_numbers = #tpu.dot_dimension_numbers<[1], [0], [0], [1], [0, 0, 1, 1], [], []>} : vector<12x8xbf16>, vector<8x192xbf16>, vector<12x192xf32> -> vector<12x192xf32>
    %151 = arith.truncf %150 : vector<12x192xf32> to vector<12x192xbf16>
    %c104 = arith.constant 104 : index
    %c0_83 = arith.constant 0 : index
    %152 = vector.load %arg7[%c104, %c0_83] : memref<136x256xf32, #tpu.memory_space<vmem>>, vector<1x96xf32>
    %153 = vector.extract_strided_slice %151 {offsets = [0, 0], sizes = [4, 192], strides = [1, 1]} : vector<12x192xbf16> to vector<4x192xbf16>
    %c2112 = arith.constant 2112 : index
    %c0_84 = arith.constant 0 : index
    %154 = vector.load %arg3[%c2112, %c0_84] : memref<3168x96xbf16, #tpu.memory_space<vmem>>, vector<192x96xbf16>
    %cst_85 = arith.constant dense<0.000000e+00> : vector<4x96xf32>
    %155 = tpu.matmul %153, %154, %cst_85 {dimension_numbers = #tpu.dot_dimension_numbers<[1], [0], [0], [1], [0, 0, 1, 1], [], []>} : vector<4x192xbf16>, vector<192x96xbf16>, vector<4x96xf32> -> vector<4x96xf32>
    %156 = vector.broadcast %152 : vector<1x96xf32> to vector<4x96xf32>
    %157 = arith.addf %156, %155 : vector<4x96xf32>
    %158 = vector.extract_strided_slice %151 {offsets = [4, 0], sizes = [4, 192], strides = [1, 1]} : vector<12x192xbf16> to vector<4x192xbf16>
    %c2304 = arith.constant 2304 : index
    %c0_86 = arith.constant 0 : index
    %159 = vector.load %arg3[%c2304, %c0_86] : memref<3168x96xbf16, #tpu.memory_space<vmem>>, vector<192x96xbf16>
    %cst_87 = arith.constant dense<0.000000e+00> : vector<4x96xf32>
    %160 = tpu.matmul %158, %159, %cst_87 {dimension_numbers = #tpu.dot_dimension_numbers<[1], [0], [0], [1], [0, 0, 1, 1], [], []>} : vector<4x192xbf16>, vector<192x96xbf16>, vector<4x96xf32> -> vector<4x96xf32>
    %161 = arith.addf %157, %160 : vector<4x96xf32>
    %162 = vector.extract_strided_slice %151 {offsets = [8, 0], sizes = [4, 192], strides = [1, 1]} : vector<12x192xbf16> to vector<4x192xbf16>
    %c2496 = arith.constant 2496 : index
    %c0_88 = arith.constant 0 : index
    %163 = vector.load %arg3[%c2496, %c0_88] : memref<3168x96xbf16, #tpu.memory_space<vmem>>, vector<192x96xbf16>
    %cst_89 = arith.constant dense<0.000000e+00> : vector<4x96xf32>
    %164 = tpu.matmul %162, %163, %cst_89 {dimension_numbers = #tpu.dot_dimension_numbers<[1], [0], [0], [1], [0, 0, 1, 1], [], []>} : vector<4x192xbf16>, vector<192x96xbf16>, vector<4x96xf32> -> vector<4x96xf32>
    %165 = arith.addf %161, %164 : vector<4x96xf32>
    %cst_90 = arith.constant 0.000000e+00 : f32
    %166 = vector.broadcast %cst_90 : f32 to vector<4x96xf32>
    %167 = arith.maximumf %165, %166 : vector<4x96xf32>
    %168 = arith.truncf %167 : vector<4x96xf32> to vector<4x96xbf16>
    %c2688 = arith.constant 2688 : index
    %c0_91 = arith.constant 0 : index
    %169 = vector.load %arg3[%c2688, %c0_91] : memref<3168x96xbf16, #tpu.memory_space<vmem>>, vector<96x96xbf16>
    %cst_92 = arith.constant dense<0.000000e+00> : vector<4x96xf32>
    %170 = tpu.matmul %168, %169, %cst_92 {dimension_numbers = #tpu.dot_dimension_numbers<[1], [0], [0], [1], [0, 0, 1, 1], [], []>} : vector<4x96xbf16>, vector<96x96xbf16>, vector<4x96xf32> -> vector<4x96xf32>
    %c112 = arith.constant 112 : index
    %c0_93 = arith.constant 0 : index
    %171 = vector.load %arg7[%c112, %c0_93] : memref<136x256xf32, #tpu.memory_space<vmem>>, vector<1x96xf32>
    %172 = vector.broadcast %171 : vector<1x96xf32> to vector<4x96xf32>
    %173 = arith.addf %170, %172 : vector<4x96xf32>
    %cst_94 = arith.constant 0.000000e+00 : f32
    %174 = vector.broadcast %cst_94 : f32 to vector<4x96xf32>
    %175 = arith.maximumf %173, %174 : vector<4x96xf32>
    %176 = arith.truncf %175 : vector<4x96xf32> to vector<4x96xbf16>
    %c352 = arith.constant 352 : index
    %c0_95 = arith.constant 0 : index
    %177 = vector.load %arg2[%c352, %c0_95] : memref<368x192xbf16, #tpu.memory_space<vmem>>, vector<12x4xbf16>
    %cst_96 = arith.constant dense<0.000000e+00> : vector<12x96xf32>
    %178 = tpu.matmul %177, %176, %cst_96 {dimension_numbers = #tpu.dot_dimension_numbers<[1], [0], [0], [1], [0, 0, 1, 1], [], []>} : vector<12x4xbf16>, vector<4x96xbf16>, vector<12x96xf32> -> vector<12x96xf32>
    %179 = arith.truncf %178 : vector<12x96xf32> to vector<12x96xbf16>
    %c120 = arith.constant 120 : index
    %c0_97 = arith.constant 0 : index
    %180 = vector.load %arg7[%c120, %c0_97] : memref<136x256xf32, #tpu.memory_space<vmem>>, vector<1x96xf32>
    %181 = vector.extract_strided_slice %179 {offsets = [0, 0], sizes = [4, 96], strides = [1, 1]} : vector<12x96xbf16> to vector<4x96xbf16>
    %c2784 = arith.constant 2784 : index
    %c0_98 = arith.constant 0 : index
    %182 = vector.load %arg3[%c2784, %c0_98] : memref<3168x96xbf16, #tpu.memory_space<vmem>>, vector<96x96xbf16>
    %cst_99 = arith.constant dense<0.000000e+00> : vector<4x96xf32>
    %183 = tpu.matmul %181, %182, %cst_99 {dimension_numbers = #tpu.dot_dimension_numbers<[1], [0], [0], [1], [0, 0, 1, 1], [], []>} : vector<4x96xbf16>, vector<96x96xbf16>, vector<4x96xf32> -> vector<4x96xf32>
    %184 = vector.broadcast %180 : vector<1x96xf32> to vector<4x96xf32>
    %185 = arith.addf %184, %183 : vector<4x96xf32>
    %186 = vector.extract_strided_slice %179 {offsets = [4, 0], sizes = [4, 96], strides = [1, 1]} : vector<12x96xbf16> to vector<4x96xbf16>
    %c2880 = arith.constant 2880 : index
    %c0_100 = arith.constant 0 : index
    %187 = vector.load %arg3[%c2880, %c0_100] : memref<3168x96xbf16, #tpu.memory_space<vmem>>, vector<96x96xbf16>
    %cst_101 = arith.constant dense<0.000000e+00> : vector<4x96xf32>
    %188 = tpu.matmul %186, %187, %cst_101 {dimension_numbers = #tpu.dot_dimension_numbers<[1], [0], [0], [1], [0, 0, 1, 1], [], []>} : vector<4x96xbf16>, vector<96x96xbf16>, vector<4x96xf32> -> vector<4x96xf32>
    %189 = arith.addf %185, %188 : vector<4x96xf32>
    %190 = vector.extract_strided_slice %179 {offsets = [8, 0], sizes = [4, 96], strides = [1, 1]} : vector<12x96xbf16> to vector<4x96xbf16>
    %c2976 = arith.constant 2976 : index
    %c0_102 = arith.constant 0 : index
    %191 = vector.load %arg3[%c2976, %c0_102] : memref<3168x96xbf16, #tpu.memory_space<vmem>>, vector<96x96xbf16>
    %cst_103 = arith.constant dense<0.000000e+00> : vector<4x96xf32>
    %192 = tpu.matmul %190, %191, %cst_103 {dimension_numbers = #tpu.dot_dimension_numbers<[1], [0], [0], [1], [0, 0, 1, 1], [], []>} : vector<4x96xbf16>, vector<96x96xbf16>, vector<4x96xf32> -> vector<4x96xf32>
    %193 = arith.addf %189, %192 : vector<4x96xf32>
    %cst_104 = arith.constant 0.000000e+00 : f32
    %194 = vector.broadcast %cst_104 : f32 to vector<4x96xf32>
    %195 = arith.maximumf %193, %194 : vector<4x96xf32>
    %196 = arith.truncf %195 : vector<4x96xf32> to vector<4x96xbf16>
    %c3072 = arith.constant 3072 : index
    %c0_105 = arith.constant 0 : index
    %197 = vector.load %arg3[%c3072, %c0_105] : memref<3168x96xbf16, #tpu.memory_space<vmem>>, vector<96x96xbf16>
    %cst_106 = arith.constant dense<0.000000e+00> : vector<4x96xf32>
    %198 = tpu.matmul %196, %197, %cst_106 {dimension_numbers = #tpu.dot_dimension_numbers<[1], [0], [0], [1], [0, 0, 1, 1], [], []>} : vector<4x96xbf16>, vector<96x96xbf16>, vector<4x96xf32> -> vector<4x96xf32>
    %c128 = arith.constant 128 : index
    %c0_107 = arith.constant 0 : index
    %199 = vector.load %arg7[%c128, %c0_107] : memref<136x256xf32, #tpu.memory_space<vmem>>, vector<1x96xf32>
    %200 = vector.broadcast %199 : vector<1x96xf32> to vector<4x96xf32>
    %201 = arith.addf %198, %200 : vector<4x96xf32>
    %cst_108 = arith.constant 0.000000e+00 : f32
    %202 = vector.broadcast %cst_108 : f32 to vector<4x96xf32>
    %203 = arith.maximumf %201, %202 : vector<4x96xf32>
    %204 = arith.truncf %203 : vector<4x96xf32> to vector<4x96xbf16>
    %c0_109 = arith.constant 0 : index
    %c0_110 = arith.constant 0 : index
    %205 = vector.load %arg6[%c0_109, %c0_110] : memref<96x256xbf16, #tpu.memory_space<vmem>>, vector<96x256xbf16>
    %cst_111 = arith.constant dense<0.000000e+00> : vector<4x256xf32>
    %206 = tpu.matmul %204, %205, %cst_111 {dimension_numbers = #tpu.dot_dimension_numbers<[1], [0], [0], [1], [0, 0, 1, 1], [], []>} : vector<4x96xbf16>, vector<96x256xbf16>, vector<4x256xf32> -> vector<4x256xf32>
    %c16 = arith.constant 16 : index
    %c0_112 = arith.constant 0 : index
    %207 = vector.load %arg7[%c16, %c0_112] : memref<136x256xf32, #tpu.memory_space<vmem>>, vector<1x256xf32>
    %208 = vector.broadcast %207 : vector<1x256xf32> to vector<4x256xf32>
    %209 = arith.addf %206, %208 : vector<4x256xf32>
    %cst_113 = arith.constant 0.000000e+00 : f32
    %210 = vector.broadcast %cst_113 : f32 to vector<4x256xf32>
    %211 = arith.maximumf %209, %210 : vector<4x256xf32>
    %212 = arith.truncf %211 : vector<4x256xf32> to vector<4x256xbf16>
    %c0_114 = arith.constant 0 : index
    %c0_115 = arith.constant 0 : index
    %213 = vector.load %arg4[%c0_114, %c0_115] : memref<256x128xbf16, #tpu.memory_space<vmem>>, vector<256x128xbf16>
    %cst_116 = arith.constant dense<0.000000e+00> : vector<4x128xf32>
    %214 = tpu.matmul %212, %213, %cst_116 {dimension_numbers = #tpu.dot_dimension_numbers<[1], [0], [0], [1], [0, 0, 1, 1], [], []>} : vector<4x256xbf16>, vector<256x128xbf16>, vector<4x128xf32> -> vector<4x128xf32>
    %c24 = arith.constant 24 : index
    %c0_117 = arith.constant 0 : index
    %215 = vector.load %arg7[%c24, %c0_117] : memref<136x256xf32, #tpu.memory_space<vmem>>, vector<1x128xf32>
    %216 = vector.extract_strided_slice %214 {offsets = [0, 0], sizes = [1, 128], strides = [1, 1]} : vector<4x128xf32> to vector<1x128xf32>
    %217 = vector.extract_strided_slice %214 {offsets = [1, 0], sizes = [1, 128], strides = [1, 1]} : vector<4x128xf32> to vector<1x128xf32>
    %218 = arith.addf %216, %217 : vector<1x128xf32>
    %219 = arith.addf %218, %215 : vector<1x128xf32>
    %cst_118 = arith.constant 0.000000e+00 : f32
    %220 = vector.broadcast %cst_118 : f32 to vector<1x128xf32>
    %221 = arith.subf %220, %219 : vector<1x128xf32>
    %222 = math.exp %221 : vector<1x128xf32>
    %cst_119 = arith.constant 1.000000e+00 : f32
    %223 = vector.broadcast %cst_119 : f32 to vector<1x128xf32>
    %224 = arith.addf %223, %222 : vector<1x128xf32>
    %cst_120 = arith.constant 1.000000e+00 : f32
    %225 = vector.broadcast %cst_120 : f32 to vector<1x128xf32>
    %226 = arith.divf %225, %224 : vector<1x128xf32>
    %227 = vector.extract_strided_slice %214 {offsets = [2, 0], sizes = [1, 128], strides = [1, 1]} : vector<4x128xf32> to vector<1x128xf32>
    %228 = vector.extract_strided_slice %214 {offsets = [3, 0], sizes = [1, 128], strides = [1, 1]} : vector<4x128xf32> to vector<1x128xf32>
    %229 = arith.addf %227, %228 : vector<1x128xf32>
    %230 = arith.addf %229, %215 : vector<1x128xf32>
    %cst_121 = arith.constant 0.000000e+00 : f32
    %231 = vector.broadcast %cst_121 : f32 to vector<1x128xf32>
    %232 = arith.subf %231, %230 : vector<1x128xf32>
    %233 = math.exp %232 : vector<1x128xf32>
    %cst_122 = arith.constant 1.000000e+00 : f32
    %234 = vector.broadcast %cst_122 : f32 to vector<1x128xf32>
    %235 = arith.addf %234, %233 : vector<1x128xf32>
    %cst_123 = arith.constant 1.000000e+00 : f32
    %236 = vector.broadcast %cst_123 : f32 to vector<1x128xf32>
    %237 = arith.divf %236, %235 : vector<1x128xf32>
    %238 = tpu.concatenate %226, %237 in 0 : vector<1x128xf32>, vector<1x128xf32> -> vector<2x128xf32>
    %c0_124 = arith.constant 0 : index
    %c0_125 = arith.constant 0 : index
    %239 = vector.load %arg8[%c0_124, %c0_125] : memref<2x128xf32, #tpu.memory_space<vmem>>, vector<2x128xf32>
    tpu.vector_store %arg8[%c0_124, %c0_125], %238 {strides = array<i32>} : memref<2x128xf32, #tpu.memory_space<vmem>>, vector<2x128xf32>,
    return
  }
  func.func @transform_0(%arg0: i32) -> (i32, i32) {
    %c0_i32 = arith.constant 0 : i32
    %c0_i32_0 = arith.constant 0 : i32
    %c0_i32_1 = arith.constant 0 : i32
    return %c0_i32, %c0_i32_0 : i32, i32
  }
  func.func @transform_1(%arg0: i32) -> (i32, i32) {
    %c0_i32 = arith.constant 0 : i32
    %c0_i32_0 = arith.constant 0 : i32
    %c0_i32_1 = arith.constant 0 : i32
    return %c0_i32, %c0_i32_0 : i32, i32
  }
  func.func @transform_2(%arg0: i32) -> (i32, i32) {
    %c0_i32 = arith.constant 0 : i32
    %c0_i32_0 = arith.constant 0 : i32
    %c0_i32_1 = arith.constant 0 : i32
    return %c0_i32, %c0_i32_0 : i32, i32
  }
  func.func @transform_3(%arg0: i32) -> (i32, i32) {
    %c0_i32 = arith.constant 0 : i32
    %c0_i32_0 = arith.constant 0 : i32
    %c0_i32_1 = arith.constant 0 : i32
    return %c0_i32, %c0_i32_0 : i32, i32
  }
  func.func @transform_4(%arg0: i32) -> (i32, i32) {
    %c0_i32 = arith.constant 0 : i32
    %c0_i32_0 = arith.constant 0 : i32
    %c0_i32_1 = arith.constant 0 : i32
    return %c0_i32, %c0_i32_0 : i32, i32
  }
  func.func @transform_5(%arg0: i32) -> (i32, i32) {
    %c0_i32 = arith.constant 0 : i32
    %c0_i32_0 = arith.constant 0 : i32
    %c0_i32_1 = arith.constant 0 : i32
    return %c0_i32, %c0_i32_0 : i32, i32
  }
  func.func @transform_6(%arg0: i32) -> (i32, i32) {
    %c0_i32 = arith.constant 0 : i32
    %c0_i32_0 = arith.constant 0 : i32
    %c0_i32_1 = arith.constant 0 : i32
    return %c0_i32, %c0_i32_0 : i32, i32
  }
  func.func @transform_7(%arg0: i32) -> (i32, i32) {
    %c0_i32 = arith.constant 0 : i32
    %c0_i32_0 = arith.constant 0 : i32
    %c0_i32_1 = arith.constant 0 : i32
    return %c0_i32, %c0_i32_0 : i32, i32
  }
}

</mosaic_0001>

<llo_original>
// kernel: forward.1
$region0: #{forward.1}
  #allocation0 [shape = 'u32[]', space=smem, size = 0x4, offset = 0x4, fixed_abs, tag = 'smem constant byte address 0x4 - core index']
  #allocation1 [shape = 'u32[72,128]{1,0:T(1,128)}', space=vmem, size = 0x9000, scoped, tag = 'internal scratch']
  %s0 = inlined_call_operand.vmem [shape: bf16[64,192], index: 0, kind: input, shape index: {}]
  %s1 = inlined_call_operand.vmem [shape: bf16[368,192], index: 1, kind: input, shape index: {}]
  %s2 = inlined_call_operand.vmem [shape: bf16[3168,96], index: 2, kind: input, shape index: {}]
  %s3 = inlined_call_operand.vmem [shape: bf16[256,128], index: 3, kind: input, shape index: {}]
  %s4 = inlined_call_operand.vmem [shape: bf16[1056,192], index: 4, kind: input, shape index: {}]
  %s5 = inlined_call_operand.vmem [shape: bf16[96,256], index: 5, kind: input, shape index: {}]
  %s6 = inlined_call_operand.vmem [shape: f32[136,256], index: 6, kind: input, shape index: {}]
  %s7 = inlined_call_operand.hbm [shape: f32[2,128], index: 7, kind: output, shape index: {}]
  %s8 = sld [smem:[#allocation0]]
  $region38: #{forward.1} parent=0
    _
  %s10 = ssub.s32 1, %s8
  %s11 = scalar_select 0, %s10, %s8
  $region1: #{forward.1} parent=0
    #allocation2 [shape = 'u8[1024]{0}', space=vmem, size = 0x400, scoped, tag = 'output window, operand 0, single buffered']
    #allocation3 [shape = 's32[1]{0}', space=sflag, size = 0x4, scoped, tag = 'scoped memory for forward.1']
    %12 = vsyncpa [#allocation3], 0
    // Predicated region
    $region2: #{forward.1} parent=1 // pred_check
      _
    $region3: #{forward.1} parent=1 // pred_check_branch
      %14 = sbr.rel (0) target = $region5
    $region4: #{forward.1} parent=1 // pred_region
      _
    $region5: #{forward.1} parent=1 // pred_fallthru
      _
    // Predicated region
    $region6: #{forward.1} parent=1 // pred_check
      _
    $region7: #{forward.1} parent=1 // pred_check_branch
      %16 = sbr.rel (0) target = $region9
    $region8: #{forward.1} parent=1 // pred_region
      _
    $region9: #{forward.1} parent=1 // pred_fallthru
      _
    // Predicated region
    $region10: #{forward.1} parent=1 // pred_check
      _
    $region11: #{forward.1} parent=1 // pred_check_branch
      %18 = sbr.rel (0) target = $region13
    $region12: #{forward.1} parent=1 // pred_region
      _
    $region13: #{forward.1} parent=1 // pred_fallthru
      _
    // Predicated region
    $region14: #{forward.1} parent=1 // pred_check
      _
    $region15: #{forward.1} parent=1 // pred_check_branch
      %20 = sbr.rel (0) target = $region17
    $region16: #{forward.1} parent=1 // pred_region
      _
    $region17: #{forward.1} parent=1 // pred_fallthru
      _
    // Predicated region
    $region18: #{forward.1} parent=1 // pred_check
      _
    $region19: #{forward.1} parent=1 // pred_check_branch
      %22 = sbr.rel (0) target = $region21
    $region20: #{forward.1} parent=1 // pred_region
      _
    $region21: #{forward.1} parent=1 // pred_fallthru
      _
    // Predicated region
    $region22: #{forward.1} parent=1 // pred_check
      _
    $region23: #{forward.1} parent=1 // pred_check_branch
      %24 = sbr.rel (0) target = $region25
    $region24: #{forward.1} parent=1 // pred_region
      _
    $region25: #{forward.1} parent=1 // pred_fallthru
      _
    // Predicated region
    $region26: #{forward.1} parent=1 // pred_check
      _
    $region27: #{forward.1} parent=1 // pred_check_branch
      %26 = sbr.rel (0) target = $region29
    $region28: #{forward.1} parent=1 // pred_region
      _
    $region29: #{forward.1} parent=1 // pred_fallthru
      _
    %v28 = vld [vmem:[%s0] sm:$0xff]
    %v29 = vld [vmem:[%s0 + $0x8] sm:$0xff]
    %v30 = vld [vmem:[%s0 + $0x10] sm:$0xff]
    %v31 = vld [vmem:[%s0 + $0x18] sm:$0xff]
    %v32 = vld [vmem:[%s0 + $0x20] sm:$0xff]
    %v33 = vld [vmem:[%s0 + $0x28] sm:$0xff]
    %v34 = vld [vmem:[%s0 + $0x30] sm:$0xff]
    %v35 = vld [vmem:[%s0 + $0x38] sm:$0xff]
    %v36 = vld [vmem:[%s1] sm:$0xf]
    %v37 = vld [vmem:[%s1 + $0x8] sm:$0xf]
    %v38 = vld [vmem:[%s1 + $0x10] sm:$0xf]
    %v39 = vld [vmem:[%s1 + $0x18] sm:$0xf]
    %v40 = vld [vmem:[%s1 + $0x20] sm:$0xf]
    %v41 = vld [vmem:[%s1 + $0x28] sm:$0xf]
    %v42 = vld [vmem:[%s1 + $0x30] sm:$0xf]
    %v43 = vld [vmem:[%s1 + $0x38] sm:$0xf]
    %v44 = vld [vmem:[%s1 + $0x40] sm:$0xf]
    %v45 = vld [vmem:[%s1 + $0x48] sm:$0xf]
    %v46 = vld [vmem:[%s1 + $0x50] sm:$0xf]
    %v47 = vld [vmem:[%s1 + $0x58] sm:$0xf]
    %v60 = vunpack.c.l.b16 %v36
    %v61 = vunpack.c.l.b16 %v37
    %v62 = vunpack.c.l.b16 %v38
    %v63 = vunpack.c.l.b16 %v39
    %v64 = vunpack.c.l.b16 %v40
    %v65 = vunpack.c.l.b16 %v41
    %v66 = vunpack.c.l.b16 %v42
    %v67 = vunpack.c.l.b16 %v43
    %v68 = vunpack.c.l.b16 %v44
    %v69 = vunpack.c.l.b16 %v45
    %v70 = vunpack.c.l.b16 %v46
    %v71 = vunpack.c.l.b16 %v47
    %v72 = vpack.c.b16 %v61, %v60
    %v73 = vpack.c.b16 %v63, %v62
    %v74 = vpack.c.b16 %v65, %v64
    %v75 = vpack.c.b16 %v67, %v66
    %v76 = vpack.c.b16 %v69, %v68
    %v77 = vpack.c.b16 %v71, %v70
    %v86 = vunpack.c.l.b16 %v28
    %v87 = vunpack.c.h.b16 %v28
    %v88 = vunpack.c.l.b16 %v29
    %v89 = vunpack.c.h.b16 %v29
    %v90 = vunpack.c.l.b16 %v30
    %v91 = vunpack.c.h.b16 %v30
    %v92 = vunpack.c.l.b16 %v31
    %v93 = vunpack.c.h.b16 %v31
    %v94 = vunpack.c.l.b16 %v32
    %v95 = vunpack.c.h.b16 %v32
    %v96 = vunpack.c.l.b16 %v33
    %v97 = vunpack.c.h.b16 %v33
    %v98 = vunpack.c.l.b16 %v34
    %v99 = vunpack.c.h.b16 %v34
    %v100 = vunpack.c.l.b16 %v35
    %v101 = vunpack.c.h.b16 %v35
    %v102 = vpack.c.b16 %v88, %v86
    %v103 = vpack.c.b16 %v89, %v87
    %v104 = vpack.c.b16 %v92, %v90
    %v105 = vpack.c.b16 %v93, %v91
    %v106 = vpack.c.b16 %v96, %v94
    %v107 = vpack.c.b16 %v97, %v95
    %v108 = vpack.c.b16 %v100, %v98
    %v109 = vpack.c.b16 %v101, %v99
    %vm118 = vcmask 523264
    %v120 = vsel %vm118, %v72, 0
    %v123 = vsel %vm118, %v73, 0
    %v126 = vsel %vm118, %v74, 0
    %v129 = vsel %vm118, %v75, 0
    %v132 = vsel %vm118, %v76, 0
    %v135 = vsel %vm118, %v77, 0
    %137 = vmatpush.bf16.msra.mxu0 0
    %138 = vmatpush.bf16.msra.mxu0 0
    %139 = vmatpush.bf16.msra.mxu0 0
    %140 = vmatpush.bf16.msra.mxu0 0
    %141 = vmatpush.bf16.msra.mxu0 %v108
    %142 = vmatpush.bf16.msra.mxu0 %v106
    %143 = vmatpush.bf16.msra.mxu0 %v104
    %144 = vmatpush.bf16.msra.mxu0 %v102
    %145 = vmatmul.bf16.gmra.mxu0 %v120
    %v146 = vpop.f32.mrf.mxu0
    %v147 = vadd.f32 0.0, %v146
    %v148 = vpop.f32.mrf.mxu0
    %v149 = vadd.f32 0.0, %v148
    %150 = vmatmul.bf16.gmra.mxu0 %v123
    %v151 = vpop.f32.mrf.mxu0
    %v152 = vadd.f32 0.0, %v151
    %v153 = vpop.f32.mrf.mxu0
    %v154 = vadd.f32 0.0, %v153
    %155 = vmatmul.bf16.gmra.mxu0 %v126
    %v156 = vpop.f32.mrf.mxu0
    %v157 = vadd.f32 0.0, %v156
    %v158 = vpop.f32.mrf.mxu0
    %v159 = vadd.f32 0.0, %v158
    %160 = vmatmul.bf16.gmra.mxu0 %v129
    %v161 = vpop.f32.mrf.mxu0
    %v162 = vadd.f32 0.0, %v161
    %v163 = vpop.f32.mrf.mxu0
    %v164 = vadd.f32 0.0, %v163
    %165 = vmatmul.bf16.gmra.mxu0 %v132
    %v166 = vpop.f32.mrf.mxu0
    %v167 = vadd.f32 0.0, %v166
    %v168 = vpop.f32.mrf.mxu0
    %v169 = vadd.f32 0.0, %v168
    %170 = vmatmul.bf16.gmra.mxu0 %v135
    %v171 = vpop.f32.mrf.mxu0
    %v172 = vadd.f32 0.0, %v171
    %v173 = vpop.f32.mrf.mxu0
    %v174 = vadd.f32 0.0, %v173
    %175 = vdwg.mxu0
    %176 = vmatpush.bf16.msra.mxu0 0
    %177 = vmatpush.bf16.msra.mxu0 0
    %178 = vmatpush.bf16.msra.mxu0 0
    %179 = vmatpush.bf16.msra.mxu0 0
    %180 = vmatpush.bf16.msra.mxu0 %v109
    %181 = vmatpush.bf16.msra.mxu0 %v107
    %182 = vmatpush.bf16.msra.mxu0 %v105
    %183 = vmatpush.bf16.msra.mxu0 %v103
    %184 = vmatmul.bf16.gmra.mxu0 %v120
    %v185 = vpop.f32.mrf.mxu0
    %v186 = vadd.f32 0.0, %v185
    %v187 = vpop.f32.mrf.mxu0
    %v188 = vadd.f32 0.0, %v187
    %189 = vmatmul.bf16.gmra.mxu0 %v123
    %v190 = vpop.f32.mrf.mxu0
    %v191 = vadd.f32 0.0, %v190
    %v192 = vpop.f32.mrf.mxu0
    %v193 = vadd.f32 0.0, %v192
    %194 = vmatmul.bf16.gmra.mxu0 %v126
    %v195 = vpop.f32.mrf.mxu0
    %v196 = vadd.f32 0.0, %v195
    %v197 = vpop.f32.mrf.mxu0
    %v198 = vadd.f32 0.0, %v197
    %199 = vmatmul.bf16.gmra.mxu0 %v129
    %v200 = vpop.f32.mrf.mxu0
    %v201 = vadd.f32 0.0, %v200
    %v202 = vpop.f32.mrf.mxu0
    %v203 = vadd.f32 0.0, %v202
    %204 = vmatmul.bf16.gmra.mxu0 %v132
    %v205 = vpop.f32.mrf.mxu0
    %v206 = vadd.f32 0.0, %v205
    %v207 = vpop.f32.mrf.mxu0
    %v208 = vadd.f32 0.0, %v207
    %209 = vmatmul.bf16.gmra.mxu0 %v135
    %v210 = vpop.f32.mrf.mxu0
    %v211 = vadd.f32 0.0, %v210
    %v212 = vpop.f32.mrf.mxu0
    %v213 = vadd.f32 0.0, %v212
    %214 = vdwg.mxu0
    %v215 = vpack.c.bf16 %v186, %v147
    %v216 = vpack.c.bf16 %v188, %v149
    %v217 = vpack.c.bf16 %v191, %v152
    %v218 = vpack.c.bf16 %v193, %v154
    %v219 = vpack.c.bf16 %v196, %v157
    %v220 = vpack.c.bf16 %v198, %v159
    %v221 = vpack.c.bf16 %v201, %v162
    %v222 = vpack.c.bf16 %v203, %v164
    %v223 = vpack.c.bf16 %v206, %v167
    %v224 = vpack.c.bf16 %v208, %v169
    %v225 = vpack.c.bf16 %v211, %v172
    %v226 = vpack.c.bf16 %v213, %v174
    %v227 = vld [vmem:[%s6 + $0x40] ss:$0 sm:$0xff]
    %v228 = vld [vmem:[%s2 + $0x120] sm:$0xf]
    %v229 = vld [vmem:[%s2 + $0x124] sm:$0xf]
    %v230 = vld [vmem:[%s2 + $0x128] sm:$0xf]
    %v231 = vld [vmem:[%s2 + $0x12c] sm:$0xf]
    %v232 = vld [vmem:[%s2 + $0x130] sm:$0xf]
    %v233 = vld [vmem:[%s2 + $0x134] sm:$0xf]
    %v234 = vld [vmem:[%s2 + $0x138] sm:$0xf]
    %v235 = vld [vmem:[%s2 + $0x13c] sm:$0xf]
    %v236 = vld [vmem:[%s2 + $0x140] sm:$0xf]
    %v237 = vld [vmem:[%s2 + $0x144] sm:$0xf]
    %v238 = vld [vmem:[%s2 + $0x148] sm:$0xf]
    %v239 = vld [vmem:[%s2 + $0x14c] sm:$0xf]
    %v240 = vld [vmem:[%s2 + $0x150] sm:$0xf]
    %v241 = vld [vmem:[%s2 + $0x154] sm:$0xf]
    %v242 = vld [vmem:[%s2 + $0x158] sm:$0xf]
    %v243 = vld [vmem:[%s2 + $0x15c] sm:$0xf]
    %v244 = vld [vmem:[%s2 + $0x160] sm:$0xf]
    %v245 = vld [vmem:[%s2 + $0x164] sm:$0xf]
    %v246 = vld [vmem:[%s2 + $0x168] sm:$0xf]
    %v247 = vld [vmem:[%s2 + $0x16c] sm:$0xf]
    %v248 = vld [vmem:[%s2 + $0x170] sm:$0xf]
    %v249 = vld [vmem:[%s2 + $0x174] sm:$0xf]
    %v250 = vld [vmem:[%s2 + $0x178] sm:$0xf]
    %v251 = vld [vmem:[%s2 + $0x17c] sm:$0xf]
    %v256 = vunpack.c.l.b16 %v215
    %v257 = vunpack.c.h.b16 %v215
    %v258 = vunpack.c.l.b16 %v216
    %v259 = vunpack.c.h.b16 %v216
    %v260 = vunpack.c.l.b16 %v217
    %v261 = vunpack.c.h.b16 %v217
    %v262 = vunpack.c.l.b16 %v218
    %v263 = vunpack.c.h.b16 %v218
    %v264 = vpack.c.b16 %v258, %v256
    %v265 = vpack.c.b16 %v259, %v257
    %v266 = vpack.c.b16 %v262, %v260
    %v267 = vpack.c.b16 %v263, %v261
    %v294 = vunpack.c.l.b16 %v228
    %v295 = vunpack.c.l.b16 %v229
    %v296 = vunpack.c.l.b16 %v230
    %v297 = vunpack.c.l.b16 %v231
    %v298 = vunpack.c.l.b16 %v232
    %v299 = vunpack.c.l.b16 %v233
    %v300 = vunpack.c.l.b16 %v234
    %v301 = vunpack.c.l.b16 %v235
    %v302 = vunpack.c.l.b16 %v236
    %v303 = vunpack.c.l.b16 %v237
    %v304 = vunpack.c.l.b16 %v238
    %v305 = vunpack.c.l.b16 %v239
    %v306 = vunpack.c.l.b16 %v240
    %v307 = vunpack.c.l.b16 %v241
    %v308 = vunpack.c.l.b16 %v242
    %v309 = vunpack.c.l.b16 %v243
    %v310 = vunpack.c.l.b16 %v244
    %v311 = vunpack.c.l.b16 %v245
    %v312 = vunpack.c.l.b16 %v246
    %v313 = vunpack.c.l.b16 %v247
    %v314 = vunpack.c.l.b16 %v248
    %v315 = vunpack.c.l.b16 %v249
    %v316 = vunpack.c.l.b16 %v250
    %v317 = vunpack.c.l.b16 %v251
    %v318 = vpack.c.b16 %v295, %v294
    %v319 = vpack.c.b16 %v297, %v296
    %v320 = vpack.c.b16 %v299, %v298
    %v321 = vpack.c.b16 %v301, %v300
    %v322 = vpack.c.b16 %v303, %v302
    %v323 = vpack.c.b16 %v305, %v304
    %v324 = vpack.c.b16 %v307, %v306
    %v325 = vpack.c.b16 %v309, %v308
    %v326 = vpack.c.b16 %v311, %v310
    %v327 = vpack.c.b16 %v313, %v312
    %v328 = vpack.c.b16 %v315, %v314
    %v329 = vpack.c.b16 %v317, %v316
    %v343 = vsel %vm118, %v265, 0
    %v346 = vsel %vm118, %v267, 0
    %348 = vmatpush.bf16.msra.mxu0 %v325
    %349 = vmatpush.bf16.msra.mxu0 %v324
    %350 = vmatpush.bf16.msra.mxu0 %v323
    %351 = vmatpush.bf16.msra.mxu0 %v322
    %352 = vmatpush.bf16.msra.mxu0 %v321
    %353 = vmatpush.bf16.msra.mxu0 %v320
    %354 = vmatpush.bf16.msra.mxu0 %v319
    %355 = vmatpush.bf16.msra.mxu0 %v318
    %356 = vmatmul.bf16.gmra.mxu0 %v264
    %v357 = vpop.f32.mrf.mxu0
    %v358 = vadd.f32 0.0, %v357
    %v359 = vpop.f32.mrf.mxu0
    %v360 = vadd.f32 0.0, %v359
    %361 = vmatmul.bf16.gmra.mxu0 %v266
    %v362 = vpop.f32.mrf.mxu0
    %v363 = vadd.f32 0.0, %v362
    %v364 = vpop.f32.mrf.mxu0
    %v365 = vadd.f32 0.0, %v364
    %366 = vdwg.mxu0
    %367 = vmatpush.bf16.msra.mxu0 0
    %368 = vmatpush.bf16.msra.mxu0 0
    %369 = vmatpush.bf16.msra.mxu0 0
    %370 = vmatpush.bf16.msra.mxu0 0
    %371 = vmatpush.bf16.msra.mxu0 %v329
    %372 = vmatpush.bf16.msra.mxu0 %v328
    %373 = vmatpush.bf16.msra.mxu0 %v327
    %374 = vmatpush.bf16.msra.mxu0 %v326
    %375 = vmatmul.bf16.gmra.mxu0 %v343
    %v376 = vpop.f32.mrf.mxu0
    %v377 = vadd.f32 %v358, %v376
    %v378 = vpop.f32.mrf.mxu0
    %v379 = vadd.f32 %v360, %v378
    %380 = vmatmul.bf16.gmra.mxu0 %v346
    %v381 = vpop.f32.mrf.mxu0
    %v382 = vadd.f32 %v363, %v381
    %v383 = vpop.f32.mrf.mxu0
    %v384 = vadd.f32 %v365, %v383
    %385 = vdwg.mxu0
    %v386 = vadd.f32 %v227, %v377
    %v387 = vadd.f32 %v227, %v379
    %v388 = vadd.f32 %v227, %v382
    %v389 = vadd.f32 %v227, %v384
    %v390 = vld [vmem:[%s2 + $0x180] sm:$0xf]
    %v391 = vld [vmem:[%s2 + $0x184] sm:$0xf]
    %v392 = vld [vmem:[%s2 + $0x188] sm:$0xf]
    %v393 = vld [vmem:[%s2 + $0x18c] sm:$0xf]
    %v394 = vld [vmem:[%s2 + $0x190] sm:$0xf]
    %v395 = vld [vmem:[%s2 + $0x194] sm:$0xf]
    %v396 = vld [vmem:[%s2 + $0x198] sm:$0xf]
    %v397 = vld [vmem:[%s2 + $0x19c] sm:$0xf]
    %v398 = vld [vmem:[%s2 + $0x1a0] sm:$0xf]
    %v399 = vld [vmem:[%s2 + $0x1a4] sm:$0xf]
    %v400 = vld [vmem:[%s2 + $0x1a8] sm:$0xf]
    %v401 = vld [vmem:[%s2 + $0x1ac] sm:$0xf]
    %v402 = vld [vmem:[%s2 + $0x1b0] sm:$0xf]
    %v403 = vld [vmem:[%s2 + $0x1b4] sm:$0xf]
    %v404 = vld [vmem:[%s2 + $0x1b8] sm:$0xf]
    %v405 = vld [vmem:[%s2 + $0x1bc] sm:$0xf]
    %v406 = vld [vmem:[%s2 + $0x1c0] sm:$0xf]
    %v407 = vld [vmem:[%s2 + $0x1c4] sm:$0xf]
    %v408 = vld [vmem:[%s2 + $0x1c8] sm:$0xf]
    %v409 = vld [vmem:[%s2 + $0x1cc] sm:$0xf]
    %v410 = vld [vmem:[%s2 + $0x1d0] sm:$0xf]
    %v411 = vld [vmem:[%s2 + $0x1d4] sm:$0xf]
    %v412 = vld [vmem:[%s2 + $0x1d8] sm:$0xf]
    %v413 = vld [vmem:[%s2 + $0x1dc] sm:$0xf]
    %v418 = vunpack.c.l.b16 %v219
    %v419 = vunpack.c.h.b16 %v219
    %v420 = vunpack.c.l.b16 %v220
    %v421 = vunpack.c.h.b16 %v220
    %v422 = vunpack.c.l.b16 %v221
    %v423 = vunpack.c.h.b16 %v221
    %v424 = vunpack.c.l.b16 %v222
    %v425 = vunpack.c.h.b16 %v222
    %v426 = vpack.c.b16 %v420, %v418
    %v427 = vpack.c.b16 %v421, %v419
    %v428 = vpack.c.b16 %v424, %v422
    %v429 = vpack.c.b16 %v425, %v423
    %v456 = vunpack.c.l.b16 %v390
    %v457 = vunpack.c.l.b16 %v391
    %v458 = vunpack.c.l.b16 %v392
    %v459 = vunpack.c.l.b16 %v393
    %v460 = vunpack.c.l.b16 %v394
    %v461 = vunpack.c.l.b16 %v395
    %v462 = vunpack.c.l.b16 %v396
    %v463 = vunpack.c.l.b16 %v397
    %v464 = vunpack.c.l.b16 %v398
    %v465 = vunpack.c.l.b16 %v399
    %v466 = vunpack.c.l.b16 %v400
    %v467 = vunpack.c.l.b16 %v401
    %v468 = vunpack.c.l.b16 %v402
    %v469 = vunpack.c.l.b16 %v403
    %v470 = vunpack.c.l.b16 %v404
    %v471 = vunpack.c.l.b16 %v405
    %v472 = vunpack.c.l.b16 %v406
    %v473 = vunpack.c.l.b16 %v407
    %v474 = vunpack.c.l.b16 %v408
    %v475 = vunpack.c.l.b16 %v409
    %v476 = vunpack.c.l.b16 %v410
    %v477 = vunpack.c.l.b16 %v411
    %v478 = vunpack.c.l.b16 %v412
    %v479 = vunpack.c.l.b16 %v413
    %v480 = vpack.c.b16 %v457, %v456
    %v481 = vpack.c.b16 %v459, %v458
    %v482 = vpack.c.b16 %v461, %v460
    %v483 = vpack.c.b16 %v463, %v462
    %v484 = vpack.c.b16 %v465, %v464
    %v485 = vpack.c.b16 %v467, %v466
    %v486 = vpack.c.b16 %v469, %v468
    %v487 = vpack.c.b16 %v471, %v470
    %v488 = vpack.c.b16 %v473, %v472
    %v489 = vpack.c.b16 %v475, %v474
    %v490 = vpack.c.b16 %v477, %v476
    %v491 = vpack.c.b16 %v479, %v478
    %v505 = vsel %vm118, %v427, 0
    %v508 = vsel %vm118, %v429, 0
    %510 = vmatpush.bf16.msra.mxu0 %v487
    %511 = vmatpush.bf16.msra.mxu0 %v486
    %512 = vmatpush.bf16.msra.mxu0 %v485
    %513 = vmatpush.bf16.msra.mxu0 %v484
    %514 = vmatpush.bf16.msra.mxu0 %v483
    %515 = vmatpush.bf16.msra.mxu0 %v482
    %516 = vmatpush.bf16.msra.mxu0 %v481
    %517 = vmatpush.bf16.msra.mxu0 %v480
    %518 = vmatmul.bf16.gmra.mxu0 %v426
    %v519 = vpop.f32.mrf.mxu0
    %v520 = vadd.f32 0.0, %v519
    %v521 = vpop.f32.mrf.mxu0
    %v522 = vadd.f32 0.0, %v521
    %523 = vmatmul.bf16.gmra.mxu0 %v428
    %v524 = vpop.f32.mrf.mxu0
    %v525 = vadd.f32 0.0, %v524
    %v526 = vpop.f32.mrf.mxu0
    %v527 = vadd.f32 0.0, %v526
    %528 = vdwg.mxu0
    %529 = vmatpush.bf16.msra.mxu0 0
    %530 = vmatpush.bf16.msra.mxu0 0
    %531 = vmatpush.bf16.msra.mxu0 0
    %532 = vmatpush.bf16.msra.mxu0 0
    %533 = vmatpush.bf16.msra.mxu0 %v491
    %534 = vmatpush.bf16.msra.mxu0 %v490
    %535 = vmatpush.bf16.msra.mxu0 %v489
    %536 = vmatpush.bf16.msra.mxu0 %v488
    %537 = vmatmul.bf16.gmra.mxu0 %v505
    %v538 = vpop.f32.mrf.mxu0
    %v539 = vadd.f32 %v520, %v538
    %v540 = vpop.f32.mrf.mxu0
    %v541 = vadd.f32 %v522, %v540
    %542 = vmatmul.bf16.gmra.mxu0 %v508
    %v543 = vpop.f32.mrf.mxu0
    %v544 = vadd.f32 %v525, %v543
    %v545 = vpop.f32.mrf.mxu0
    %v546 = vadd.f32 %v527, %v545
    %547 = vdwg.mxu0
    %v548 = vadd.f32 %v386, %v539
    %v549 = vadd.f32 %v387, %v541
    %v550 = vadd.f32 %v388, %v544
    %v551 = vadd.f32 %v389, %v546
    %v552 = vld [vmem:[%s2 + $0x1e0] sm:$0xf]
    %v553 = vld [vmem:[%s2 + $0x1e4] sm:$0xf]
    %v554 = vld [vmem:[%s2 + $0x1e8] sm:$0xf]
    %v555 = vld [vmem:[%s2 + $0x1ec] sm:$0xf]
    %v556 = vld [vmem:[%s2 + $0x1f0] sm:$0xf]
    %v557 = vld [vmem:[%s2 + $0x1f4] sm:$0xf]
    %v558 = vld [vmem:[%s2 + $0x1f8] sm:$0xf]
    %v559 = vld [vmem:[%s2 + $0x1fc] sm:$0xf]
    %v560 = vld [vmem:[%s2 + $0x200] sm:$0xf]
    %v561 = vld [vmem:[%s2 + $0x204] sm:$0xf]
    %v562 = vld [vmem:[%s2 + $0x208] sm:$0xf]
    %v563 = vld [vmem:[%s2 + $0x20c] sm:$0xf]
    %v564 = vld [vmem:[%s2 + $0x210] sm:$0xf]
    %v565 = vld [vmem:[%s2 + $0x214] sm:$0xf]
    %v566 = vld [vmem:[%s2 + $0x218] sm:$0xf]
    %v567 = vld [vmem:[%s2 + $0x21c] sm:$0xf]
    %v568 = vld [vmem:[%s2 + $0x220] sm:$0xf]
    %v569 = vld [vmem:[%s2 + $0x224] sm:$0xf]
    %v570 = vld [vmem:[%s2 + $0x228] sm:$0xf]
    %v571 = vld [vmem:[%s2 + $0x22c] sm:$0xf]
    %v572 = vld [vmem:[%s2 + $0x230] sm:$0xf]
    %v573 = vld [vmem:[%s2 + $0x234] sm:$0xf]
    %v574 = vld [vmem:[%s2 + $0x238] sm:$0xf]
    %v575 = vld [vmem:[%s2 + $0x23c] sm:$0xf]
    %v580 = vunpack.c.l.b16 %v223
    %v581 = vunpack.c.h.b16 %v223
    %v582 = vunpack.c.l.b16 %v224
    %v583 = vunpack.c.h.b16 %v224
    %v584 = vunpack.c.l.b16 %v225
    %v585 = vunpack.c.h.b16 %v225
    %v586 = vunpack.c.l.b16 %v226
    %v587 = vunpack.c.h.b16 %v226
    %v588 = vpack.c.b16 %v582, %v580
    %v589 = vpack.c.b16 %v583, %v581
    %v590 = vpack.c.b16 %v586, %v584
    %v591 = vpack.c.b16 %v587, %v585
    %v618 = vunpack.c.l.b16 %v552
    %v619 = vunpack.c.l.b16 %v553
    %v620 = vunpack.c.l.b16 %v554
    %v621 = vunpack.c.l.b16 %v555
    %v622 = vunpack.c.l.b16 %v556
    %v623 = vunpack.c.l.b16 %v557
    %v624 = vunpack.c.l.b16 %v558
    %v625 = vunpack.c.l.b16 %v559
    %v626 = vunpack.c.l.b16 %v560
    %v627 = vunpack.c.l.b16 %v561
    %v628 = vunpack.c.l.b16 %v562
    %v629 = vunpack.c.l.b16 %v563
    %v630 = vunpack.c.l.b16 %v564
    %v631 = vunpack.c.l.b16 %v565
    %v632 = vunpack.c.l.b16 %v566
    %v633 = vunpack.c.l.b16 %v567
    %v634 = vunpack.c.l.b16 %v568
    %v635 = vunpack.c.l.b16 %v569
    %v636 = vunpack.c.l.b16 %v570
    %v637 = vunpack.c.l.b16 %v571
    %v638 = vunpack.c.l.b16 %v572
    %v639 = vunpack.c.l.b16 %v573
    %v640 = vunpack.c.l.b16 %v574
    %v641 = vunpack.c.l.b16 %v575
    %v642 = vpack.c.b16 %v619, %v618
    %v643 = vpack.c.b16 %v621, %v620
    %v644 = vpack.c.b16 %v623, %v622
    %v645 = vpack.c.b16 %v625, %v624
    %v646 = vpack.c.b16 %v627, %v626
    %v647 = vpack.c.b16 %v629, %v628
    %v648 = vpack.c.b16 %v631, %v630
    %v649 = vpack.c.b16 %v633, %v632
    %v650 = vpack.c.b16 %v635, %v634
    %v651 = vpack.c.b16 %v637, %v636
    %v652 = vpack.c.b16 %v639, %v638
    %v653 = vpack.c.b16 %v641, %v640
    %v667 = vsel %vm118, %v589, 0
    %v670 = vsel %vm118, %v591, 0
    %672 = vmatpush.bf16.msra.mxu0 %v649
    %673 = vmatpush.bf16.msra.mxu0 %v648
    %674 = vmatpush.bf16.msra.mxu0 %v647
    %675 = vmatpush.bf16.msra.mxu0 %v646
    %676 = vmatpush.bf16.msra.mxu0 %v645
    %677 = vmatpush.bf16.msra.mxu0 %v644
    %678 = vmatpush.bf16.msra.mxu0 %v643
    %679 = vmatpush.bf16.msra.mxu0 %v642
    %680 = vmatmul.bf16.gmra.mxu0 %v588
    %v681 = vpop.f32.mrf.mxu0
    %v682 = vadd.f32 0.0, %v681
    %v683 = vpop.f32.mrf.mxu0
    %v684 = vadd.f32 0.0, %v683
    %685 = vmatmul.bf16.gmra.mxu0 %v590
    %v686 = vpop.f32.mrf.mxu0
    %v687 = vadd.f32 0.0, %v686
    %v688 = vpop.f32.mrf.mxu0
    %v689 = vadd.f32 0.0, %v688
    %690 = vdwg.mxu0
    %691 = vmatpush.bf16.msra.mxu0 0
    %692 = vmatpush.bf16.msra.mxu0 0
    %693 = vmatpush.bf16.msra.mxu0 0
    %694 = vmatpush.bf16.msra.mxu0 0
    %695 = vmatpush.bf16.msra.mxu0 %v653
    %696 = vmatpush.bf16.msra.mxu0 %v652
    %697 = vmatpush.bf16.msra.mxu0 %v651
    %698 = vmatpush.bf16.msra.mxu0 %v650
    %699 = vmatmul.bf16.gmra.mxu0 %v667
    %v700 = vpop.f32.mrf.mxu0
    %v701 = vadd.f32 %v682, %v700
    %v702 = vpop.f32.mrf.mxu0
    %v703 = vadd.f32 %v684, %v702
    %704 = vmatmul.bf16.gmra.mxu0 %v670
    %v705 = vpop.f32.mrf.mxu0
    %v706 = vadd.f32 %v687, %v705
    %v707 = vpop.f32.mrf.mxu0
    %v708 = vadd.f32 %v689, %v707
    %709 = vdwg.mxu0
    %v710 = vadd.f32 %v548, %v701
    %v711 = vadd.f32 %v549, %v703
    %v712 = vadd.f32 %v550, %v706
    %v713 = vadd.f32 %v551, %v708
    %v714 = vmax.f32 %v710, 0.0
    %v715 = vmax.f32 %v711, 0.0
    %v716 = vmax.f32 %v712, 0.0
    %v717 = vmax.f32 %v713, 0.0
    %v718 = vpack.c.bf16 %v715, %v714
    %v719 = vpack.c.bf16 %v717, %v716
    %v720 = vld [vmem:[%s2 + $0x240] sm:$0xf]
    %v721 = vld [vmem:[%s2 + $0x244] sm:$0xf]
    %v722 = vld [vmem:[%s2 + $0x248] sm:$0xf]
    %v723 = vld [vmem:[%s2 + $0x24c] sm:$0xf]
    %v724 = vld [vmem:[%s2 + $0x250] sm:$0xf]
    %v725 = vld [vmem:[%s2 + $0x254] sm:$0xf]
    %v726 = vld [vmem:[%s2 + $0x258] sm:$0xf]
    %v727 = vld [vmem:[%s2 + $0x25c] sm:$0xf]
    %v728 = vld [vmem:[%s2 + $0x260] sm:$0xf]
    %v729 = vld [vmem:[%s2 + $0x264] sm:$0xf]
    %v730 = vld [vmem:[%s2 + $0x268] sm:$0xf]
    %v731 = vld [vmem:[%s2 + $0x26c] sm:$0xf]
    %v732 = vld [vmem:[%s6 + $0x50] ss:$0 sm:$0xff]
    %v745 = vunpack.c.l.b16 %v720
    %v746 = vunpack.c.l.b16 %v721
    %v747 = vunpack.c.l.b16 %v722
    %v748 = vunpack.c.l.b16 %v723
    %v749 = vunpack.c.l.b16 %v724
    %v750 = vunpack.c.l.b16 %v725
    %v751 = vunpack.c.l.b16 %v726
    %v752 = vunpack.c.l.b16 %v727
    %v753 = vunpack.c.l.b16 %v728
    %v754 = vunpack.c.l.b16 %v729
    %v755 = vunpack.c.l.b16 %v730
    %v756 = vunpack.c.l.b16 %v731
    %v757 = vpack.c.b16 %v746, %v745
    %v758 = vpack.c.b16 %v748, %v747
    %v759 = vpack.c.b16 %v750, %v749
    %v760 = vpack.c.b16 %v752, %v751
    %v761 = vpack.c.b16 %v754, %v753
    %v762 = vpack.c.b16 %v756, %v755
    %vm769 = vcmask 785408
    %v771 = vsel %vm769, %v718, 0
    %v774 = vsel %vm769, %v719, 0
    %776 = vmatpush.bf16.msra.mxu0 0
    %777 = vmatpush.bf16.msra.mxu0 0
    %778 = vmatpush.bf16.msra.mxu0 %v762
    %779 = vmatpush.bf16.msra.mxu0 %v761
    %780 = vmatpush.bf16.msra.mxu0 %v760
    %781 = vmatpush.bf16.msra.mxu0 %v759
    %782 = vmatpush.bf16.msra.mxu0 %v758
    %783 = vmatpush.bf16.msra.mxu0 %v757
    %784 = vmatmul.bf16.gmra.mxu0 %v771
    %v785 = vpop.f32.mrf.mxu0
    %v786 = vadd.f32 %v732, %v785
    %v787 = vpop.f32.mrf.mxu0
    %v788 = vadd.f32 %v732, %v787
    %789 = vmatmul.bf16.gmra.mxu0 %v774
    %v790 = vpop.f32.mrf.mxu0
    %v791 = vadd.f32 %v732, %v790
    %v792 = vpop.f32.mrf.mxu0
    %v793 = vadd.f32 %v732, %v792
    %794 = vdwg.mxu0
    %v795 = vmax.f32 %v786, 0.0
    %v796 = vmax.f32 %v788, 0.0
    %v797 = vmax.f32 %v791, 0.0
    %v798 = vmax.f32 %v793, 0.0
    %v799 = vpack.c.bf16 %v796, %v795
    %v800 = vpack.c.bf16 %v798, %v797
    %v801 = vld [vmem:[%s1 + $0xc0] sm:$0xf]
    %v802 = vld [vmem:[%s1 + $0xc8] sm:$0xf]
    %v803 = vld [vmem:[%s1 + $0xd0] sm:$0xf]
    %v804 = vld [vmem:[%s1 + $0xd8] sm:$0xf]
    %v805 = vld [vmem:[%s1 + $0xe0] sm:$0xf]
    %v806 = vld [vmem:[%s1 + $0xe8] sm:$0xf]
    %v807 = vld [vmem:[%s1 + $0xf0] sm:$0xf]
    %v808 = vld [vmem:[%s1 + $0xf8] sm:$0xf]
    %v809 = vld [vmem:[%s1 + $0x100] sm:$0xf]
    %v810 = vld [vmem:[%s1 + $0x108] sm:$0xf]
    %v811 = vld [vmem:[%s1 + $0x110] sm:$0xf]
    %v812 = vld [vmem:[%s1 + $0x118] sm:$0xf]
    %v825 = vunpack.c.l.b16 %v801
    %v826 = vunpack.c.l.b16 %v802
    %v827 = vunpack.c.l.b16 %v803
    %v828 = vunpack.c.l.b16 %v804
    %v829 = vunpack.c.l.b16 %v805
    %v830 = vunpack.c.l.b16 %v806
    %v831 = vunpack.c.l.b16 %v807
    %v832 = vunpack.c.l.b16 %v808
    %v833 = vunpack.c.l.b16 %v809
    %v834 = vunpack.c.l.b16 %v810
    %v835 = vunpack.c.l.b16 %v811
    %v836 = vunpack.c.l.b16 %v812
    %v837 = vpack.c.b16 %v826, %v825
    %v838 = vpack.c.b16 %v828, %v827
    %v839 = vpack.c.b16 %v830, %v829
    %v840 = vpack.c.b16 %v832, %v831
    %v841 = vpack.c.b16 %v834, %v833
    %v842 = vpack.c.b16 %v836, %v835
    %vm843 = vcmask 261120
    %v845 = vsel %vm843, %v837, 0
    %v848 = vsel %vm843, %v838, 0
    %v851 = vsel %vm843, %v839, 0
    %v854 = vsel %vm843, %v840, 0
    %v857 = vsel %vm843, %v841, 0
    %v860 = vsel %vm843, %v842, 0
    %862 = vmatpush.bf16.msra.mxu0 0
    %863 = vmatpush.bf16.msra.mxu0 0
    %864 = vmatpush.bf16.msra.mxu0 0
    %865 = vmatpush.bf16.msra.mxu0 0
    %866 = vmatpush.bf16.msra.mxu0 0
    %867 = vmatpush.bf16.msra.mxu0 0
    %868 = vmatpush.bf16.msra.mxu0 %v800
    %869 = vmatpush.bf16.msra.mxu0 %v799
    %870 = vmatmul.bf16.gmra.mxu0 %v845
    %v871 = vpop.f32.mrf.mxu0
    %v872 = vadd.f32 0.0, %v871
    %v873 = vpop.f32.mrf.mxu0
    %v874 = vadd.f32 0.0, %v873
    %875 = vmatmul.bf16.gmra.mxu0 %v848
    %v876 = vpop.f32.mrf.mxu0
    %v877 = vadd.f32 0.0, %v876
    %v878 = vpop.f32.mrf.mxu0
    %v879 = vadd.f32 0.0, %v878
    %880 = vmatmul.bf16.gmra.mxu0 %v851
    %v881 = vpop.f32.mrf.mxu0
    %v882 = vadd.f32 0.0, %v881
    %v883 = vpop.f32.mrf.mxu0
    %v884 = vadd.f32 0.0, %v883
    %885 = vmatmul.bf16.gmra.mxu0 %v854
    %v886 = vpop.f32.mrf.mxu0
    %v887 = vadd.f32 0.0, %v886
    %v888 = vpop.f32.mrf.mxu0
    %v889 = vadd.f32 0.0, %v888
    %890 = vmatmul.bf16.gmra.mxu0 %v857
    %v891 = vpop.f32.mrf.mxu0
    %v892 = vadd.f32 0.0, %v891
    %v893 = vpop.f32.mrf.mxu0
    %v894 = vadd.f32 0.0, %v893
    %895 = vmatmul.bf16.gmra.mxu0 %v860
    %v896 = vpop.f32.mrf.mxu0
    %v897 = vadd.f32 0.0, %v896
    %v898 = vpop.f32.mrf.mxu0
    %v899 = vadd.f32 0.0, %v898
    %900 = vdwg.mxu0
    %v901 = vpack.c.bf16 %v872, %v872
    %v902 = vpack.c.bf16 %v874, %v874
    %v903 = vpack.c.bf16 %v877, %v877
    %v904 = vpack.c.bf16 %v879, %v879
    %v905 = vpack.c.bf16 %v882, %v882
    %v906 = vpack.c.bf16 %v884, %v884
    %v907 = vpack.c.bf16 %v887, %v887
    %v908 = vpack.c.bf16 %v889, %v889
    %v909 = vpack.c.bf16 %v892, %v892
    %v910 = vpack.c.bf16 %v894, %v894
    %v911 = vpack.c.bf16 %v897, %v897
    %v912 = vpack.c.bf16 %v899, %v899
    %v913 = vld [vmem:[%s6 + $0x60] ss:$0 sm:$0xff]
    %v914 = vld [vmem:[%s2 + $0x270] sm:$0xf]
    %v915 = vld [vmem:[%s2 + $0x274] sm:$0xf]
    %v916 = vld [vmem:[%s2 + $0x278] sm:$0xf]
    %v917 = vld [vmem:[%s2 + $0x27c] sm:$0xf]
    %v918 = vld [vmem:[%s2 + $0x280] sm:$0xf]
    %v919 = vld [vmem:[%s2 + $0x284] sm:$0xf]
    %v920 = vld [vmem:[%s2 + $0x288] sm:$0xf]
    %v921 = vld [vmem:[%s2 + $0x28c] sm:$0xf]
    %v922 = vld [vmem:[%s2 + $0x290] sm:$0xf]
    %v923 = vld [vmem:[%s2 + $0x294] sm:$0xf]
    %v924 = vld [vmem:[%s2 + $0x298] sm:$0xf]
    %v925 = vld [vmem:[%s2 + $0x29c] sm:$0xf]
    %v930 = vunpack.c.l.b16 %v901
    %v931 = vunpack.c.l.b16 %v902
    %v932 = vunpack.c.l.b16 %v903
    %v933 = vunpack.c.l.b16 %v904
    %v934 = vpack.c.b16 %v931, %v930
    %v935 = vpack.c.b16 %v933, %v932
    %v948 = vunpack.c.l.b16 %v914
    %v949 = vunpack.c.l.b16 %v915
    %v950 = vunpack.c.l.b16 %v916
    %v951 = vunpack.c.l.b16 %v917
    %v952 = vunpack.c.l.b16 %v918
    %v953 = vunpack.c.l.b16 %v919
    %v954 = vunpack.c.l.b16 %v920
    %v955 = vunpack.c.l.b16 %v921
    %v956 = vunpack.c.l.b16 %v922
    %v957 = vunpack.c.l.b16 %v923
    %v958 = vunpack.c.l.b16 %v924
    %v959 = vunpack.c.l.b16 %v925
    %v960 = vpack.c.b16 %v949, %v948
    %v961 = vpack.c.b16 %v951, %v950
    %v962 = vpack.c.b16 %v953, %v952
    %v963 = vpack.c.b16 %v955, %v954
    %v964 = vpack.c.b16 %v957, %v956
    %v965 = vpack.c.b16 %v959, %v958
    %v973 = vsel %vm769, %v934, 0
    %v976 = vsel %vm769, %v935, 0
    %978 = vmatpush.bf16.msra.mxu0 0
    %979 = vmatpush.bf16.msra.mxu0 0
    %980 = vmatpush.bf16.msra.mxu0 %v965
    %981 = vmatpush.bf16.msra.mxu0 %v964
    %982 = vmatpush.bf16.msra.mxu0 %v963
    %983 = vmatpush.bf16.msra.mxu0 %v962
    %984 = vmatpush.bf16.msra.mxu0 %v961
    %985 = vmatpush.bf16.msra.mxu0 %v960
    %986 = vmatmul.bf16.gmra.mxu0 %v973
    %v987 = vpop.f32.mrf.mxu0
    %v988 = vadd.f32 0.0, %v987
    %v989 = vpop.f32.mrf.mxu0
    %v990 = vadd.f32 0.0, %v989
    %991 = vmatmul.bf16.gmra.mxu0 %v976
    %v992 = vpop.f32.mrf.mxu0
    %v993 = vadd.f32 0.0, %v992
    %v994 = vpop.f32.mrf.mxu0
    %v995 = vadd.f32 0.0, %v994
    %996 = vdwg.mxu0
    %v997 = vadd.f32 %v913, %v988
    %v998 = vadd.f32 %v913, %v990
    %v999 = vadd.f32 %v913, %v993
    %v1000 = vadd.f32 %v913, %v995
    %v1001 = vld [vmem:[%s2 + $0x2a0] sm:$0xf]
    %v1002 = vld [vmem:[%s2 + $0x2a4] sm:$0xf]
    %v1003 = vld [vmem:[%s2 + $0x2a8] sm:$0xf]
    %v1004 = vld [vmem:[%s2 + $0x2ac] sm:$0xf]
    %v1005 = vld [vmem:[%s2 + $0x2b0] sm:$0xf]
    %v1006 = vld [vmem:[%s2 + $0x2b4] sm:$0xf]
    %v1007 = vld [vmem:[%s2 + $0x2b8] sm:$0xf]
    %v1008 = vld [vmem:[%s2 + $0x2bc] sm:$0xf]
    %v1009 = vld [vmem:[%s2 + $0x2c0] sm:$0xf]
    %v1010 = vld [vmem:[%s2 + $0x2c4] sm:$0xf]
    %v1011 = vld [vmem:[%s2 + $0x2c8] sm:$0xf]
    %v1012 = vld [vmem:[%s2 + $0x2cc] sm:$0xf]
    %v1017 = vunpack.c.l.b16 %v905
    %v1018 = vunpack.c.l.b16 %v906
    %v1019 = vunpack.c.l.b16 %v907
    %v1020 = vunpack.c.l.b16 %v908
    %v1021 = vpack.c.b16 %v1018, %v1017
    %v1022 = vpack.c.b16 %v1020, %v1019
    %v1035 = vunpack.c.l.b16 %v1001
    %v1036 = vunpack.c.l.b16 %v1002
    %v1037 = vunpack.c.l.b16 %v1003
    %v1038 = vunpack.c.l.b16 %v1004
    %v1039 = vunpack.c.l.b16 %v1005
    %v1040 = vunpack.c.l.b16 %v1006
    %v1041 = vunpack.c.l.b16 %v1007
    %v1042 = vunpack.c.l.b16 %v1008
    %v1043 = vunpack.c.l.b16 %v1009
    %v1044 = vunpack.c.l.b16 %v1010
    %v1045 = vunpack.c.l.b16 %v1011
    %v1046 = vunpack.c.l.b16 %v1012
    %v1047 = vpack.c.b16 %v1036, %v1035
    %v1048 = vpack.c.b16 %v1038, %v1037
    %v1049 = vpack.c.b16 %v1040, %v1039
    %v1050 = vpack.c.b16 %v1042, %v1041
    %v1051 = vpack.c.b16 %v1044, %v1043
    %v1052 = vpack.c.b16 %v1046, %v1045
    %v1060 = vsel %vm769, %v1021, 0
    %v1063 = vsel %vm769, %v1022, 0
    %1065 = vmatpush.bf16.msra.mxu0 0
    %1066 = vmatpush.bf16.msra.mxu0 0
    %1067 = vmatpush.bf16.msra.mxu0 %v1052
    %1068 = vmatpush.bf16.msra.mxu0 %v1051
    %1069 = vmatpush.bf16.msra.mxu0 %v1050
    %1070 = vmatpush.bf16.msra.mxu0 %v1049
    %1071 = vmatpush.bf16.msra.mxu0 %v1048
    %1072 = vmatpush.bf16.msra.mxu0 %v1047
    %1073 = vmatmul.bf16.gmra.mxu0 %v1060
    %v1074 = vpop.f32.mrf.mxu0
    %v1075 = vadd.f32 0.0, %v1074
    %v1076 = vpop.f32.mrf.mxu0
    %v1077 = vadd.f32 0.0, %v1076
    %1078 = vmatmul.bf16.gmra.mxu0 %v1063
    %v1079 = vpop.f32.mrf.mxu0
    %v1080 = vadd.f32 0.0, %v1079
    %v1081 = vpop.f32.mrf.mxu0
    %v1082 = vadd.f32 0.0, %v1081
    %1083 = vdwg.mxu0
    %v1084 = vadd.f32 %v997, %v1075
    %v1085 = vadd.f32 %v998, %v1077
    %v1086 = vadd.f32 %v999, %v1080
    %v1087 = vadd.f32 %v1000, %v1082
    %v1088 = vld [vmem:[%s2 + $0x2d0] sm:$0xf]
    %v1089 = vld [vmem:[%s2 + $0x2d4] sm:$0xf]
    %v1090 = vld [vmem:[%s2 + $0x2d8] sm:$0xf]
    %v1091 = vld [vmem:[%s2 + $0x2dc] sm:$0xf]
    %v1092 = vld [vmem:[%s2 + $0x2e0] sm:$0xf]
    %v1093 = vld [vmem:[%s2 + $0x2e4] sm:$0xf]
    %v1094 = vld [vmem:[%s2 + $0x2e8] sm:$0xf]
    %v1095 = vld [vmem:[%s2 + $0x2ec] sm:$0xf]
    %v1096 = vld [vmem:[%s2 + $0x2f0] sm:$0xf]
    %v1097 = vld [vmem:[%s2 + $0x2f4] sm:$0xf]
    %v1098 = vld [vmem:[%s2 + $0x2f8] sm:$0xf]
    %v1099 = vld [vmem:[%s2 + $0x2fc] sm:$0xf]
    %v1104 = vunpack.c.l.b16 %v909
    %v1105 = vunpack.c.l.b16 %v910
    %v1106 = vunpack.c.l.b16 %v911
    %v1107 = vunpack.c.l.b16 %v912
    %v1108 = vpack.c.b16 %v1105, %v1104
    %v1109 = vpack.c.b16 %v1107, %v1106
    %v1122 = vunpack.c.l.b16 %v1088
    %v1123 = vunpack.c.l.b16 %v1089
    %v1124 = vunpack.c.l.b16 %v1090
    %v1125 = vunpack.c.l.b16 %v1091
    %v1126 = vunpack.c.l.b16 %v1092
    %v1127 = vunpack.c.l.b16 %v1093
    %v1128 = vunpack.c.l.b16 %v1094
    %v1129 = vunpack.c.l.b16 %v1095
    %v1130 = vunpack.c.l.b16 %v1096
    %v1131 = vunpack.c.l.b16 %v1097
    %v1132 = vunpack.c.l.b16 %v1098
    %v1133 = vunpack.c.l.b16 %v1099
    %v1134 = vpack.c.b16 %v1123, %v1122
    %v1135 = vpack.c.b16 %v1125, %v1124
    %v1136 = vpack.c.b16 %v1127, %v1126
    %v1137 = vpack.c.b16 %v1129, %v1128
    %v1138 = vpack.c.b16 %v1131, %v1130
    %v1139 = vpack.c.b16 %v1133, %v1132
    %v1147 = vsel %vm769, %v1108, 0
    %v1150 = vsel %vm769, %v1109, 0
    %1152 = vmatpush.bf16.msra.mxu0 0
    %1153 = vmatpush.bf16.msra.mxu0 0
    %1154 = vmatpush.bf16.msra.mxu0 %v1139
    %1155 = vmatpush.bf16.msra.mxu0 %v1138
    %1156 = vmatpush.bf16.msra.mxu0 %v1137
    %1157 = vmatpush.bf16.msra.mxu0 %v1136
    %1158 = vmatpush.bf16.msra.mxu0 %v1135
    %1159 = vmatpush.bf16.msra.mxu0 %v1134
    %1160 = vmatmul.bf16.gmra.mxu0 %v1147
    %v1161 = vpop.f32.mrf.mxu0
    %v1162 = vadd.f32 0.0, %v1161
    %v1163 = vpop.f32.mrf.mxu0
    %v1164 = vadd.f32 0.0, %v1163
    %1165 = vmatmul.bf16.gmra.mxu0 %v1150
    %v1166 = vpop.f32.mrf.mxu0
    %v1167 = vadd.f32 0.0, %v1166
    %v1168 = vpop.f32.mrf.mxu0
    %v1169 = vadd.f32 0.0, %v1168
    %1170 = vdwg.mxu0
    %v1171 = vadd.f32 %v1084, %v1162
    %v1172 = vadd.f32 %v1085, %v1164
    %v1173 = vadd.f32 %v1086, %v1167
    %v1174 = vadd.f32 %v1087, %v1169
    %v1175 = vmax.f32 %v1171, 0.0
    %v1176 = vmax.f32 %v1172, 0.0
    %v1177 = vmax.f32 %v1173, 0.0
    %v1178 = vmax.f32 %v1174, 0.0
    %v1179 = vpack.c.bf16 %v1175, %v1175
    %v1180 = vpack.c.bf16 %v1176, %v1176
    %v1181 = vpack.c.bf16 %v1177, %v1177
    %v1182 = vpack.c.bf16 %v1178, %v1178
    %v1183 = vld [vmem:[%s4 + $0x60] sm:$0xff]
    %v1184 = vld [vmem:[%s4 + $0x68] sm:$0xff]
    %v1185 = vld [vmem:[%s4 + $0x70] sm:$0xff]
    %v1186 = vld [vmem:[%s4 + $0x78] sm:$0xff]
    %v1187 = vld [vmem:[%s4 + $0x80] sm:$0xff]
    %v1188 = vld [vmem:[%s4 + $0x88] sm:$0xff]
    %v1189 = vld [vmem:[%s4 + $0x90] sm:$0xff]
    %v1190 = vld [vmem:[%s4 + $0x98] sm:$0xff]
    %v1191 = vld [vmem:[%s4 + $0xa0] sm:$0xff]
    %v1192 = vld [vmem:[%s4 + $0xa8] sm:$0xff]
    %v1193 = vld [vmem:[%s4 + $0xb0] sm:$0xff]
    %v1194 = vld [vmem:[%s4 + $0xb8] sm:$0xff]
    %s1195 = scalar_lea.vmem %s6, 112
    %v1196 = vld [vmem:[%s1195] ss:$8 sm:$0x3]
    %v1198 = vperm.slane %v1196, 0
    %v1199 = vperm.slane %v1196, 1
    %v1204 = vunpack.c.l.b16 %v1179
    %v1205 = vunpack.c.l.b16 %v1180
    %v1206 = vpack.c.b16 %v1205, %v1204
    %v1219 = vunpack.c.l.b16 %v1183
    %v1220 = vunpack.c.h.b16 %v1183
    %v1221 = vunpack.c.l.b16 %v1184
    %v1222 = vunpack.c.h.b16 %v1184
    %v1223 = vunpack.c.l.b16 %v1185
    %v1224 = vunpack.c.h.b16 %v1185
    %v1225 = vunpack.c.l.b16 %v1186
    %v1226 = vunpack.c.h.b16 %v1186
    %v1227 = vunpack.c.l.b16 %v1187
    %v1228 = vunpack.c.h.b16 %v1187
    %v1229 = vunpack.c.l.b16 %v1188
    %v1230 = vunpack.c.h.b16 %v1188
    %v1231 = vunpack.c.l.b16 %v1189
    %v1232 = vunpack.c.h.b16 %v1189
    %v1233 = vunpack.c.l.b16 %v1190
    %v1234 = vunpack.c.h.b16 %v1190
    %v1235 = vunpack.c.l.b16 %v1191
    %v1236 = vunpack.c.h.b16 %v1191
    %v1237 = vunpack.c.l.b16 %v1192
    %v1238 = vunpack.c.h.b16 %v1192
    %v1239 = vunpack.c.l.b16 %v1193
    %v1240 = vunpack.c.h.b16 %v1193
    %v1241 = vunpack.c.l.b16 %v1194
    %v1242 = vunpack.c.h.b16 %v1194
    %v1243 = vpack.c.b16 %v1221, %v1219
    %v1244 = vpack.c.b16 %v1222, %v1220
    %v1245 = vpack.c.b16 %v1225, %v1223
    %v1246 = vpack.c.b16 %v1226, %v1224
    %v1247 = vpack.c.b16 %v1229, %v1227
    %v1248 = vpack.c.b16 %v1230, %v1228
    %v1249 = vpack.c.b16 %v1233, %v1231
    %v1250 = vpack.c.b16 %v1234, %v1232
    %v1251 = vpack.c.b16 %v1237, %v1235
    %v1252 = vpack.c.b16 %v1238, %v1236
    %v1253 = vpack.c.b16 %v1241, %v1239
    %v1254 = vpack.c.b16 %v1242, %v1240
    %v1268 = vsel %vm769, %v1206, 0
    %1270 = vmatpush.bf16.msra.mxu0 0
    %1271 = vmatpush.bf16.msra.mxu0 0
    %1272 = vmatpush.bf16.msra.mxu0 %v1253
    %1273 = vmatpush.bf16.msra.mxu0 %v1251
    %1274 = vmatpush.bf16.msra.mxu0 %v1249
    %1275 = vmatpush.bf16.msra.mxu0 %v1247
    %1276 = vmatpush.bf16.msra.mxu0 %v1245
    %1277 = vmatpush.bf16.msra.mxu0 %v1243
    %1278 = vmatmul.bf16.gmra.mxu0 %v1268
    %v1279 = vpop.f32.mrf.mxu0
    %v1280 = vadd.f32 %v1198, %v1279
    %v1281 = vpop.f32.mrf.mxu0
    %v1282 = vadd.f32 %v1198, %v1281
    %1283 = vdwg.mxu0
    %1284 = vmatpush.bf16.msra.mxu0 0
    %1285 = vmatpush.bf16.msra.mxu0 0
    %1286 = vmatpush.bf16.msra.mxu0 %v1254
    %1287 = vmatpush.bf16.msra.mxu0 %v1252
    %1288 = vmatpush.bf16.msra.mxu0 %v1250
    %1289 = vmatpush.bf16.msra.mxu0 %v1248
    %1290 = vmatpush.bf16.msra.mxu0 %v1246
    %1291 = vmatpush.bf16.msra.mxu0 %v1244
    %1292 = vmatmul.bf16.gmra.mxu0 %v1268
    %v1293 = vpop.f32.mrf.mxu0
    %v1294 = vadd.f32 %v1199, %v1293
    %v1295 = vpop.f32.mrf.mxu0
    %v1296 = vadd.f32 %v1199, %v1295
    %1297 = vdwg.mxu0
    %v1298 = vld [vmem:[%s1 + $0x60] sm:$0xff]
    %v1299 = vld [vmem:[%s1 + $0x68] sm:$0xff]
    %v1300 = vld [vmem:[%s1 + $0x70] sm:$0xff]
    %v1301 = vld [vmem:[%s1 + $0x78] sm:$0xff]
    %v1302 = vld [vmem:[%s1 + $0x80] sm:$0xff]
    %v1303 = vld [vmem:[%s1 + $0x88] sm:$0xff]
    %v1304 = vld [vmem:[%s1 + $0x90] sm:$0xff]
    %v1305 = vld [vmem:[%s1 + $0x98] sm:$0xff]
    %v1306 = vld [vmem:[%s1 + $0xa0] sm:$0xff]
    %v1307 = vld [vmem:[%s1 + $0xa8] sm:$0xff]
    %v1308 = vld [vmem:[%s1 + $0xb0] sm:$0xff]
    %v1309 = vld [vmem:[%s1 + $0xb8] sm:$0xff]
    %s1310 = scalar_lea.vmem %s6, 128
    %v1311 = vld [vmem:[%s1310] ss:$8 sm:$0x3]
    %v1313 = vperm.slane %v1311, 0
    %v1314 = vperm.slane %v1311, 1
    %v1319 = vunpack.c.l.b16 %v1181
    %v1320 = vunpack.c.l.b16 %v1182
    %v1321 = vpack.c.b16 %v1320, %v1319
    %v1334 = vunpack.c.l.b16 %v1298
    %v1335 = vunpack.c.h.b16 %v1298
    %v1336 = vunpack.c.l.b16 %v1299
    %v1337 = vunpack.c.h.b16 %v1299
    %v1338 = vunpack.c.l.b16 %v1300
    %v1339 = vunpack.c.h.b16 %v1300
    %v1340 = vunpack.c.l.b16 %v1301
    %v1341 = vunpack.c.h.b16 %v1301
    %v1342 = vunpack.c.l.b16 %v1302
    %v1343 = vunpack.c.h.b16 %v1302
    %v1344 = vunpack.c.l.b16 %v1303
    %v1345 = vunpack.c.h.b16 %v1303
    %v1346 = vunpack.c.l.b16 %v1304
    %v1347 = vunpack.c.h.b16 %v1304
    %v1348 = vunpack.c.l.b16 %v1305
    %v1349 = vunpack.c.h.b16 %v1305
    %v1350 = vunpack.c.l.b16 %v1306
    %v1351 = vunpack.c.h.b16 %v1306
    %v1352 = vunpack.c.l.b16 %v1307
    %v1353 = vunpack.c.h.b16 %v1307
    %v1354 = vunpack.c.l.b16 %v1308
    %v1355 = vunpack.c.h.b16 %v1308
    %v1356 = vunpack.c.l.b16 %v1309
    %v1357 = vunpack.c.h.b16 %v1309
    %v1358 = vpack.c.b16 %v1336, %v1334
    %v1359 = vpack.c.b16 %v1337, %v1335
    %v1360 = vpack.c.b16 %v1340, %v1338
    %v1361 = vpack.c.b16 %v1341, %v1339
    %v1362 = vpack.c.b16 %v1344, %v1342
    %v1363 = vpack.c.b16 %v1345, %v1343
    %v1364 = vpack.c.b16 %v1348, %v1346
    %v1365 = vpack.c.b16 %v1349, %v1347
    %v1366 = vpack.c.b16 %v1352, %v1350
    %v1367 = vpack.c.b16 %v1353, %v1351
    %v1368 = vpack.c.b16 %v1356, %v1354
    %v1369 = vpack.c.b16 %v1357, %v1355
    %v1383 = vsel %vm769, %v1321, 0
    %1385 = vmatpush.bf16.msra.mxu0 0
    %1386 = vmatpush.bf16.msra.mxu0 0
    %1387 = vmatpush.bf16.msra.mxu0 %v1368
    %1388 = vmatpush.bf16.msra.mxu0 %v1366
    %1389 = vmatpush.bf16.msra.mxu0 %v1364
    %1390 = vmatpush.bf16.msra.mxu0 %v1362
    %1391 = vmatpush.bf16.msra.mxu0 %v1360
    %1392 = vmatpush.bf16.msra.mxu0 %v1358
    %1393 = vmatmul.bf16.gmra.mxu0 %v1383
    %v1394 = vpop.f32.mrf.mxu0
    %v1395 = vadd.f32 %v1313, %v1394
    %v1396 = vpop.f32.mrf.mxu0
    %v1397 = vadd.f32 %v1313, %v1396
    %1398 = vdwg.mxu0
    %1399 = vmatpush.bf16.msra.mxu0 0
    %1400 = vmatpush.bf16.msra.mxu0 0
    %1401 = vmatpush.bf16.msra.mxu0 %v1369
    %1402 = vmatpush.bf16.msra.mxu0 %v1367
    %1403 = vmatpush.bf16.msra.mxu0 %v1365
    %1404 = vmatpush.bf16.msra.mxu0 %v1363
    %1405 = vmatpush.bf16.msra.mxu0 %v1361
    %1406 = vmatpush.bf16.msra.mxu0 %v1359
    %1407 = vmatmul.bf16.gmra.mxu0 %v1383
    %v1408 = vpop.f32.mrf.mxu0
    %v1409 = vadd.f32 %v1314, %v1408
    %v1410 = vpop.f32.mrf.mxu0
    %v1411 = vadd.f32 %v1314, %v1410
    %1412 = vdwg.mxu0
    %v1413 = vmax.f32 %v1280, 0.0
    %v1414 = vmax.f32 %v1294, 0.0
    %v1415 = vmax.f32 %v1282, 0.0
    %v1416 = vmax.f32 %v1296, 0.0
    %v1417 = vmax.f32 %v1395, 0.0
    %v1418 = vmax.f32 %v1409, 0.0
    %v1419 = vmax.f32 %v1397, 0.0
    %v1420 = vmax.f32 %v1411, 0.0
    %v1421 = vadd.f32 %v1413, %v1417
    %v1422 = vadd.f32 %v1414, %v1418
    %v1423 = vadd.f32 %v1415, %v1419
    %v1424 = vadd.f32 %v1416, %v1420
    %v1425 = vpack.c.bf16 %v1423, %v1421
    %v1426 = vpack.c.bf16 %v1424, %v1422
    %v1427 = vld [vmem:[%s1 + $0x120] sm:$0xf]
    %v1428 = vld [vmem:[%s1 + $0x128] sm:$0xf]
    %v1429 = vld [vmem:[%s1 + $0x130] sm:$0xf]
    %v1433 = vunpack.c.l.b16 %v1427
    %v1434 = vunpack.c.l.b16 %v1428
    %v1435 = vunpack.c.l.b16 %v1429
    %v1436 = vpack.c.b16 %v1434, %v1433
    %v1437 = vpack.c.b16 %v1435, %v1435
    %vm1438 = vcmask 130048
    %v1440 = vsel %vm1438, %v1436, 0
    %v1443 = vsel %vm1438, %v1437, 0
    %1445 = vmatpush.bf16.msra.mxu0 0
    %1446 = vmatpush.bf16.msra.mxu0 0
    %1447 = vmatpush.bf16.msra.mxu0 0
    %1448 = vmatpush.bf16.msra.mxu0 0
    %1449 = vmatpush.bf16.msra.mxu0 0
    %1450 = vmatpush.bf16.msra.mxu0 0
    %1451 = vmatpush.bf16.msra.mxu0 0
    %1452 = vmatpush.bf16.msra.mxu0 %v1425
    %1453 = vmatmul.bf16.gmra.mxu0 %v1440
    %v1454 = vpop.f32.mrf.mxu0
    %v1455 = vadd.f32 0.0, %v1454
    %v1456 = vpop.f32.mrf.mxu0
    %v1457 = vadd.f32 0.0, %v1456
    %1458 = vmatmul.bf16.gmra.mxu0 %v1443
    %v1459 = vpop.f32.mrf.mxu0
    %v1460 = vadd.f32 0.0, %v1459
    %v1461 = vpop.f32.mrf.mxu0
    %1462 = vdwg.mxu0
    %1463 = vmatpush.bf16.msra.mxu0 0
    %1464 = vmatpush.bf16.msra.mxu0 0
    %1465 = vmatpush.bf16.msra.mxu0 0
    %1466 = vmatpush.bf16.msra.mxu0 0
    %1467 = vmatpush.bf16.msra.mxu0 0
    %1468 = vmatpush.bf16.msra.mxu0 0
    %1469 = vmatpush.bf16.msra.mxu0 0
    %1470 = vmatpush.bf16.msra.mxu0 %v1426
    %1471 = vmatmul.bf16.gmra.mxu0 %v1440
    %v1472 = vpop.f32.mrf.mxu0
    %v1473 = vadd.f32 0.0, %v1472
    %v1474 = vpop.f32.mrf.mxu0
    %v1475 = vadd.f32 0.0, %v1474
    %1476 = vmatmul.bf16.gmra.mxu0 %v1443
    %v1477 = vpop.f32.mrf.mxu0
    %v1478 = vadd.f32 0.0, %v1477
    %v1479 = vpop.f32.mrf.mxu0
    %1480 = vdwg.mxu0
    %v1481 = vpack.c.bf16 %v1473, %v1455
    %v1482 = vpack.c.bf16 %v1475, %v1457
    %v1483 = vpack.c.bf16 %v1478, %v1460
    %v1484 = vld [vmem:[%s6 + $0x90] ss:$0 sm:$0xff]
    %v1485 = vld [vmem:[%s2 + $0x300] sm:$0xf]
    %v1486 = vld [vmem:[%s2 + $0x304] sm:$0xf]
    %v1487 = vld [vmem:[%s2 + $0x308] sm:$0xf]
    %v1488 = vld [vmem:[%s2 + $0x30c] sm:$0xf]
    %v1489 = vld [vmem:[%s2 + $0x310] sm:$0xf]
    %v1490 = vld [vmem:[%s2 + $0x314] sm:$0xf]
    %v1491 = vld [vmem:[%s2 + $0x318] sm:$0xf]
    %v1492 = vld [vmem:[%s2 + $0x31c] sm:$0xf]
    %v1493 = vld [vmem:[%s2 + $0x320] sm:$0xf]
    %v1494 = vld [vmem:[%s2 + $0x324] sm:$0xf]
    %v1495 = vld [vmem:[%s2 + $0x328] sm:$0xf]
    %v1496 = vld [vmem:[%s2 + $0x32c] sm:$0xf]
    %v1497 = vld [vmem:[%s2 + $0x330] sm:$0xf]
    %v1498 = vld [vmem:[%s2 + $0x334] sm:$0xf]
    %v1499 = vld [vmem:[%s2 + $0x338] sm:$0xf]
    %v1500 = vld [vmem:[%s2 + $0x33c] sm:$0xf]
    %v1501 = vld [vmem:[%s2 + $0x340] sm:$0xf]
    %v1502 = vld [vmem:[%s2 + $0x344] sm:$0xf]
    %v1503 = vld [vmem:[%s2 + $0x348] sm:$0xf]
    %v1504 = vld [vmem:[%s2 + $0x34c] sm:$0xf]
    %v1505 = vld [vmem:[%s2 + $0x350] sm:$0xf]
    %v1506 = vld [vmem:[%s2 + $0x354] sm:$0xf]
    %v1507 = vld [vmem:[%s2 + $0x358] sm:$0xf]
    %v1508 = vld [vmem:[%s2 + $0x35c] sm:$0xf]
    %v1510 = vunpack.c.l.b16 %v1481
    %v1511 = vunpack.c.h.b16 %v1481
    %v1512 = vpack.c.b16 %v1510, %v1510
    %v1513 = vpack.c.b16 %v1511, %v1511
    %v1539 = vunpack.c.l.b16 %v1485
    %v1540 = vunpack.c.l.b16 %v1486
    %v1541 = vunpack.c.l.b16 %v1487
    %v1542 = vunpack.c.l.b16 %v1488
    %v1543 = vunpack.c.l.b16 %v1489
    %v1544 = vunpack.c.l.b16 %v1490
    %v1545 = vunpack.c.l.b16 %v1491
    %v1546 = vunpack.c.l.b16 %v1492
    %v1547 = vunpack.c.l.b16 %v1493
    %v1548 = vunpack.c.l.b16 %v1494
    %v1549 = vunpack.c.l.b16 %v1495
    %v1550 = vunpack.c.l.b16 %v1496
    %v1551 = vunpack.c.l.b16 %v1497
    %v1552 = vunpack.c.l.b16 %v1498
    %v1553 = vunpack.c.l.b16 %v1499
    %v1554 = vunpack.c.l.b16 %v1500
    %v1555 = vunpack.c.l.b16 %v1501
    %v1556 = vunpack.c.l.b16 %v1502
    %v1557 = vunpack.c.l.b16 %v1503
    %v1558 = vunpack.c.l.b16 %v1504
    %v1559 = vunpack.c.l.b16 %v1505
    %v1560 = vunpack.c.l.b16 %v1506
    %v1561 = vunpack.c.l.b16 %v1507
    %v1562 = vunpack.c.l.b16 %v1508
    %v1563 = vpack.c.b16 %v1540, %v1539
    %v1564 = vpack.c.b16 %v1542, %v1541
    %v1565 = vpack.c.b16 %v1544, %v1543
    %v1566 = vpack.c.b16 %v1546, %v1545
    %v1567 = vpack.c.b16 %v1548, %v1547
    %v1568 = vpack.c.b16 %v1550, %v1549
    %v1569 = vpack.c.b16 %v1552, %v1551
    %v1570 = vpack.c.b16 %v1554, %v1553
    %v1571 = vpack.c.b16 %v1556, %v1555
    %v1572 = vpack.c.b16 %v1558, %v1557
    %v1573 = vpack.c.b16 %v1560, %v1559
    %v1574 = vpack.c.b16 %v1562, %v1561
    %v1588 = vsel %vm118, %v1513, 0
    %1590 = vmatpush.bf16.msra.mxu0 %v1570
    %1591 = vmatpush.bf16.msra.mxu0 %v1569
    %1592 = vmatpush.bf16.msra.mxu0 %v1568
    %1593 = vmatpush.bf16.msra.mxu0 %v1567
    %1594 = vmatpush.bf16.msra.mxu0 %v1566
    %1595 = vmatpush.bf16.msra.mxu0 %v1565
    %1596 = vmatpush.bf16.msra.mxu0 %v1564
    %1597 = vmatpush.bf16.msra.mxu0 %v1563
    %1598 = vmatmul.bf16.gmra.mxu0 %v1512
    %v1599 = vpop.f32.mrf.mxu0
    %v1600 = vadd.f32 0.0, %v1599
    %v1601 = vpop.f32.mrf.mxu0
    %1602 = vdwg.mxu0
    %1603 = vmatpush.bf16.msra.mxu0 0
    %1604 = vmatpush.bf16.msra.mxu0 0
    %1605 = vmatpush.bf16.msra.mxu0 0
    %1606 = vmatpush.bf16.msra.mxu0 0
    %1607 = vmatpush.bf16.msra.mxu0 %v1574
    %1608 = vmatpush.bf16.msra.mxu0 %v1573
    %1609 = vmatpush.bf16.msra.mxu0 %v1572
    %1610 = vmatpush.bf16.msra.mxu0 %v1571
    %1611 = vmatmul.bf16.gmra.mxu0 %v1588
    %v1612 = vpop.f32.mrf.mxu0
    %v1613 = vadd.f32 %v1600, %v1612
    %v1614 = vpop.f32.mrf.mxu0
    %1615 = vdwg.mxu0
    %v1616 = vadd.f32 %v1484, %v1613
    %v1617 = vld [vmem:[%s2 + $0x360] sm:$0xf]
    %v1618 = vld [vmem:[%s2 + $0x364] sm:$0xf]
    %v1619 = vld [vmem:[%s2 + $0x368] sm:$0xf]
    %v1620 = vld [vmem:[%s2 + $0x36c] sm:$0xf]
    %v1621 = vld [vmem:[%s2 + $0x370] sm:$0xf]
    %v1622 = vld [vmem:[%s2 + $0x374] sm:$0xf]
    %v1623 = vld [vmem:[%s2 + $0x378] sm:$0xf]
    %v1624 = vld [vmem:[%s2 + $0x37c] sm:$0xf]
    %v1625 = vld [vmem:[%s2 + $0x380] sm:$0xf]
    %v1626 = vld [vmem:[%s2 + $0x384] sm:$0xf]
    %v1627 = vld [vmem:[%s2 + $0x388] sm:$0xf]
    %v1628 = vld [vmem:[%s2 + $0x38c] sm:$0xf]
    %v1629 = vld [vmem:[%s2 + $0x390] sm:$0xf]
    %v1630 = vld [vmem:[%s2 + $0x394] sm:$0xf]
    %v1631 = vld [vmem:[%s2 + $0x398] sm:$0xf]
    %v1632 = vld [vmem:[%s2 + $0x39c] sm:$0xf]
    %v1633 = vld [vmem:[%s2 + $0x3a0] sm:$0xf]
    %v1634 = vld [vmem:[%s2 + $0x3a4] sm:$0xf]
    %v1635 = vld [vmem:[%s2 + $0x3a8] sm:$0xf]
    %v1636 = vld [vmem:[%s2 + $0x3ac] sm:$0xf]
    %v1637 = vld [vmem:[%s2 + $0x3b0] sm:$0xf]
    %v1638 = vld [vmem:[%s2 + $0x3b4] sm:$0xf]
    %v1639 = vld [vmem:[%s2 + $0x3b8] sm:$0xf]
    %v1640 = vld [vmem:[%s2 + $0x3bc] sm:$0xf]
    %v1642 = vunpack.c.l.b16 %v1482
    %v1643 = vunpack.c.h.b16 %v1482
    %v1644 = vpack.c.b16 %v1642, %v1642
    %v1645 = vpack.c.b16 %v1643, %v1643
    %v1671 = vunpack.c.l.b16 %v1617
    %v1672 = vunpack.c.l.b16 %v1618
    %v1673 = vunpack.c.l.b16 %v1619
    %v1674 = vunpack.c.l.b16 %v1620
    %v1675 = vunpack.c.l.b16 %v1621
    %v1676 = vunpack.c.l.b16 %v1622
    %v1677 = vunpack.c.l.b16 %v1623
    %v1678 = vunpack.c.l.b16 %v1624
    %v1679 = vunpack.c.l.b16 %v1625
    %v1680 = vunpack.c.l.b16 %v1626
    %v1681 = vunpack.c.l.b16 %v1627
    %v1682 = vunpack.c.l.b16 %v1628
    %v1683 = vunpack.c.l.b16 %v1629
    %v1684 = vunpack.c.l.b16 %v1630
    %v1685 = vunpack.c.l.b16 %v1631
    %v1686 = vunpack.c.l.b16 %v1632
    %v1687 = vunpack.c.l.b16 %v1633
    %v1688 = vunpack.c.l.b16 %v1634
    %v1689 = vunpack.c.l.b16 %v1635
    %v1690 = vunpack.c.l.b16 %v1636
    %v1691 = vunpack.c.l.b16 %v1637
    %v1692 = vunpack.c.l.b16 %v1638
    %v1693 = vunpack.c.l.b16 %v1639
    %v1694 = vunpack.c.l.b16 %v1640
    %v1695 = vpack.c.b16 %v1672, %v1671
    %v1696 = vpack.c.b16 %v1674, %v1673
    %v1697 = vpack.c.b16 %v1676, %v1675
    %v1698 = vpack.c.b16 %v1678, %v1677
    %v1699 = vpack.c.b16 %v1680, %v1679
    %v1700 = vpack.c.b16 %v1682, %v1681
    %v1701 = vpack.c.b16 %v1684, %v1683
    %v1702 = vpack.c.b16 %v1686, %v1685
    %v1703 = vpack.c.b16 %v1688, %v1687
    %v1704 = vpack.c.b16 %v1690, %v1689
    %v1705 = vpack.c.b16 %v1692, %v1691
    %v1706 = vpack.c.b16 %v1694, %v1693
    %v1720 = vsel %vm118, %v1645, 0
    %1722 = vmatpush.bf16.msra.mxu0 %v1702
    %1723 = vmatpush.bf16.msra.mxu0 %v1701
    %1724 = vmatpush.bf16.msra.mxu0 %v1700
    %1725 = vmatpush.bf16.msra.mxu0 %v1699
    %1726 = vmatpush.bf16.msra.mxu0 %v1698
    %1727 = vmatpush.bf16.msra.mxu0 %v1697
    %1728 = vmatpush.bf16.msra.mxu0 %v1696
    %1729 = vmatpush.bf16.msra.mxu0 %v1695
    %1730 = vmatmul.bf16.gmra.mxu0 %v1644
    %v1731 = vpop.f32.mrf.mxu0
    %v1732 = vadd.f32 0.0, %v1731
    %v1733 = vpop.f32.mrf.mxu0
    %1734 = vdwg.mxu0
    %1735 = vmatpush.bf16.msra.mxu0 0
    %1736 = vmatpush.bf16.msra.mxu0 0
    %1737 = vmatpush.bf16.msra.mxu0 0
    %1738 = vmatpush.bf16.msra.mxu0 0
    %1739 = vmatpush.bf16.msra.mxu0 %v1706
    %1740 = vmatpush.bf16.msra.mxu0 %v1705
    %1741 = vmatpush.bf16.msra.mxu0 %v1704
    %1742 = vmatpush.bf16.msra.mxu0 %v1703
    %1743 = vmatmul.bf16.gmra.mxu0 %v1720
    %v1744 = vpop.f32.mrf.mxu0
    %v1745 = vadd.f32 %v1732, %v1744
    %v1746 = vpop.f32.mrf.mxu0
    %1747 = vdwg.mxu0
    %v1748 = vadd.f32 %v1616, %v1745
    %v1749 = vld [vmem:[%s2 + $0x3c0] sm:$0xf]
    %v1750 = vld [vmem:[%s2 + $0x3c4] sm:$0xf]
    %v1751 = vld [vmem:[%s2 + $0x3c8] sm:$0xf]
    %v1752 = vld [vmem:[%s2 + $0x3cc] sm:$0xf]
    %v1753 = vld [vmem:[%s2 + $0x3d0] sm:$0xf]
    %v1754 = vld [vmem:[%s2 + $0x3d4] sm:$0xf]
    %v1755 = vld [vmem:[%s2 + $0x3d8] sm:$0xf]
    %v1756 = vld [vmem:[%s2 + $0x3dc] sm:$0xf]
    %v1757 = vld [vmem:[%s2 + $0x3e0] sm:$0xf]
    %v1758 = vld [vmem:[%s2 + $0x3e4] sm:$0xf]
    %v1759 = vld [vmem:[%s2 + $0x3e8] sm:$0xf]
    %v1760 = vld [vmem:[%s2 + $0x3ec] sm:$0xf]
    %v1761 = vld [vmem:[%s2 + $0x3f0] sm:$0xf]
    %v1762 = vld [vmem:[%s2 + $0x3f4] sm:$0xf]
    %v1763 = vld [vmem:[%s2 + $0x3f8] sm:$0xf]
    %v1764 = vld [vmem:[%s2 + $0x3fc] sm:$0xf]
    %v1765 = vld [vmem:[%s2 + $0x400] sm:$0xf]
    %v1766 = vld [vmem:[%s2 + $0x404] sm:$0xf]
    %v1767 = vld [vmem:[%s2 + $0x408] sm:$0xf]
    %v1768 = vld [vmem:[%s2 + $0x40c] sm:$0xf]
    %v1769 = vld [vmem:[%s2 + $0x410] sm:$0xf]
    %v1770 = vld [vmem:[%s2 + $0x414] sm:$0xf]
    %v1771 = vld [vmem:[%s2 + $0x418] sm:$0xf]
    %v1772 = vld [vmem:[%s2 + $0x41c] sm:$0xf]
    %v1774 = vunpack.c.l.b16 %v1483
    %v1775 = vunpack.c.h.b16 %v1483
    %v1776 = vpack.c.b16 %v1774, %v1774
    %v1777 = vpack.c.b16 %v1775, %v1775
    %v1803 = vunpack.c.l.b16 %v1749
    %v1804 = vunpack.c.l.b16 %v1750
    %v1805 = vunpack.c.l.b16 %v1751
    %v1806 = vunpack.c.l.b16 %v1752
    %v1807 = vunpack.c.l.b16 %v1753
    %v1808 = vunpack.c.l.b16 %v1754
    %v1809 = vunpack.c.l.b16 %v1755
    %v1810 = vunpack.c.l.b16 %v1756
    %v1811 = vunpack.c.l.b16 %v1757
    %v1812 = vunpack.c.l.b16 %v1758
    %v1813 = vunpack.c.l.b16 %v1759
    %v1814 = vunpack.c.l.b16 %v1760
    %v1815 = vunpack.c.l.b16 %v1761
    %v1816 = vunpack.c.l.b16 %v1762
    %v1817 = vunpack.c.l.b16 %v1763
    %v1818 = vunpack.c.l.b16 %v1764
    %v1819 = vunpack.c.l.b16 %v1765
    %v1820 = vunpack.c.l.b16 %v1766
    %v1821 = vunpack.c.l.b16 %v1767
    %v1822 = vunpack.c.l.b16 %v1768
    %v1823 = vunpack.c.l.b16 %v1769
    %v1824 = vunpack.c.l.b16 %v1770
    %v1825 = vunpack.c.l.b16 %v1771
    %v1826 = vunpack.c.l.b16 %v1772
    %v1827 = vpack.c.b16 %v1804, %v1803
    %v1828 = vpack.c.b16 %v1806, %v1805
    %v1829 = vpack.c.b16 %v1808, %v1807
    %v1830 = vpack.c.b16 %v1810, %v1809
    %v1831 = vpack.c.b16 %v1812, %v1811
    %v1832 = vpack.c.b16 %v1814, %v1813
    %v1833 = vpack.c.b16 %v1816, %v1815
    %v1834 = vpack.c.b16 %v1818, %v1817
    %v1835 = vpack.c.b16 %v1820, %v1819
    %v1836 = vpack.c.b16 %v1822, %v1821
    %v1837 = vpack.c.b16 %v1824, %v1823
    %v1838 = vpack.c.b16 %v1826, %v1825
    %v1852 = vsel %vm118, %v1777, 0
    %1854 = vmatpush.bf16.msra.mxu0 %v1834
    %1855 = vmatpush.bf16.msra.mxu0 %v1833
    %1856 = vmatpush.bf16.msra.mxu0 %v1832
    %1857 = vmatpush.bf16.msra.mxu0 %v1831
    %1858 = vmatpush.bf16.msra.mxu0 %v1830
    %1859 = vmatpush.bf16.msra.mxu0 %v1829
    %1860 = vmatpush.bf16.msra.mxu0 %v1828
    %1861 = vmatpush.bf16.msra.mxu0 %v1827
    %1862 = vmatmul.bf16.gmra.mxu0 %v1776
    %v1863 = vpop.f32.mrf.mxu0
    %v1864 = vadd.f32 0.0, %v1863
    %v1865 = vpop.f32.mrf.mxu0
    %1866 = vdwg.mxu0
    %1867 = vmatpush.bf16.msra.mxu0 0
    %1868 = vmatpush.bf16.msra.mxu0 0
    %1869 = vmatpush.bf16.msra.mxu0 0
    %1870 = vmatpush.bf16.msra.mxu0 0
    %1871 = vmatpush.bf16.msra.mxu0 %v1838
    %1872 = vmatpush.bf16.msra.mxu0 %v1837
    %1873 = vmatpush.bf16.msra.mxu0 %v1836
    %1874 = vmatpush.bf16.msra.mxu0 %v1835
    %1875 = vmatmul.bf16.gmra.mxu0 %v1852
    %v1876 = vpop.f32.mrf.mxu0
    %v1877 = vadd.f32 %v1864, %v1876
    %v1878 = vpop.f32.mrf.mxu0
    %1879 = vdwg.mxu0
    %v1880 = vadd.f32 %v1748, %v1877
    %v1881 = vmax.f32 %v1880, 0.0
    %v1882 = vpack.c.bf16 %v1881, %v1881
    %v1883 = vld [vmem:[%s4 + $0xc0] sm:$0xff]
    %v1884 = vld [vmem:[%s4 + $0xc8] sm:$0xff]
    %v1885 = vld [vmem:[%s4 + $0xd0] sm:$0xff]
    %v1886 = vld [vmem:[%s4 + $0xd8] sm:$0xff]
    %v1887 = vld [vmem:[%s4 + $0xe0] sm:$0xff]
    %v1888 = vld [vmem:[%s4 + $0xe8] sm:$0xff]
    %v1889 = vld [vmem:[%s4 + $0xf0] sm:$0xff]
    %v1890 = vld [vmem:[%s4 + $0xf8] sm:$0xff]
    %v1891 = vld [vmem:[%s4 + $0x100] sm:$0xff]
    %v1892 = vld [vmem:[%s4 + $0x108] sm:$0xff]
    %v1893 = vld [vmem:[%s4 + $0x110] sm:$0xff]
    %v1894 = vld [vmem:[%s4 + $0x118] sm:$0xff]
    %s1895 = scalar_lea.vmem %s6, 160
    %v1896 = vld [vmem:[%s1895] ss:$8 sm:$0x3]
    %v1898 = vperm.slane %v1896, 0
    %v1899 = vperm.slane %v1896, 1
    %v1914 = vunpack.c.l.b16 %v1883
    %v1915 = vunpack.c.h.b16 %v1883
    %v1916 = vunpack.c.l.b16 %v1884
    %v1917 = vunpack.c.h.b16 %v1884
    %v1918 = vunpack.c.l.b16 %v1885
    %v1919 = vunpack.c.h.b16 %v1885
    %v1920 = vunpack.c.l.b16 %v1886
    %v1921 = vunpack.c.h.b16 %v1886
    %v1922 = vunpack.c.l.b16 %v1887
    %v1923 = vunpack.c.h.b16 %v1887
    %v1924 = vunpack.c.l.b16 %v1888
    %v1925 = vunpack.c.h.b16 %v1888
    %v1926 = vunpack.c.l.b16 %v1889
    %v1927 = vunpack.c.h.b16 %v1889
    %v1928 = vunpack.c.l.b16 %v1890
    %v1929 = vunpack.c.h.b16 %v1890
    %v1930 = vunpack.c.l.b16 %v1891
    %v1931 = vunpack.c.h.b16 %v1891
    %v1932 = vunpack.c.l.b16 %v1892
    %v1933 = vunpack.c.h.b16 %v1892
    %v1934 = vunpack.c.l.b16 %v1893
    %v1935 = vunpack.c.h.b16 %v1893
    %v1936 = vunpack.c.l.b16 %v1894
    %v1937 = vunpack.c.h.b16 %v1894
    %v1938 = vpack.c.b16 %v1916, %v1914
    %v1939 = vpack.c.b16 %v1917, %v1915
    %v1940 = vpack.c.b16 %v1920, %v1918
    %v1941 = vpack.c.b16 %v1921, %v1919
    %v1942 = vpack.c.b16 %v1924, %v1922
    %v1943 = vpack.c.b16 %v1925, %v1923
    %v1944 = vpack.c.b16 %v1928, %v1926
    %v1945 = vpack.c.b16 %v1929, %v1927
    %v1946 = vpack.c.b16 %v1932, %v1930
    %v1947 = vpack.c.b16 %v1933, %v1931
    %v1948 = vpack.c.b16 %v1936, %v1934
    %v1949 = vpack.c.b16 %v1937, %v1935
    %v1963 = vsel %vm769, %v1882, 0
    %1965 = vmatpush.bf16.msra.mxu0 0
    %1966 = vmatpush.bf16.msra.mxu0 0
    %1967 = vmatpush.bf16.msra.mxu0 %v1948
    %1968 = vmatpush.bf16.msra.mxu0 %v1946
    %1969 = vmatpush.bf16.msra.mxu0 %v1944
    %1970 = vmatpush.bf16.msra.mxu0 %v1942
    %1971 = vmatpush.bf16.msra.mxu0 %v1940
    %1972 = vmatpush.bf16.msra.mxu0 %v1938
    %1973 = vmatmul.bf16.gmra.mxu0 %v1963
    %v1974 = vpop.f32.mrf.mxu0
    %v1975 = vadd.f32 %v1898, %v1974
    %v1976 = vpop.f32.mrf.mxu0
    %1977 = vdwg.mxu0
    %1978 = vmatpush.bf16.msra.mxu0 0
    %1979 = vmatpush.bf16.msra.mxu0 0
    %1980 = vmatpush.bf16.msra.mxu0 %v1949
    %1981 = vmatpush.bf16.msra.mxu0 %v1947
    %1982 = vmatpush.bf16.msra.mxu0 %v1945
    %1983 = vmatpush.bf16.msra.mxu0 %v1943
    %1984 = vmatpush.bf16.msra.mxu0 %v1941
    %1985 = vmatpush.bf16.msra.mxu0 %v1939
    %1986 = vmatmul.bf16.gmra.mxu0 %v1963
    %v1987 = vpop.f32.mrf.mxu0
    %v1988 = vadd.f32 %v1899, %v1987
    %v1989 = vpop.f32.mrf.mxu0
    %1990 = vdwg.mxu0
    %v1991 = vmax.f32 %v1975, 0.0
    %v1992 = vmax.f32 %v1988, 0.0
    %v1993 = vpack.c.bf16 %v1991, %v1991
    %v1994 = vpack.c.bf16 %v1992, %v1992
    %v1995 = vld [vmem:[%s1 + $0x138] sm:$0xf]
    %v1996 = vld [vmem:[%s1 + $0x140] sm:$0xf]
    %v1997 = vld [vmem:[%s1 + $0x148] sm:$0xf]
    %v2001 = vunpack.c.l.b16 %v1995
    %v2002 = vunpack.c.l.b16 %v1996
    %v2003 = vunpack.c.l.b16 %v1997
    %v2004 = vpack.c.b16 %v2002, %v2001
    %v2005 = vpack.c.b16 %v2003, %v2003
    %vm2006 = vcmask 64512
    %v2008 = vsel %vm2006, %v2004, 0
    %v2011 = vsel %vm2006, %v2005, 0
    %vm2013 = vcmask 1043456
    %v2015 = vsel %vm2013, %v1993, 0
    %v2018 = vsel %vm2013, %v1994, 0
    %2020 = vmatpush.bf16.msra.mxu0 0
    %2021 = vmatpush.bf16.msra.mxu0 0
    %2022 = vmatpush.bf16.msra.mxu0 0
    %2023 = vmatpush.bf16.msra.mxu0 0
    %2024 = vmatpush.bf16.msra.mxu0 0
    %2025 = vmatpush.bf16.msra.mxu0 0
    %2026 = vmatpush.bf16.msra.mxu0 0
    %2027 = vmatpush.bf16.msra.mxu0 %v2015
    %2028 = vmatmul.bf16.gmra.mxu0 %v2008
    %v2029 = vpop.f32.mrf.mxu0
    %v2030 = vadd.f32 0.0, %v2029
    %v2031 = vpop.f32.mrf.mxu0
    %v2032 = vadd.f32 0.0, %v2031
    %2033 = vmatmul.bf16.gmra.mxu0 %v2011
    %v2034 = vpop.f32.mrf.mxu0
    %v2035 = vadd.f32 0.0, %v2034
    %v2036 = vpop.f32.mrf.mxu0
    %2037 = vdwg.mxu0
    %2038 = vmatpush.bf16.msra.mxu0 0
    %2039 = vmatpush.bf16.msra.mxu0 0
    %2040 = vmatpush.bf16.msra.mxu0 0
    %2041 = vmatpush.bf16.msra.mxu0 0
    %2042 = vmatpush.bf16.msra.mxu0 0
    %2043 = vmatpush.bf16.msra.mxu0 0
    %2044 = vmatpush.bf16.msra.mxu0 0
    %2045 = vmatpush.bf16.msra.mxu0 %v2018
    %2046 = vmatmul.bf16.gmra.mxu0 %v2008
    %v2047 = vpop.f32.mrf.mxu0
    %v2048 = vadd.f32 0.0, %v2047
    %v2049 = vpop.f32.mrf.mxu0
    %v2050 = vadd.f32 0.0, %v2049
    %2051 = vmatmul.bf16.gmra.mxu0 %v2011
    %v2052 = vpop.f32.mrf.mxu0
    %v2053 = vadd.f32 0.0, %v2052
    %v2054 = vpop.f32.mrf.mxu0
    %2055 = vdwg.mxu0
    %v2056 = vpack.c.bf16 %v2048, %v2030
    %v2057 = vpack.c.bf16 %v2050, %v2032
    %v2058 = vpack.c.bf16 %v2053, %v2035
    %s2059 = scalar_lea.vmem %s6, 176
    %v2060 = vld [vmem:[%s2059] ss:$8 sm:$0x3]
    %v2061 = vld [vmem:[%s4 + $0x120] sm:$0xff]
    %v2062 = vld [vmem:[%s4 + $0x128] sm:$0xff]
    %v2063 = vld [vmem:[%s4 + $0x130] sm:$0xff]
    %v2064 = vld [vmem:[%s4 + $0x138] sm:$0xff]
    %v2065 = vld [vmem:[%s4 + $0x140] sm:$0xff]
    %v2066 = vld [vmem:[%s4 + $0x148] sm:$0xff]
    %v2067 = vld [vmem:[%s4 + $0x150] sm:$0xff]
    %v2068 = vld [vmem:[%s4 + $0x158] sm:$0xff]
    %v2069 = vld [vmem:[%s4 + $0x160] sm:$0xff]
    %v2070 = vld [vmem:[%s4 + $0x168] sm:$0xff]
    %v2071 = vld [vmem:[%s4 + $0x170] sm:$0xff]
    %v2072 = vld [vmem:[%s4 + $0x178] sm:$0xff]
    %v2073 = vld [vmem:[%s4 + $0x180] sm:$0xff]
    %v2074 = vld [vmem:[%s4 + $0x188] sm:$0xff]
    %v2075 = vld [vmem:[%s4 + $0x190] sm:$0xff]
    %v2076 = vld [vmem:[%s4 + $0x198] sm:$0xff]
    %v2077 = vld [vmem:[%s4 + $0x1a0] sm:$0xff]
    %v2078 = vld [vmem:[%s4 + $0x1a8] sm:$0xff]
    %v2079 = vld [vmem:[%s4 + $0x1b0] sm:$0xff]
    %v2080 = vld [vmem:[%s4 + $0x1b8] sm:$0xff]
    %v2081 = vld [vmem:[%s4 + $0x1c0] sm:$0xff]
    %v2082 = vld [vmem:[%s4 + $0x1c8] sm:$0xff]
    %v2083 = vld [vmem:[%s4 + $0x1d0] sm:$0xff]
    %v2084 = vld [vmem:[%s4 + $0x1d8] sm:$0xff]
    %v2086 = vunpack.c.l.b16 %v2056
    %v2087 = vunpack.c.h.b16 %v2056
    %v2088 = vpack.c.b16 %v2086, %v2086
    %v2089 = vpack.c.b16 %v2087, %v2087
    %v2115 = vunpack.c.l.b16 %v2061
    %v2116 = vunpack.c.h.b16 %v2061
    %v2117 = vunpack.c.l.b16 %v2062
    %v2118 = vunpack.c.h.b16 %v2062
    %v2119 = vunpack.c.l.b16 %v2063
    %v2120 = vunpack.c.h.b16 %v2063
    %v2121 = vunpack.c.l.b16 %v2064
    %v2122 = vunpack.c.h.b16 %v2064
    %v2123 = vunpack.c.l.b16 %v2065
    %v2124 = vunpack.c.h.b16 %v2065
    %v2125 = vunpack.c.l.b16 %v2066
    %v2126 = vunpack.c.h.b16 %v2066
    %v2127 = vunpack.c.l.b16 %v2067
    %v2128 = vunpack.c.h.b16 %v2067
    %v2129 = vunpack.c.l.b16 %v2068
    %v2130 = vunpack.c.h.b16 %v2068
    %v2131 = vunpack.c.l.b16 %v2069
    %v2132 = vunpack.c.h.b16 %v2069
    %v2133 = vunpack.c.l.b16 %v2070
    %v2134 = vunpack.c.h.b16 %v2070
    %v2135 = vunpack.c.l.b16 %v2071
    %v2136 = vunpack.c.h.b16 %v2071
    %v2137 = vunpack.c.l.b16 %v2072
    %v2138 = vunpack.c.h.b16 %v2072
    %v2139 = vunpack.c.l.b16 %v2073
    %v2140 = vunpack.c.h.b16 %v2073
    %v2141 = vunpack.c.l.b16 %v2074
    %v2142 = vunpack.c.h.b16 %v2074
    %v2143 = vunpack.c.l.b16 %v2075
    %v2144 = vunpack.c.h.b16 %v2075
    %v2145 = vunpack.c.l.b16 %v2076
    %v2146 = vunpack.c.h.b16 %v2076
    %v2147 = vunpack.c.l.b16 %v2077
    %v2148 = vunpack.c.h.b16 %v2077
    %v2149 = vunpack.c.l.b16 %v2078
    %v2150 = vunpack.c.h.b16 %v2078
    %v2151 = vunpack.c.l.b16 %v2079
    %v2152 = vunpack.c.h.b16 %v2079
    %v2153 = vunpack.c.l.b16 %v2080
    %v2154 = vunpack.c.h.b16 %v2080
    %v2155 = vunpack.c.l.b16 %v2081
    %v2156 = vunpack.c.h.b16 %v2081
    %v2157 = vunpack.c.l.b16 %v2082
    %v2158 = vunpack.c.h.b16 %v2082
    %v2159 = vunpack.c.l.b16 %v2083
    %v2160 = vunpack.c.h.b16 %v2083
    %v2161 = vunpack.c.l.b16 %v2084
    %v2162 = vunpack.c.h.b16 %v2084
    %v2163 = vpack.c.b16 %v2117, %v2115
    %v2164 = vpack.c.b16 %v2118, %v2116
    %v2165 = vpack.c.b16 %v2121, %v2119
    %v2166 = vpack.c.b16 %v2122, %v2120
    %v2167 = vpack.c.b16 %v2125, %v2123
    %v2168 = vpack.c.b16 %v2126, %v2124
    %v2169 = vpack.c.b16 %v2129, %v2127
    %v2170 = vpack.c.b16 %v2130, %v2128
    %v2171 = vpack.c.b16 %v2133, %v2131
    %v2172 = vpack.c.b16 %v2134, %v2132
    %v2173 = vpack.c.b16 %v2137, %v2135
    %v2174 = vpack.c.b16 %v2138, %v2136
    %v2175 = vpack.c.b16 %v2141, %v2139
    %v2176 = vpack.c.b16 %v2142, %v2140
    %v2177 = vpack.c.b16 %v2145, %v2143
    %v2178 = vpack.c.b16 %v2146, %v2144
    %v2179 = vpack.c.b16 %v2149, %v2147
    %v2180 = vpack.c.b16 %v2150, %v2148
    %v2181 = vpack.c.b16 %v2153, %v2151
    %v2182 = vpack.c.b16 %v2154, %v2152
    %v2183 = vpack.c.b16 %v2157, %v2155
    %v2184 = vpack.c.b16 %v2158, %v2156
    %v2185 = vpack.c.b16 %v2161, %v2159
    %v2186 = vpack.c.b16 %v2162, %v2160
    %v2212 = vsel %vm118, %v2089, 0
    %2214 = vmatpush.bf16.msra.mxu0 %v2177
    %2215 = vmatpush.bf16.msra.mxu0 %v2175
    %2216 = vmatpush.bf16.msra.mxu0 %v2173
    %2217 = vmatpush.bf16.msra.mxu0 %v2171
    %2218 = vmatpush.bf16.msra.mxu0 %v2169
    %2219 = vmatpush.bf16.msra.mxu0 %v2167
    %2220 = vmatpush.bf16.msra.mxu0 %v2165
    %2221 = vmatpush.bf16.msra.mxu0 %v2163
    %2222 = vmatmul.bf16.gmra.mxu0 %v2088
    %v2223 = vpop.f32.mrf.mxu0
    %v2224 = vadd.f32 0.0, %v2223
    %v2225 = vpop.f32.mrf.mxu0
    %2226 = vdwg.mxu0
    %2227 = vmatpush.bf16.msra.mxu0 0
    %2228 = vmatpush.bf16.msra.mxu0 0
    %2229 = vmatpush.bf16.msra.mxu0 0
    %2230 = vmatpush.bf16.msra.mxu0 0
    %2231 = vmatpush.bf16.msra.mxu0 %v2185
    %2232 = vmatpush.bf16.msra.mxu0 %v2183
    %2233 = vmatpush.bf16.msra.mxu0 %v2181
    %2234 = vmatpush.bf16.msra.mxu0 %v2179
    %2235 = vmatmul.bf16.gmra.mxu0 %v2212
    %v2236 = vpop.f32.mrf.mxu0
    %v2237 = vadd.f32 %v2224, %v2236
    %v2238 = vpop.f32.mrf.mxu0
    %2239 = vdwg.mxu0
    %2240 = vmatpush.bf16.msra.mxu0 %v2178
    %2241 = vmatpush.bf16.msra.mxu0 %v2176
    %2242 = vmatpush.bf16.msra.mxu0 %v2174
    %2243 = vmatpush.bf16.msra.mxu0 %v2172
    %2244 = vmatpush.bf16.msra.mxu0 %v2170
    %2245 = vmatpush.bf16.msra.mxu0 %v2168
    %2246 = vmatpush.bf16.msra.mxu0 %v2166
    %2247 = vmatpush.bf16.msra.mxu0 %v2164
    %2248 = vmatmul.bf16.gmra.mxu0 %v2088
    %v2249 = vpop.f32.mrf.mxu0
    %v2250 = vadd.f32 0.0, %v2249
    %v2251 = vpop.f32.mrf.mxu0
    %2252 = vdwg.mxu0
    %2253 = vmatpush.bf16.msra.mxu0 0
    %2254 = vmatpush.bf16.msra.mxu0 0
    %2255 = vmatpush.bf16.msra.mxu0 0
    %2256 = vmatpush.bf16.msra.mxu0 0
    %2257 = vmatpush.bf16.msra.mxu0 %v2186
    %2258 = vmatpush.bf16.msra.mxu0 %v2184
    %2259 = vmatpush.bf16.msra.mxu0 %v2182
    %2260 = vmatpush.bf16.msra.mxu0 %v2180
    %2261 = vmatmul.bf16.gmra.mxu0 %v2212
    %v2262 = vpop.f32.mrf.mxu0
    %v2263 = vadd.f32 %v2250, %v2262
    %v2264 = vpop.f32.mrf.mxu0
    %2265 = vdwg.mxu0
    %v2267 = vperm.slane %v2060, 0
    %v2268 = vperm.slane %v2060, 1
    %v2271 = vadd.f32 %v2267, %v2237
    %v2272 = vadd.f32 %v2268, %v2263
    %v2273 = vld [vmem:[%s4 + $0x1e0] sm:$0xff]
    %v2274 = vld [vmem:[%s4 + $0x1e8] sm:$0xff]
    %v2275 = vld [vmem:[%s4 + $0x1f0] sm:$0xff]
    %v2276 = vld [vmem:[%s4 + $0x1f8] sm:$0xff]
    %v2277 = vld [vmem:[%s4 + $0x200] sm:$0xff]
    %v2278 = vld [vmem:[%s4 + $0x208] sm:$0xff]
    %v2279 = vld [vmem:[%s4 + $0x210] sm:$0xff]
    %v2280 = vld [vmem:[%s4 + $0x218] sm:$0xff]
    %v2281 = vld [vmem:[%s4 + $0x220] sm:$0xff]
    %v2282 = vld [vmem:[%s4 + $0x228] sm:$0xff]
    %v2283 = vld [vmem:[%s4 + $0x230] sm:$0xff]
    %v2284 = vld [vmem:[%s4 + $0x238] sm:$0xff]
    %v2285 = vld [vmem:[%s4 + $0x240] sm:$0xff]
    %v2286 = vld [vmem:[%s4 + $0x248] sm:$0xff]
    %v2287 = vld [vmem:[%s4 + $0x250] sm:$0xff]
    %v2288 = vld [vmem:[%s4 + $0x258] sm:$0xff]
    %v2289 = vld [vmem:[%s4 + $0x260] sm:$0xff]
    %v2290 = vld [vmem:[%s4 + $0x268] sm:$0xff]
    %v2291 = vld [vmem:[%s4 + $0x270] sm:$0xff]
    %v2292 = vld [vmem:[%s4 + $0x278] sm:$0xff]
    %v2293 = vld [vmem:[%s4 + $0x280] sm:$0xff]
    %v2294 = vld [vmem:[%s4 + $0x288] sm:$0xff]
    %v2295 = vld [vmem:[%s4 + $0x290] sm:$0xff]
    %v2296 = vld [vmem:[%s4 + $0x298] sm:$0xff]
    %v2298 = vunpack.c.l.b16 %v2057
    %v2299 = vunpack.c.h.b16 %v2057
    %v2300 = vpack.c.b16 %v2298, %v2298
    %v2301 = vpack.c.b16 %v2299, %v2299
    %v2327 = vunpack.c.l.b16 %v2273
    %v2328 = vunpack.c.h.b16 %v2273
    %v2329 = vunpack.c.l.b16 %v2274
    %v2330 = vunpack.c.h.b16 %v2274
    %v2331 = vunpack.c.l.b16 %v2275
    %v2332 = vunpack.c.h.b16 %v2275
    %v2333 = vunpack.c.l.b16 %v2276
    %v2334 = vunpack.c.h.b16 %v2276
    %v2335 = vunpack.c.l.b16 %v2277
    %v2336 = vunpack.c.h.b16 %v2277
    %v2337 = vunpack.c.l.b16 %v2278
    %v2338 = vunpack.c.h.b16 %v2278
    %v2339 = vunpack.c.l.b16 %v2279
    %v2340 = vunpack.c.h.b16 %v2279
    %v2341 = vunpack.c.l.b16 %v2280
    %v2342 = vunpack.c.h.b16 %v2280
    %v2343 = vunpack.c.l.b16 %v2281
    %v2344 = vunpack.c.h.b16 %v2281
    %v2345 = vunpack.c.l.b16 %v2282
    %v2346 = vunpack.c.h.b16 %v2282
    %v2347 = vunpack.c.l.b16 %v2283
    %v2348 = vunpack.c.h.b16 %v2283
    %v2349 = vunpack.c.l.b16 %v2284
    %v2350 = vunpack.c.h.b16 %v2284
    %v2351 = vunpack.c.l.b16 %v2285
    %v2352 = vunpack.c.h.b16 %v2285
    %v2353 = vunpack.c.l.b16 %v2286
    %v2354 = vunpack.c.h.b16 %v2286
    %v2355 = vunpack.c.l.b16 %v2287
    %v2356 = vunpack.c.h.b16 %v2287
    %v2357 = vunpack.c.l.b16 %v2288
    %v2358 = vunpack.c.h.b16 %v2288
    %v2359 = vunpack.c.l.b16 %v2289
    %v2360 = vunpack.c.h.b16 %v2289
    %v2361 = vunpack.c.l.b16 %v2290
    %v2362 = vunpack.c.h.b16 %v2290
    %v2363 = vunpack.c.l.b16 %v2291
    %v2364 = vunpack.c.h.b16 %v2291
    %v2365 = vunpack.c.l.b16 %v2292
    %v2366 = vunpack.c.h.b16 %v2292
    %v2367 = vunpack.c.l.b16 %v2293
    %v2368 = vunpack.c.h.b16 %v2293
    %v2369 = vunpack.c.l.b16 %v2294
    %v2370 = vunpack.c.h.b16 %v2294
    %v2371 = vunpack.c.l.b16 %v2295
    %v2372 = vunpack.c.h.b16 %v2295
    %v2373 = vunpack.c.l.b16 %v2296
    %v2374 = vunpack.c.h.b16 %v2296
    %v2375 = vpack.c.b16 %v2329, %v2327
    %v2376 = vpack.c.b16 %v2330, %v2328
    %v2377 = vpack.c.b16 %v2333, %v2331
    %v2378 = vpack.c.b16 %v2334, %v2332
    %v2379 = vpack.c.b16 %v2337, %v2335
    %v2380 = vpack.c.b16 %v2338, %v2336
    %v2381 = vpack.c.b16 %v2341, %v2339
    %v2382 = vpack.c.b16 %v2342, %v2340
    %v2383 = vpack.c.b16 %v2345, %v2343
    %v2384 = vpack.c.b16 %v2346, %v2344
    %v2385 = vpack.c.b16 %v2349, %v2347
    %v2386 = vpack.c.b16 %v2350, %v2348
    %v2387 = vpack.c.b16 %v2353, %v2351
    %v2388 = vpack.c.b16 %v2354, %v2352
    %v2389 = vpack.c.b16 %v2357, %v2355
    %v2390 = vpack.c.b16 %v2358, %v2356
    %v2391 = vpack.c.b16 %v2361, %v2359
    %v2392 = vpack.c.b16 %v2362, %v2360
    %v2393 = vpack.c.b16 %v2365, %v2363
    %v2394 = vpack.c.b16 %v2366, %v2364
    %v2395 = vpack.c.b16 %v2369, %v2367
    %v2396 = vpack.c.b16 %v2370, %v2368
    %v2397 = vpack.c.b16 %v2373, %v2371
    %v2398 = vpack.c.b16 %v2374, %v2372
    %v2424 = vsel %vm118, %v2301, 0
    %2426 = vmatpush.bf16.msra.mxu0 %v2389
    %2427 = vmatpush.bf16.msra.mxu0 %v2387
    %2428 = vmatpush.bf16.msra.mxu0 %v2385
    %2429 = vmatpush.bf16.msra.mxu0 %v2383
    %2430 = vmatpush.bf16.msra.mxu0 %v2381
    %2431 = vmatpush.bf16.msra.mxu0 %v2379
    %2432 = vmatpush.bf16.msra.mxu0 %v2377
    %2433 = vmatpush.bf16.msra.mxu0 %v2375
    %2434 = vmatmul.bf16.gmra.mxu0 %v2300
    %v2435 = vpop.f32.mrf.mxu0
    %v2436 = vadd.f32 0.0, %v2435
    %v2437 = vpop.f32.mrf.mxu0
    %2438 = vdwg.mxu0
    %2439 = vmatpush.bf16.msra.mxu0 0
    %2440 = vmatpush.bf16.msra.mxu0 0
    %2441 = vmatpush.bf16.msra.mxu0 0
    %2442 = vmatpush.bf16.msra.mxu0 0
    %2443 = vmatpush.bf16.msra.mxu0 %v2397
    %2444 = vmatpush.bf16.msra.mxu0 %v2395
    %2445 = vmatpush.bf16.msra.mxu0 %v2393
    %2446 = vmatpush.bf16.msra.mxu0 %v2391
    %2447 = vmatmul.bf16.gmra.mxu0 %v2424
    %v2448 = vpop.f32.mrf.mxu0
    %v2449 = vadd.f32 %v2436, %v2448
    %v2450 = vpop.f32.mrf.mxu0
    %2451 = vdwg.mxu0
    %2452 = vmatpush.bf16.msra.mxu0 %v2390
    %2453 = vmatpush.bf16.msra.mxu0 %v2388
    %2454 = vmatpush.bf16.msra.mxu0 %v2386
    %2455 = vmatpush.bf16.msra.mxu0 %v2384
    %2456 = vmatpush.bf16.msra.mxu0 %v2382
    %2457 = vmatpush.bf16.msra.mxu0 %v2380
    %2458 = vmatpush.bf16.msra.mxu0 %v2378
    %2459 = vmatpush.bf16.msra.mxu0 %v2376
    %2460 = vmatmul.bf16.gmra.mxu0 %v2300
    %v2461 = vpop.f32.mrf.mxu0
    %v2462 = vadd.f32 0.0, %v2461
    %v2463 = vpop.f32.mrf.mxu0
    %2464 = vdwg.mxu0
    %2465 = vmatpush.bf16.msra.mxu0 0
    %2466 = vmatpush.bf16.msra.mxu0 0
    %2467 = vmatpush.bf16.msra.mxu0 0
    %2468 = vmatpush.bf16.msra.mxu0 0
    %2469 = vmatpush.bf16.msra.mxu0 %v2398
    %2470 = vmatpush.bf16.msra.mxu0 %v2396
    %2471 = vmatpush.bf16.msra.mxu0 %v2394
    %2472 = vmatpush.bf16.msra.mxu0 %v2392
    %2473 = vmatmul.bf16.gmra.mxu0 %v2424
    %v2474 = vpop.f32.mrf.mxu0
    %v2475 = vadd.f32 %v2462, %v2474
    %v2476 = vpop.f32.mrf.mxu0
    %2477 = vdwg.mxu0
    %v2478 = vadd.f32 %v2271, %v2449
    %v2479 = vadd.f32 %v2272, %v2475
    %v2480 = vld [vmem:[%s4 + $0x2a0] sm:$0xff]
    %v2481 = vld [vmem:[%s4 + $0x2a8] sm:$0xff]
    %v2482 = vld [vmem:[%s4 + $0x2b0] sm:$0xff]
    %v2483 = vld [vmem:[%s4 + $0x2b8] sm:$0xff]
    %v2484 = vld [vmem:[%s4 + $0x2c0] sm:$0xff]
    %v2485 = vld [vmem:[%s4 + $0x2c8] sm:$0xff]
    %v2486 = vld [vmem:[%s4 + $0x2d0] sm:$0xff]
    %v2487 = vld [vmem:[%s4 + $0x2d8] sm:$0xff]
    %v2488 = vld [vmem:[%s4 + $0x2e0] sm:$0xff]
    %v2489 = vld [vmem:[%s4 + $0x2e8] sm:$0xff]
    %v2490 = vld [vmem:[%s4 + $0x2f0] sm:$0xff]
    %v2491 = vld [vmem:[%s4 + $0x2f8] sm:$0xff]
    %v2492 = vld [vmem:[%s4 + $0x300] sm:$0xff]
    %v2493 = vld [vmem:[%s4 + $0x308] sm:$0xff]
    %v2494 = vld [vmem:[%s4 + $0x310] sm:$0xff]
    %v2495 = vld [vmem:[%s4 + $0x318] sm:$0xff]
    %v2496 = vld [vmem:[%s4 + $0x320] sm:$0xff]
    %v2497 = vld [vmem:[%s4 + $0x328] sm:$0xff]
    %v2498 = vld [vmem:[%s4 + $0x330] sm:$0xff]
    %v2499 = vld [vmem:[%s4 + $0x338] sm:$0xff]
    %v2500 = vld [vmem:[%s4 + $0x340] sm:$0xff]
    %v2501 = vld [vmem:[%s4 + $0x348] sm:$0xff]
    %v2502 = vld [vmem:[%s4 + $0x350] sm:$0xff]
    %v2503 = vld [vmem:[%s4 + $0x358] sm:$0xff]
    %v2505 = vunpack.c.l.b16 %v2058
    %v2506 = vunpack.c.h.b16 %v2058
    %v2507 = vpack.c.b16 %v2505, %v2505
    %v2508 = vpack.c.b16 %v2506, %v2506
    %v2534 = vunpack.c.l.b16 %v2480
    %v2535 = vunpack.c.h.b16 %v2480
    %v2536 = vunpack.c.l.b16 %v2481
    %v2537 = vunpack.c.h.b16 %v2481
    %v2538 = vunpack.c.l.b16 %v2482
    %v2539 = vunpack.c.h.b16 %v2482
    %v2540 = vunpack.c.l.b16 %v2483
    %v2541 = vunpack.c.h.b16 %v2483
    %v2542 = vunpack.c.l.b16 %v2484
    %v2543 = vunpack.c.h.b16 %v2484
    %v2544 = vunpack.c.l.b16 %v2485
    %v2545 = vunpack.c.h.b16 %v2485
    %v2546 = vunpack.c.l.b16 %v2486
    %v2547 = vunpack.c.h.b16 %v2486
    %v2548 = vunpack.c.l.b16 %v2487
    %v2549 = vunpack.c.h.b16 %v2487
    %v2550 = vunpack.c.l.b16 %v2488
    %v2551 = vunpack.c.h.b16 %v2488
    %v2552 = vunpack.c.l.b16 %v2489
    %v2553 = vunpack.c.h.b16 %v2489
    %v2554 = vunpack.c.l.b16 %v2490
    %v2555 = vunpack.c.h.b16 %v2490
    %v2556 = vunpack.c.l.b16 %v2491
    %v2557 = vunpack.c.h.b16 %v2491
    %v2558 = vunpack.c.l.b16 %v2492
    %v2559 = vunpack.c.h.b16 %v2492
    %v2560 = vunpack.c.l.b16 %v2493
    %v2561 = vunpack.c.h.b16 %v2493
    %v2562 = vunpack.c.l.b16 %v2494
    %v2563 = vunpack.c.h.b16 %v2494
    %v2564 = vunpack.c.l.b16 %v2495
    %v2565 = vunpack.c.h.b16 %v2495
    %v2566 = vunpack.c.l.b16 %v2496
    %v2567 = vunpack.c.h.b16 %v2496
    %v2568 = vunpack.c.l.b16 %v2497
    %v2569 = vunpack.c.h.b16 %v2497
    %v2570 = vunpack.c.l.b16 %v2498
    %v2571 = vunpack.c.h.b16 %v2498
    %v2572 = vunpack.c.l.b16 %v2499
    %v2573 = vunpack.c.h.b16 %v2499
    %v2574 = vunpack.c.l.b16 %v2500
    %v2575 = vunpack.c.h.b16 %v2500
    %v2576 = vunpack.c.l.b16 %v2501
    %v2577 = vunpack.c.h.b16 %v2501
    %v2578 = vunpack.c.l.b16 %v2502
    %v2579 = vunpack.c.h.b16 %v2502
    %v2580 = vunpack.c.l.b16 %v2503
    %v2581 = vunpack.c.h.b16 %v2503
    %v2582 = vpack.c.b16 %v2536, %v2534
    %v2583 = vpack.c.b16 %v2537, %v2535
    %v2584 = vpack.c.b16 %v2540, %v2538
    %v2585 = vpack.c.b16 %v2541, %v2539
    %v2586 = vpack.c.b16 %v2544, %v2542
    %v2587 = vpack.c.b16 %v2545, %v2543
    %v2588 = vpack.c.b16 %v2548, %v2546
    %v2589 = vpack.c.b16 %v2549, %v2547
    %v2590 = vpack.c.b16 %v2552, %v2550
    %v2591 = vpack.c.b16 %v2553, %v2551
    %v2592 = vpack.c.b16 %v2556, %v2554
    %v2593 = vpack.c.b16 %v2557, %v2555
    %v2594 = vpack.c.b16 %v2560, %v2558
    %v2595 = vpack.c.b16 %v2561, %v2559
    %v2596 = vpack.c.b16 %v2564, %v2562
    %v2597 = vpack.c.b16 %v2565, %v2563
    %v2598 = vpack.c.b16 %v2568, %v2566
    %v2599 = vpack.c.b16 %v2569, %v2567
    %v2600 = vpack.c.b16 %v2572, %v2570
    %v2601 = vpack.c.b16 %v2573, %v2571
    %v2602 = vpack.c.b16 %v2576, %v2574
    %v2603 = vpack.c.b16 %v2577, %v2575
    %v2604 = vpack.c.b16 %v2580, %v2578
    %v2605 = vpack.c.b16 %v2581, %v2579
    %v2631 = vsel %vm118, %v2508, 0
    %2633 = vmatpush.bf16.msra.mxu0 %v2596
    %2634 = vmatpush.bf16.msra.mxu0 %v2594
    %2635 = vmatpush.bf16.msra.mxu0 %v2592
    %2636 = vmatpush.bf16.msra.mxu0 %v2590
    %2637 = vmatpush.bf16.msra.mxu0 %v2588
    %2638 = vmatpush.bf16.msra.mxu0 %v2586
    %2639 = vmatpush.bf16.msra.mxu0 %v2584
    %2640 = vmatpush.bf16.msra.mxu0 %v2582
    %2641 = vmatmul.bf16.gmra.mxu0 %v2507
    %v2642 = vpop.f32.mrf.mxu0
    %v2643 = vadd.f32 0.0, %v2642
    %v2644 = vpop.f32.mrf.mxu0
    %2645 = vdwg.mxu0
    %2646 = vmatpush.bf16.msra.mxu0 0
    %2647 = vmatpush.bf16.msra.mxu0 0
    %2648 = vmatpush.bf16.msra.mxu0 0
    %2649 = vmatpush.bf16.msra.mxu0 0
    %2650 = vmatpush.bf16.msra.mxu0 %v2604
    %2651 = vmatpush.bf16.msra.mxu0 %v2602
    %2652 = vmatpush.bf16.msra.mxu0 %v2600
    %2653 = vmatpush.bf16.msra.mxu0 %v2598
    %2654 = vmatmul.bf16.gmra.mxu0 %v2631
    %v2655 = vpop.f32.mrf.mxu0
    %v2656 = vadd.f32 %v2643, %v2655
    %v2657 = vpop.f32.mrf.mxu0
    %2658 = vdwg.mxu0
    %2659 = vmatpush.bf16.msra.mxu0 %v2597
    %2660 = vmatpush.bf16.msra.mxu0 %v2595
    %2661 = vmatpush.bf16.msra.mxu0 %v2593
    %2662 = vmatpush.bf16.msra.mxu0 %v2591
    %2663 = vmatpush.bf16.msra.mxu0 %v2589
    %2664 = vmatpush.bf16.msra.mxu0 %v2587
    %2665 = vmatpush.bf16.msra.mxu0 %v2585
    %2666 = vmatpush.bf16.msra.mxu0 %v2583
    %2667 = vmatmul.bf16.gmra.mxu0 %v2507
    %v2668 = vpop.f32.mrf.mxu0
    %v2669 = vadd.f32 0.0, %v2668
    %v2670 = vpop.f32.mrf.mxu0
    %2671 = vdwg.mxu0
    %2672 = vmatpush.bf16.msra.mxu0 0
    %2673 = vmatpush.bf16.msra.mxu0 0
    %2674 = vmatpush.bf16.msra.mxu0 0
    %2675 = vmatpush.bf16.msra.mxu0 0
    %2676 = vmatpush.bf16.msra.mxu0 %v2605
    %2677 = vmatpush.bf16.msra.mxu0 %v2603
    %2678 = vmatpush.bf16.msra.mxu0 %v2601
    %2679 = vmatpush.bf16.msra.mxu0 %v2599
    %2680 = vmatmul.bf16.gmra.mxu0 %v2631
    %v2681 = vpop.f32.mrf.mxu0
    %v2682 = vadd.f32 %v2669, %v2681
    %v2683 = vpop.f32.mrf.mxu0
    %2684 = vdwg.mxu0
    %v2685 = vadd.f32 %v2478, %v2656
    %v2686 = vadd.f32 %v2479, %v2682
    %v2687 = vmax.f32 %v2685, 0.0
    %v2688 = vmax.f32 %v2686, 0.0
    %v2689 = vpack.c.bf16 %v2687, %v2687
    %v2690 = vpack.c.bf16 %v2688, %v2688
    %v2691 = vld [vmem:[%s4 + $0x360] sm:$0xff]
    %v2692 = vld [vmem:[%s4 + $0x368] sm:$0xff]
    %v2693 = vld [vmem:[%s4 + $0x370] sm:$0xff]
    %v2694 = vld [vmem:[%s4 + $0x378] sm:$0xff]
    %v2695 = vld [vmem:[%s4 + $0x380] sm:$0xff]
    %v2696 = vld [vmem:[%s4 + $0x388] sm:$0xff]
    %v2697 = vld [vmem:[%s4 + $0x390] sm:$0xff]
    %v2698 = vld [vmem:[%s4 + $0x398] sm:$0xff]
    %v2699 = vld [vmem:[%s4 + $0x3a0] sm:$0xff]
    %v2700 = vld [vmem:[%s4 + $0x3a8] sm:$0xff]
    %v2701 = vld [vmem:[%s4 + $0x3b0] sm:$0xff]
    %v2702 = vld [vmem:[%s4 + $0x3b8] sm:$0xff]
    %v2703 = vld [vmem:[%s4 + $0x3c0] sm:$0xff]
    %v2704 = vld [vmem:[%s4 + $0x3c8] sm:$0xff]
    %v2705 = vld [vmem:[%s4 + $0x3d0] sm:$0xff]
    %v2706 = vld [vmem:[%s4 + $0x3d8] sm:$0xff]
    %v2707 = vld [vmem:[%s4 + $0x3e0] sm:$0xff]
    %v2708 = vld [vmem:[%s4 + $0x3e8] sm:$0xff]
    %v2709 = vld [vmem:[%s4 + $0x3f0] sm:$0xff]
    %v2710 = vld [vmem:[%s4 + $0x3f8] sm:$0xff]
    %v2711 = vld [vmem:[%s4 + $0x400] sm:$0xff]
    %v2712 = vld [vmem:[%s4 + $0x408] sm:$0xff]
    %v2713 = vld [vmem:[%s4 + $0x410] sm:$0xff]
    %v2714 = vld [vmem:[%s4 + $0x418] sm:$0xff]
    %s2715 = scalar_lea.vmem %s6, 192
    %v2716 = vld [vmem:[%s2715] ss:$8 sm:$0x3]
    %v2718 = vperm.slane %v2716, 0
    %v2719 = vperm.slane %v2716, 1
    %v2746 = vunpack.c.l.b16 %v2691
    %v2747 = vunpack.c.h.b16 %v2691
    %v2748 = vunpack.c.l.b16 %v2692
    %v2749 = vunpack.c.h.b16 %v2692
    %v2750 = vunpack.c.l.b16 %v2693
    %v2751 = vunpack.c.h.b16 %v2693
    %v2752 = vunpack.c.l.b16 %v2694
    %v2753 = vunpack.c.h.b16 %v2694
    %v2754 = vunpack.c.l.b16 %v2695
    %v2755 = vunpack.c.h.b16 %v2695
    %v2756 = vunpack.c.l.b16 %v2696
    %v2757 = vunpack.c.h.b16 %v2696
    %v2758 = vunpack.c.l.b16 %v2697
    %v2759 = vunpack.c.h.b16 %v2697
    %v2760 = vunpack.c.l.b16 %v2698
    %v2761 = vunpack.c.h.b16 %v2698
    %v2762 = vunpack.c.l.b16 %v2699
    %v2763 = vunpack.c.h.b16 %v2699
    %v2764 = vunpack.c.l.b16 %v2700
    %v2765 = vunpack.c.h.b16 %v2700
    %v2766 = vunpack.c.l.b16 %v2701
    %v2767 = vunpack.c.h.b16 %v2701
    %v2768 = vunpack.c.l.b16 %v2702
    %v2769 = vunpack.c.h.b16 %v2702
    %v2770 = vunpack.c.l.b16 %v2703
    %v2771 = vunpack.c.h.b16 %v2703
    %v2772 = vunpack.c.l.b16 %v2704
    %v2773 = vunpack.c.h.b16 %v2704
    %v2774 = vunpack.c.l.b16 %v2705
    %v2775 = vunpack.c.h.b16 %v2705
    %v2776 = vunpack.c.l.b16 %v2706
    %v2777 = vunpack.c.h.b16 %v2706
    %v2778 = vunpack.c.l.b16 %v2707
    %v2779 = vunpack.c.h.b16 %v2707
    %v2780 = vunpack.c.l.b16 %v2708
    %v2781 = vunpack.c.h.b16 %v2708
    %v2782 = vunpack.c.l.b16 %v2709
    %v2783 = vunpack.c.h.b16 %v2709
    %v2784 = vunpack.c.l.b16 %v2710
    %v2785 = vunpack.c.h.b16 %v2710
    %v2786 = vunpack.c.l.b16 %v2711
    %v2787 = vunpack.c.h.b16 %v2711
    %v2788 = vunpack.c.l.b16 %v2712
    %v2789 = vunpack.c.h.b16 %v2712
    %v2790 = vunpack.c.l.b16 %v2713
    %v2791 = vunpack.c.h.b16 %v2713
    %v2792 = vunpack.c.l.b16 %v2714
    %v2793 = vunpack.c.h.b16 %v2714
    %v2794 = vpack.c.b16 %v2748, %v2746
    %v2795 = vpack.c.b16 %v2749, %v2747
    %v2796 = vpack.c.b16 %v2752, %v2750
    %v2797 = vpack.c.b16 %v2753, %v2751
    %v2798 = vpack.c.b16 %v2756, %v2754
    %v2799 = vpack.c.b16 %v2757, %v2755
    %v2800 = vpack.c.b16 %v2760, %v2758
    %v2801 = vpack.c.b16 %v2761, %v2759
    %v2802 = vpack.c.b16 %v2764, %v2762
    %v2803 = vpack.c.b16 %v2765, %v2763
    %v2804 = vpack.c.b16 %v2768, %v2766
    %v2805 = vpack.c.b16 %v2769, %v2767
    %v2806 = vpack.c.b16 %v2772, %v2770
    %v2807 = vpack.c.b16 %v2773, %v2771
    %v2808 = vpack.c.b16 %v2776, %v2774
    %v2809 = vpack.c.b16 %v2777, %v2775
    %v2810 = vpack.c.b16 %v2780, %v2778
    %v2811 = vpack.c.b16 %v2781, %v2779
    %v2812 = vpack.c.b16 %v2784, %v2782
    %v2813 = vpack.c.b16 %v2785, %v2783
    %v2814 = vpack.c.b16 %v2788, %v2786
    %v2815 = vpack.c.b16 %v2789, %v2787
    %v2816 = vpack.c.b16 %v2792, %v2790
    %v2817 = vpack.c.b16 %v2793, %v2791
    %v2843 = vsel %vm118, %v2690, 0
    %2845 = vmatpush.bf16.msra.mxu0 %v2808
    %2846 = vmatpush.bf16.msra.mxu0 %v2806
    %2847 = vmatpush.bf16.msra.mxu0 %v2804
    %2848 = vmatpush.bf16.msra.mxu0 %v2802
    %2849 = vmatpush.bf16.msra.mxu0 %v2800
    %2850 = vmatpush.bf16.msra.mxu0 %v2798
    %2851 = vmatpush.bf16.msra.mxu0 %v2796
    %2852 = vmatpush.bf16.msra.mxu0 %v2794
    %2853 = vmatmul.bf16.gmra.mxu0 %v2689
    %v2854 = vpop.f32.mrf.mxu0
    %v2855 = vadd.f32 %v2718, %v2854
    %v2856 = vpop.f32.mrf.mxu0
    %2857 = vdwg.mxu0
    %2858 = vmatpush.bf16.msra.mxu0 0
    %2859 = vmatpush.bf16.msra.mxu0 0
    %2860 = vmatpush.bf16.msra.mxu0 0
    %2861 = vmatpush.bf16.msra.mxu0 0
    %2862 = vmatpush.bf16.msra.mxu0 %v2816
    %2863 = vmatpush.bf16.msra.mxu0 %v2814
    %2864 = vmatpush.bf16.msra.mxu0 %v2812
    %2865 = vmatpush.bf16.msra.mxu0 %v2810
    %2866 = vmatmul.bf16.gmra.mxu0 %v2843
    %v2867 = vpop.f32.mrf.mxu0
    %v2868 = vadd.f32 %v2855, %v2867
    %v2869 = vpop.f32.mrf.mxu0
    %2870 = vdwg.mxu0
    %2871 = vmatpush.bf16.msra.mxu0 %v2809
    %2872 = vmatpush.bf16.msra.mxu0 %v2807
    %2873 = vmatpush.bf16.msra.mxu0 %v2805
    %2874 = vmatpush.bf16.msra.mxu0 %v2803
    %2875 = vmatpush.bf16.msra.mxu0 %v2801
    %2876 = vmatpush.bf16.msra.mxu0 %v2799
    %2877 = vmatpush.bf16.msra.mxu0 %v2797
    %2878 = vmatpush.bf16.msra.mxu0 %v2795
    %2879 = vmatmul.bf16.gmra.mxu0 %v2689
    %v2880 = vpop.f32.mrf.mxu0
    %v2881 = vadd.f32 %v2719, %v2880
    %v2882 = vpop.f32.mrf.mxu0
    %2883 = vdwg.mxu0
    %2884 = vmatpush.bf16.msra.mxu0 0
    %2885 = vmatpush.bf16.msra.mxu0 0
    %2886 = vmatpush.bf16.msra.mxu0 0
    %2887 = vmatpush.bf16.msra.mxu0 0
    %2888 = vmatpush.bf16.msra.mxu0 %v2817
    %2889 = vmatpush.bf16.msra.mxu0 %v2815
    %2890 = vmatpush.bf16.msra.mxu0 %v2813
    %2891 = vmatpush.bf16.msra.mxu0 %v2811
    %2892 = vmatmul.bf16.gmra.mxu0 %v2843
    %v2893 = vpop.f32.mrf.mxu0
    %v2894 = vadd.f32 %v2881, %v2893
    %v2895 = vpop.f32.mrf.mxu0
    %2896 = vdwg.mxu0
    %v2897 = vmax.f32 %v2868, 0.0
    %v2898 = vmax.f32 %v2894, 0.0
    %v2899 = vpack.c.bf16 %v2898, %v2897
    %v2900 = vld [vmem:[%s6] ss:$0 sm:$0xff]
    %v2901 = vld [vmem:[%s2] sm:$0xf]
    %v2902 = vld [vmem:[%s2 + $0x4] sm:$0xf]
    %v2903 = vld [vmem:[%s2 + $0x8] sm:$0xf]
    %v2904 = vld [vmem:[%s2 + $0xc] sm:$0xf]
    %v2905 = vld [vmem:[%s2 + $0x10] sm:$0xf]
    %v2906 = vld [vmem:[%s2 + $0x14] sm:$0xf]
    %v2907 = vld [vmem:[%s2 + $0x18] sm:$0xf]
    %v2908 = vld [vmem:[%s2 + $0x1c] sm:$0xf]
    %v2909 = vld [vmem:[%s2 + $0x20] sm:$0xf]
    %v2910 = vld [vmem:[%s2 + $0x24] sm:$0xf]
    %v2911 = vld [vmem:[%s2 + $0x28] sm:$0xf]
    %v2912 = vld [vmem:[%s2 + $0x2c] sm:$0xf]
    %v2913 = vld [vmem:[%s2 + $0x30] sm:$0xf]
    %v2914 = vld [vmem:[%s2 + $0x34] sm:$0xf]
    %v2915 = vld [vmem:[%s2 + $0x38] sm:$0xf]
    %v2916 = vld [vmem:[%s2 + $0x3c] sm:$0xf]
    %v2917 = vld [vmem:[%s2 + $0x40] sm:$0xf]
    %v2918 = vld [vmem:[%s2 + $0x44] sm:$0xf]
    %v2919 = vld [vmem:[%s2 + $0x48] sm:$0xf]
    %v2920 = vld [vmem:[%s2 + $0x4c] sm:$0xf]
    %v2921 = vld [vmem:[%s2 + $0x50] sm:$0xf]
    %v2922 = vld [vmem:[%s2 + $0x54] sm:$0xf]
    %v2923 = vld [vmem:[%s2 + $0x58] sm:$0xf]
    %v2924 = vld [vmem:[%s2 + $0x5c] sm:$0xf]
    %v2949 = vunpack.c.l.b16 %v2901
    %v2950 = vunpack.c.l.b16 %v2902
    %v2951 = vunpack.c.l.b16 %v2903
    %v2952 = vunpack.c.l.b16 %v2904
    %v2953 = vunpack.c.l.b16 %v2905
    %v2954 = vunpack.c.l.b16 %v2906
    %v2955 = vunpack.c.l.b16 %v2907
    %v2956 = vunpack.c.l.b16 %v2908
    %v2957 = vunpack.c.l.b16 %v2909
    %v2958 = vunpack.c.l.b16 %v2910
    %v2959 = vunpack.c.l.b16 %v2911
    %v2960 = vunpack.c.l.b16 %v2912
    %v2961 = vunpack.c.l.b16 %v2913
    %v2962 = vunpack.c.l.b16 %v2914
    %v2963 = vunpack.c.l.b16 %v2915
    %v2964 = vunpack.c.l.b16 %v2916
    %v2965 = vunpack.c.l.b16 %v2917
    %v2966 = vunpack.c.l.b16 %v2918
    %v2967 = vunpack.c.l.b16 %v2919
    %v2968 = vunpack.c.l.b16 %v2920
    %v2969 = vunpack.c.l.b16 %v2921
    %v2970 = vunpack.c.l.b16 %v2922
    %v2971 = vunpack.c.l.b16 %v2923
    %v2972 = vunpack.c.l.b16 %v2924
    %v2973 = vpack.c.b16 %v2950, %v2949
    %v2974 = vpack.c.b16 %v2952, %v2951
    %v2975 = vpack.c.b16 %v2954, %v2953
    %v2976 = vpack.c.b16 %v2956, %v2955
    %v2977 = vpack.c.b16 %v2958, %v2957
    %v2978 = vpack.c.b16 %v2960, %v2959
    %v2979 = vpack.c.b16 %v2962, %v2961
    %v2980 = vpack.c.b16 %v2964, %v2963
    %v2981 = vpack.c.b16 %v2966, %v2965
    %v2982 = vpack.c.b16 %v2968, %v2967
    %v2983 = vpack.c.b16 %v2970, %v2969
    %v2984 = vpack.c.b16 %v2972, %v2971
    %2997 = vmatpush.bf16.msra.mxu0 %v2980
    %2998 = vmatpush.bf16.msra.mxu0 %v2979
    %2999 = vmatpush.bf16.msra.mxu0 %v2978
    %3000 = vmatpush.bf16.msra.mxu0 %v2977
    %3001 = vmatpush.bf16.msra.mxu0 %v2976
    %3002 = vmatpush.bf16.msra.mxu0 %v2975
    %3003 = vmatpush.bf16.msra.mxu0 %v2974
    %3004 = vmatpush.bf16.msra.mxu0 %v2973
    %3005 = vmatmul.bf16.gmra.mxu0 %v1512
    %v3006 = vpop.f32.mrf.mxu0
    %v3007 = vadd.f32 0.0, %v3006
    %v3008 = vpop.f32.mrf.mxu0
    %3009 = vdwg.mxu0
    %3010 = vmatpush.bf16.msra.mxu0 0
    %3011 = vmatpush.bf16.msra.mxu0 0
    %3012 = vmatpush.bf16.msra.mxu0 0
    %3013 = vmatpush.bf16.msra.mxu0 0
    %3014 = vmatpush.bf16.msra.mxu0 %v2984
    %3015 = vmatpush.bf16.msra.mxu0 %v2983
    %3016 = vmatpush.bf16.msra.mxu0 %v2982
    %3017 = vmatpush.bf16.msra.mxu0 %v2981
    %3018 = vmatmul.bf16.gmra.mxu0 %v1588
    %v3019 = vpop.f32.mrf.mxu0
    %v3020 = vadd.f32 %v3007, %v3019
    %v3021 = vpop.f32.mrf.mxu0
    %3022 = vdwg.mxu0
    %v3023 = vadd.f32 %v2900, %v3020
    %v3024 = vld [vmem:[%s2 + $0x60] sm:$0xf]
    %v3025 = vld [vmem:[%s2 + $0x64] sm:$0xf]
    %v3026 = vld [vmem:[%s2 + $0x68] sm:$0xf]
    %v3027 = vld [vmem:[%s2 + $0x6c] sm:$0xf]
    %v3028 = vld [vmem:[%s2 + $0x70] sm:$0xf]
    %v3029 = vld [vmem:[%s2 + $0x74] sm:$0xf]
    %v3030 = vld [vmem:[%s2 + $0x78] sm:$0xf]
    %v3031 = vld [vmem:[%s2 + $0x7c] sm:$0xf]
    %v3032 = vld [vmem:[%s2 + $0x80] sm:$0xf]
    %v3033 = vld [vmem:[%s2 + $0x84] sm:$0xf]
    %v3034 = vld [vmem:[%s2 + $0x88] sm:$0xf]
    %v3035 = vld [vmem:[%s2 + $0x8c] sm:$0xf]
    %v3036 = vld [vmem:[%s2 + $0x90] sm:$0xf]
    %v3037 = vld [vmem:[%s2 + $0x94] sm:$0xf]
    %v3038 = vld [vmem:[%s2 + $0x98] sm:$0xf]
    %v3039 = vld [vmem:[%s2 + $0x9c] sm:$0xf]
    %v3040 = vld [vmem:[%s2 + $0xa0] sm:$0xf]
    %v3041 = vld [vmem:[%s2 + $0xa4] sm:$0xf]
    %v3042 = vld [vmem:[%s2 + $0xa8] sm:$0xf]
    %v3043 = vld [vmem:[%s2 + $0xac] sm:$0xf]
    %v3044 = vld [vmem:[%s2 + $0xb0] sm:$0xf]
    %v3045 = vld [vmem:[%s2 + $0xb4] sm:$0xf]
    %v3046 = vld [vmem:[%s2 + $0xb8] sm:$0xf]
    %v3047 = vld [vmem:[%s2 + $0xbc] sm:$0xf]
    %v3072 = vunpack.c.l.b16 %v3024
    %v3073 = vunpack.c.l.b16 %v3025
    %v3074 = vunpack.c.l.b16 %v3026
    %v3075 = vunpack.c.l.b16 %v3027
    %v3076 = vunpack.c.l.b16 %v3028
    %v3077 = vunpack.c.l.b16 %v3029
    %v3078 = vunpack.c.l.b16 %v3030
    %v3079 = vunpack.c.l.b16 %v3031
    %v3080 = vunpack.c.l.b16 %v3032
    %v3081 = vunpack.c.l.b16 %v3033
    %v3082 = vunpack.c.l.b16 %v3034
    %v3083 = vunpack.c.l.b16 %v3035
    %v3084 = vunpack.c.l.b16 %v3036
    %v3085 = vunpack.c.l.b16 %v3037
    %v3086 = vunpack.c.l.b16 %v3038
    %v3087 = vunpack.c.l.b16 %v3039
    %v3088 = vunpack.c.l.b16 %v3040
    %v3089 = vunpack.c.l.b16 %v3041
    %v3090 = vunpack.c.l.b16 %v3042
    %v3091 = vunpack.c.l.b16 %v3043
    %v3092 = vunpack.c.l.b16 %v3044
    %v3093 = vunpack.c.l.b16 %v3045
    %v3094 = vunpack.c.l.b16 %v3046
    %v3095 = vunpack.c.l.b16 %v3047
    %v3096 = vpack.c.b16 %v3073, %v3072
    %v3097 = vpack.c.b16 %v3075, %v3074
    %v3098 = vpack.c.b16 %v3077, %v3076
    %v3099 = vpack.c.b16 %v3079, %v3078
    %v3100 = vpack.c.b16 %v3081, %v3080
    %v3101 = vpack.c.b16 %v3083, %v3082
    %v3102 = vpack.c.b16 %v3085, %v3084
    %v3103 = vpack.c.b16 %v3087, %v3086
    %v3104 = vpack.c.b16 %v3089, %v3088
    %v3105 = vpack.c.b16 %v3091, %v3090
    %v3106 = vpack.c.b16 %v3093, %v3092
    %v3107 = vpack.c.b16 %v3095, %v3094
    %3120 = vmatpush.bf16.msra.mxu0 %v3103
    %3121 = vmatpush.bf16.msra.mxu0 %v3102
    %3122 = vmatpush.bf16.msra.mxu0 %v3101
    %3123 = vmatpush.bf16.msra.mxu0 %v3100
    %3124 = vmatpush.bf16.msra.mxu0 %v3099
    %3125 = vmatpush.bf16.msra.mxu0 %v3098
    %3126 = vmatpush.bf16.msra.mxu0 %v3097
    %3127 = vmatpush.bf16.msra.mxu0 %v3096
    %3128 = vmatmul.bf16.gmra.mxu0 %v1644
    %v3129 = vpop.f32.mrf.mxu0
    %v3130 = vadd.f32 0.0, %v3129
    %v3131 = vpop.f32.mrf.mxu0
    %3132 = vdwg.mxu0
    %3133 = vmatpush.bf16.msra.mxu0 0
    %3134 = vmatpush.bf16.msra.mxu0 0
    %3135 = vmatpush.bf16.msra.mxu0 0
    %3136 = vmatpush.bf16.msra.mxu0 0
    %3137 = vmatpush.bf16.msra.mxu0 %v3107
    %3138 = vmatpush.bf16.msra.mxu0 %v3106
    %3139 = vmatpush.bf16.msra.mxu0 %v3105
    %3140 = vmatpush.bf16.msra.mxu0 %v3104
    %3141 = vmatmul.bf16.gmra.mxu0 %v1720
    %v3142 = vpop.f32.mrf.mxu0
    %v3143 = vadd.f32 %v3130, %v3142
    %v3144 = vpop.f32.mrf.mxu0
    %3145 = vdwg.mxu0
    %v3146 = vadd.f32 %v3023, %v3143
    %v3147 = vld [vmem:[%s2 + $0xc0] sm:$0xf]
    %v3148 = vld [vmem:[%s2 + $0xc4] sm:$0xf]
    %v3149 = vld [vmem:[%s2 + $0xc8] sm:$0xf]
    %v3150 = vld [vmem:[%s2 + $0xcc] sm:$0xf]
    %v3151 = vld [vmem:[%s2 + $0xd0] sm:$0xf]
    %v3152 = vld [vmem:[%s2 + $0xd4] sm:$0xf]
    %v3153 = vld [vmem:[%s2 + $0xd8] sm:$0xf]
    %v3154 = vld [vmem:[%s2 + $0xdc] sm:$0xf]
    %v3155 = vld [vmem:[%s2 + $0xe0] sm:$0xf]
    %v3156 = vld [vmem:[%s2 + $0xe4] sm:$0xf]
    %v3157 = vld [vmem:[%s2 + $0xe8] sm:$0xf]
    %v3158 = vld [vmem:[%s2 + $0xec] sm:$0xf]
    %v3159 = vld [vmem:[%s2 + $0xf0] sm:$0xf]
    %v3160 = vld [vmem:[%s2 + $0xf4] sm:$0xf]
    %v3161 = vld [vmem:[%s2 + $0xf8] sm:$0xf]
    %v3162 = vld [vmem:[%s2 + $0xfc] sm:$0xf]
    %v3163 = vld [vmem:[%s2 + $0x100] sm:$0xf]
    %v3164 = vld [vmem:[%s2 + $0x104] sm:$0xf]
    %v3165 = vld [vmem:[%s2 + $0x108] sm:$0xf]
    %v3166 = vld [vmem:[%s2 + $0x10c] sm:$0xf]
    %v3167 = vld [vmem:[%s2 + $0x110] sm:$0xf]
    %v3168 = vld [vmem:[%s2 + $0x114] sm:$0xf]
    %v3169 = vld [vmem:[%s2 + $0x118] sm:$0xf]
    %v3170 = vld [vmem:[%s2 + $0x11c] sm:$0xf]
    %v3195 = vunpack.c.l.b16 %v3147
    %v3196 = vunpack.c.l.b16 %v3148
    %v3197 = vunpack.c.l.b16 %v3149
    %v3198 = vunpack.c.l.b16 %v3150
    %v3199 = vunpack.c.l.b16 %v3151
    %v3200 = vunpack.c.l.b16 %v3152
    %v3201 = vunpack.c.l.b16 %v3153
    %v3202 = vunpack.c.l.b16 %v3154
    %v3203 = vunpack.c.l.b16 %v3155
    %v3204 = vunpack.c.l.b16 %v3156
    %v3205 = vunpack.c.l.b16 %v3157
    %v3206 = vunpack.c.l.b16 %v3158
    %v3207 = vunpack.c.l.b16 %v3159
    %v3208 = vunpack.c.l.b16 %v3160
    %v3209 = vunpack.c.l.b16 %v3161
    %v3210 = vunpack.c.l.b16 %v3162
    %v3211 = vunpack.c.l.b16 %v3163
    %v3212 = vunpack.c.l.b16 %v3164
    %v3213 = vunpack.c.l.b16 %v3165
    %v3214 = vunpack.c.l.b16 %v3166
    %v3215 = vunpack.c.l.b16 %v3167
    %v3216 = vunpack.c.l.b16 %v3168
    %v3217 = vunpack.c.l.b16 %v3169
    %v3218 = vunpack.c.l.b16 %v3170
    %v3219 = vpack.c.b16 %v3196, %v3195
    %v3220 = vpack.c.b16 %v3198, %v3197
    %v3221 = vpack.c.b16 %v3200, %v3199
    %v3222 = vpack.c.b16 %v3202, %v3201
    %v3223 = vpack.c.b16 %v3204, %v3203
    %v3224 = vpack.c.b16 %v3206, %v3205
    %v3225 = vpack.c.b16 %v3208, %v3207
    %v3226 = vpack.c.b16 %v3210, %v3209
    %v3227 = vpack.c.b16 %v3212, %v3211
    %v3228 = vpack.c.b16 %v3214, %v3213
    %v3229 = vpack.c.b16 %v3216, %v3215
    %v3230 = vpack.c.b16 %v3218, %v3217
    %3243 = vmatpush.bf16.msra.mxu0 %v3226
    %3244 = vmatpush.bf16.msra.mxu0 %v3225
    %3245 = vmatpush.bf16.msra.mxu0 %v3224
    %3246 = vmatpush.bf16.msra.mxu0 %v3223
    %3247 = vmatpush.bf16.msra.mxu0 %v3222
    %3248 = vmatpush.bf16.msra.mxu0 %v3221
    %3249 = vmatpush.bf16.msra.mxu0 %v3220
    %3250 = vmatpush.bf16.msra.mxu0 %v3219
    %3251 = vmatmul.bf16.gmra.mxu0 %v1776
    %v3252 = vpop.f32.mrf.mxu0
    %v3253 = vadd.f32 0.0, %v3252
    %v3254 = vpop.f32.mrf.mxu0
    %3255 = vdwg.mxu0
    %3256 = vmatpush.bf16.msra.mxu0 0
    %3257 = vmatpush.bf16.msra.mxu0 0
    %3258 = vmatpush.bf16.msra.mxu0 0
    %3259 = vmatpush.bf16.msra.mxu0 0
    %3260 = vmatpush.bf16.msra.mxu0 %v3230
    %3261 = vmatpush.bf16.msra.mxu0 %v3229
    %3262 = vmatpush.bf16.msra.mxu0 %v3228
    %3263 = vmatpush.bf16.msra.mxu0 %v3227
    %3264 = vmatmul.bf16.gmra.mxu0 %v1852
    %v3265 = vpop.f32.mrf.mxu0
    %v3266 = vadd.f32 %v3253, %v3265
    %v3267 = vpop.f32.mrf.mxu0
    %3268 = vdwg.mxu0
    %v3269 = vadd.f32 %v3146, %v3266
    %v3270 = vmax.f32 %v3269, 0.0
    %v3271 = vpack.c.bf16 %v3270, %v3270
    %v3272 = vld [vmem:[%s4] sm:$0xff]
    %v3273 = vld [vmem:[%s4 + $0x8] sm:$0xff]
    %v3274 = vld [vmem:[%s4 + $0x10] sm:$0xff]
    %v3275 = vld [vmem:[%s4 + $0x18] sm:$0xff]
    %v3276 = vld [vmem:[%s4 + $0x20] sm:$0xff]
    %v3277 = vld [vmem:[%s4 + $0x28] sm:$0xff]
    %v3278 = vld [vmem:[%s4 + $0x30] sm:$0xff]
    %v3279 = vld [vmem:[%s4 + $0x38] sm:$0xff]
    %v3280 = vld [vmem:[%s4 + $0x40] sm:$0xff]
    %v3281 = vld [vmem:[%s4 + $0x48] sm:$0xff]
    %v3282 = vld [vmem:[%s4 + $0x50] sm:$0xff]
    %v3283 = vld [vmem:[%s4 + $0x58] sm:$0xff]
    %s3284 = scalar_lea.vmem %s6, 16
    %v3285 = vld [vmem:[%s3284] ss:$8 sm:$0x3]
    %v3287 = vperm.slane %v3285, 0
    %v3288 = vperm.slane %v3285, 1
    %v3303 = vunpack.c.l.b16 %v3272
    %v3304 = vunpack.c.h.b16 %v3272
    %v3305 = vunpack.c.l.b16 %v3273
    %v3306 = vunpack.c.h.b16 %v3273
    %v3307 = vunpack.c.l.b16 %v3274
    %v3308 = vunpack.c.h.b16 %v3274
    %v3309 = vunpack.c.l.b16 %v3275
    %v3310 = vunpack.c.h.b16 %v3275
    %v3311 = vunpack.c.l.b16 %v3276
    %v3312 = vunpack.c.h.b16 %v3276
    %v3313 = vunpack.c.l.b16 %v3277
    %v3314 = vunpack.c.h.b16 %v3277
    %v3315 = vunpack.c.l.b16 %v3278
    %v3316 = vunpack.c.h.b16 %v3278
    %v3317 = vunpack.c.l.b16 %v3279
    %v3318 = vunpack.c.h.b16 %v3279
    %v3319 = vunpack.c.l.b16 %v3280
    %v3320 = vunpack.c.h.b16 %v3280
    %v3321 = vunpack.c.l.b16 %v3281
    %v3322 = vunpack.c.h.b16 %v3281
    %v3323 = vunpack.c.l.b16 %v3282
    %v3324 = vunpack.c.h.b16 %v3282
    %v3325 = vunpack.c.l.b16 %v3283
    %v3326 = vunpack.c.h.b16 %v3283
    %v3327 = vpack.c.b16 %v3305, %v3303
    %v3328 = vpack.c.b16 %v3306, %v3304
    %v3329 = vpack.c.b16 %v3309, %v3307
    %v3330 = vpack.c.b16 %v3310, %v3308
    %v3331 = vpack.c.b16 %v3313, %v3311
    %v3332 = vpack.c.b16 %v3314, %v3312
    %v3333 = vpack.c.b16 %v3317, %v3315
    %v3334 = vpack.c.b16 %v3318, %v3316
    %v3335 = vpack.c.b16 %v3321, %v3319
    %v3336 = vpack.c.b16 %v3322, %v3320
    %v3337 = vpack.c.b16 %v3325, %v3323
    %v3338 = vpack.c.b16 %v3326, %v3324
    %v3352 = vsel %vm769, %v3271, 0
    %3354 = vmatpush.bf16.msra.mxu0 0
    %3355 = vmatpush.bf16.msra.mxu0 0
    %3356 = vmatpush.bf16.msra.mxu0 %v3337
    %3357 = vmatpush.bf16.msra.mxu0 %v3335
    %3358 = vmatpush.bf16.msra.mxu0 %v3333
    %3359 = vmatpush.bf16.msra.mxu0 %v3331
    %3360 = vmatpush.bf16.msra.mxu0 %v3329
    %3361 = vmatpush.bf16.msra.mxu0 %v3327
    %3362 = vmatmul.bf16.gmra.mxu0 %v3352
    %v3363 = vpop.f32.mrf.mxu0
    %v3364 = vadd.f32 %v3287, %v3363
    %v3365 = vpop.f32.mrf.mxu0
    %3366 = vdwg.mxu0
    %3367 = vmatpush.bf16.msra.mxu0 0
    %3368 = vmatpush.bf16.msra.mxu0 0
    %3369 = vmatpush.bf16.msra.mxu0 %v3338
    %3370 = vmatpush.bf16.msra.mxu0 %v3336
    %3371 = vmatpush.bf16.msra.mxu0 %v3334
    %3372 = vmatpush.bf16.msra.mxu0 %v3332
    %3373 = vmatpush.bf16.msra.mxu0 %v3330
    %3374 = vmatpush.bf16.msra.mxu0 %v3328
    %3375 = vmatmul.bf16.gmra.mxu0 %v3352
    %v3376 = vpop.f32.mrf.mxu0
    %v3377 = vadd.f32 %v3288, %v3376
    %v3378 = vpop.f32.mrf.mxu0
    %3379 = vdwg.mxu0
    %v3380 = vmax.f32 %v3364, 0.0
    %v3381 = vmax.f32 %v3377, 0.0
    %v3382 = vpack.c.bf16 %v3381, %v3380
    %v3383 = vunpack.c.l.bf16 %v2899
    %v3384 = vunpack.c.h.bf16 %v2899
    %v3385 = vunpack.c.l.bf16 %v3382
    %v3386 = vunpack.c.h.bf16 %v3382
    %v3387 = vadd.f32 %v3383, %v3385
    %v3388 = vadd.f32 %v3384, %v3386
    %v3389 = vpack.c.bf16 %v3387, %v3387
    %v3390 = vpack.c.bf16 %v3388, %v3388
    %v3391 = vld [vmem:[%s1 + $0x150] sm:$0xf]
    %v3392 = vld [vmem:[%s1 + $0x158] sm:$0x3]
    %v3395 = vunpack.c.l.b16 %v3391
    %v3396 = vunpack.c.l.b16 %v3392
    %v3397 = vpack.c.b16 %v3396, %v3395
    %v3399 = vsel %vm2006, %v3397, 0
    %v3402 = vsel %vm2013, %v3389, 0
    %v3405 = vsel %vm2013, %v3390, 0
    %3407 = vmatpush.bf16.msra.mxu0 0
    %3408 = vmatpush.bf16.msra.mxu0 0
    %3409 = vmatpush.bf16.msra.mxu0 0
    %3410 = vmatpush.bf16.msra.mxu0 0
    %3411 = vmatpush.bf16.msra.mxu0 0
    %3412 = vmatpush.bf16.msra.mxu0 0
    %3413 = vmatpush.bf16.msra.mxu0 0
    %3414 = vmatpush.bf16.msra.mxu0 %v3402
    %3415 = vmatmul.bf16.gmra.mxu0 %v3399
    %v3416 = vpop.f32.mrf.mxu0
    %v3417 = vadd.f32 0.0, %v3416
    %v3418 = vpop.f32.mrf.mxu0
    %v3419 = vadd.f32 0.0, %v3418
    %3420 = vdwg.mxu0
    %3421 = vmatpush.bf16.msra.mxu0 0
    %3422 = vmatpush.bf16.msra.mxu0 0
    %3423 = vmatpush.bf16.msra.mxu0 0
    %3424 = vmatpush.bf16.msra.mxu0 0
    %3425 = vmatpush.bf16.msra.mxu0 0
    %3426 = vmatpush.bf16.msra.mxu0 0
    %3427 = vmatpush.bf16.msra.mxu0 0
    %3428 = vmatpush.bf16.msra.mxu0 %v3405
    %3429 = vmatmul.bf16.gmra.mxu0 %v3399
    %v3430 = vpop.f32.mrf.mxu0
    %v3431 = vadd.f32 0.0, %v3430
    %v3432 = vpop.f32.mrf.mxu0
    %v3433 = vadd.f32 0.0, %v3432
    %3434 = vdwg.mxu0
    %v3435 = vpack.c.bf16 %v3431, %v3417
    %v3436 = vpack.c.bf16 %v3433, %v3419
    %v3437 = vld [vmem:[%s6 + $0xd0] ss:$0 sm:$0xff]
    %v3438 = vld [vmem:[%s2 + $0x420] sm:$0xf]
    %v3439 = vld [vmem:[%s2 + $0x424] sm:$0xf]
    %v3440 = vld [vmem:[%s2 + $0x428] sm:$0xf]
    %v3441 = vld [vmem:[%s2 + $0x42c] sm:$0xf]
    %v3442 = vld [vmem:[%s2 + $0x430] sm:$0xf]
    %v3443 = vld [vmem:[%s2 + $0x434] sm:$0xf]
    %v3444 = vld [vmem:[%s2 + $0x438] sm:$0xf]
    %v3445 = vld [vmem:[%s2 + $0x43c] sm:$0xf]
    %v3446 = vld [vmem:[%s2 + $0x440] sm:$0xf]
    %v3447 = vld [vmem:[%s2 + $0x444] sm:$0xf]
    %v3448 = vld [vmem:[%s2 + $0x448] sm:$0xf]
    %v3449 = vld [vmem:[%s2 + $0x44c] sm:$0xf]
    %v3450 = vld [vmem:[%s2 + $0x450] sm:$0xf]
    %v3451 = vld [vmem:[%s2 + $0x454] sm:$0xf]
    %v3452 = vld [vmem:[%s2 + $0x458] sm:$0xf]
    %v3453 = vld [vmem:[%s2 + $0x45c] sm:$0xf]
    %v3454 = vld [vmem:[%s2 + $0x460] sm:$0xf]
    %v3455 = vld [vmem:[%s2 + $0x464] sm:$0xf]
    %v3456 = vld [vmem:[%s2 + $0x468] sm:$0xf]
    %v3457 = vld [vmem:[%s2 + $0x46c] sm:$0xf]
    %v3458 = vld [vmem:[%s2 + $0x470] sm:$0xf]
    %v3459 = vld [vmem:[%s2 + $0x474] sm:$0xf]
    %v3460 = vld [vmem:[%s2 + $0x478] sm:$0xf]
    %v3461 = vld [vmem:[%s2 + $0x47c] sm:$0xf]
    %v3463 = vunpack.c.l.b16 %v3435
    %v3464 = vunpack.c.h.b16 %v3435
    %v3465 = vpack.c.b16 %v3463, %v3463
    %v3466 = vpack.c.b16 %v3464, %v3464
    %v3492 = vunpack.c.l.b16 %v3438
    %v3493 = vunpack.c.l.b16 %v3439
    %v3494 = vunpack.c.l.b16 %v3440
    %v3495 = vunpack.c.l.b16 %v3441
    %v3496 = vunpack.c.l.b16 %v3442
    %v3497 = vunpack.c.l.b16 %v3443
    %v3498 = vunpack.c.l.b16 %v3444
    %v3499 = vunpack.c.l.b16 %v3445
    %v3500 = vunpack.c.l.b16 %v3446
    %v3501 = vunpack.c.l.b16 %v3447
    %v3502 = vunpack.c.l.b16 %v3448
    %v3503 = vunpack.c.l.b16 %v3449
    %v3504 = vunpack.c.l.b16 %v3450
    %v3505 = vunpack.c.l.b16 %v3451
    %v3506 = vunpack.c.l.b16 %v3452
    %v3507 = vunpack.c.l.b16 %v3453
    %v3508 = vunpack.c.l.b16 %v3454
    %v3509 = vunpack.c.l.b16 %v3455
    %v3510 = vunpack.c.l.b16 %v3456
    %v3511 = vunpack.c.l.b16 %v3457
    %v3512 = vunpack.c.l.b16 %v3458
    %v3513 = vunpack.c.l.b16 %v3459
    %v3514 = vunpack.c.l.b16 %v3460
    %v3515 = vunpack.c.l.b16 %v3461
    %v3516 = vpack.c.b16 %v3493, %v3492
    %v3517 = vpack.c.b16 %v3495, %v3494
    %v3518 = vpack.c.b16 %v3497, %v3496
    %v3519 = vpack.c.b16 %v3499, %v3498
    %v3520 = vpack.c.b16 %v3501, %v3500
    %v3521 = vpack.c.b16 %v3503, %v3502
    %v3522 = vpack.c.b16 %v3505, %v3504
    %v3523 = vpack.c.b16 %v3507, %v3506
    %v3524 = vpack.c.b16 %v3509, %v3508
    %v3525 = vpack.c.b16 %v3511, %v3510
    %v3526 = vpack.c.b16 %v3513, %v3512
    %v3527 = vpack.c.b16 %v3515, %v3514
    %v3541 = vsel %vm118, %v3466, 0
    %3543 = vmatpush.bf16.msra.mxu0 %v3523
    %3544 = vmatpush.bf16.msra.mxu0 %v3522
    %3545 = vmatpush.bf16.msra.mxu0 %v3521
    %3546 = vmatpush.bf16.msra.mxu0 %v3520
    %3547 = vmatpush.bf16.msra.mxu0 %v3519
    %3548 = vmatpush.bf16.msra.mxu0 %v3518
    %3549 = vmatpush.bf16.msra.mxu0 %v3517
    %3550 = vmatpush.bf16.msra.mxu0 %v3516
    %3551 = vmatmul.bf16.gmra.mxu0 %v3465
    %v3552 = vpop.f32.mrf.mxu0
    %v3553 = vadd.f32 0.0, %v3552
    %v3554 = vpop.f32.mrf.mxu0
    %3555 = vdwg.mxu0
    %3556 = vmatpush.bf16.msra.mxu0 0
    %3557 = vmatpush.bf16.msra.mxu0 0
    %3558 = vmatpush.bf16.msra.mxu0 0
    %3559 = vmatpush.bf16.msra.mxu0 0
    %3560 = vmatpush.bf16.msra.mxu0 %v3527
    %3561 = vmatpush.bf16.msra.mxu0 %v3526
    %3562 = vmatpush.bf16.msra.mxu0 %v3525
    %3563 = vmatpush.bf16.msra.mxu0 %v3524
    %3564 = vmatmul.bf16.gmra.mxu0 %v3541
    %v3565 = vpop.f32.mrf.mxu0
    %v3566 = vadd.f32 %v3553, %v3565
    %v3567 = vpop.f32.mrf.mxu0
    %3568 = vdwg.mxu0
    %v3569 = vadd.f32 %v3437, %v3566
    %v3570 = vld [vmem:[%s2 + $0x480] sm:$0xf]
    %v3571 = vld [vmem:[%s2 + $0x484] sm:$0xf]
    %v3572 = vld [vmem:[%s2 + $0x488] sm:$0xf]
    %v3573 = vld [vmem:[%s2 + $0x48c] sm:$0xf]
    %v3574 = vld [vmem:[%s2 + $0x490] sm:$0xf]
    %v3575 = vld [vmem:[%s2 + $0x494] sm:$0xf]
    %v3576 = vld [vmem:[%s2 + $0x498] sm:$0xf]
    %v3577 = vld [vmem:[%s2 + $0x49c] sm:$0xf]
    %v3578 = vld [vmem:[%s2 + $0x4a0] sm:$0xf]
    %v3579 = vld [vmem:[%s2 + $0x4a4] sm:$0xf]
    %v3580 = vld [vmem:[%s2 + $0x4a8] sm:$0xf]
    %v3581 = vld [vmem:[%s2 + $0x4ac] sm:$0xf]
    %v3582 = vld [vmem:[%s2 + $0x4b0] sm:$0xf]
    %v3583 = vld [vmem:[%s2 + $0x4b4] sm:$0xf]
    %v3584 = vld [vmem:[%s2 + $0x4b8] sm:$0xf]
    %v3585 = vld [vmem:[%s2 + $0x4bc] sm:$0xf]
    %v3586 = vld [vmem:[%s2 + $0x4c0] sm:$0xf]
    %v3587 = vld [vmem:[%s2 + $0x4c4] sm:$0xf]
    %v3588 = vld [vmem:[%s2 + $0x4c8] sm:$0xf]
    %v3589 = vld [vmem:[%s2 + $0x4cc] sm:$0xf]
    %v3590 = vld [vmem:[%s2 + $0x4d0] sm:$0xf]
    %v3591 = vld [vmem:[%s2 + $0x4d4] sm:$0xf]
    %v3592 = vld [vmem:[%s2 + $0x4d8] sm:$0xf]
    %v3593 = vld [vmem:[%s2 + $0x4dc] sm:$0xf]
    %v3594 = vrot.slane %v3465, 2
    %v3595 = vrot.slane %v3466, 2
    %v3621 = vunpack.c.l.b16 %v3570
    %v3622 = vunpack.c.l.b16 %v3571
    %v3623 = vunpack.c.l.b16 %v3572
    %v3624 = vunpack.c.l.b16 %v3573
    %v3625 = vunpack.c.l.b16 %v3574
    %v3626 = vunpack.c.l.b16 %v3575
    %v3627 = vunpack.c.l.b16 %v3576
    %v3628 = vunpack.c.l.b16 %v3577
    %v3629 = vunpack.c.l.b16 %v3578
    %v3630 = vunpack.c.l.b16 %v3579
    %v3631 = vunpack.c.l.b16 %v3580
    %v3632 = vunpack.c.l.b16 %v3581
    %v3633 = vunpack.c.l.b16 %v3582
    %v3634 = vunpack.c.l.b16 %v3583
    %v3635 = vunpack.c.l.b16 %v3584
    %v3636 = vunpack.c.l.b16 %v3585
    %v3637 = vunpack.c.l.b16 %v3586
    %v3638 = vunpack.c.l.b16 %v3587
    %v3639 = vunpack.c.l.b16 %v3588
    %v3640 = vunpack.c.l.b16 %v3589
    %v3641 = vunpack.c.l.b16 %v3590
    %v3642 = vunpack.c.l.b16 %v3591
    %v3643 = vunpack.c.l.b16 %v3592
    %v3644 = vunpack.c.l.b16 %v3593
    %v3645 = vpack.c.b16 %v3622, %v3621
    %v3646 = vpack.c.b16 %v3624, %v3623
    %v3647 = vpack.c.b16 %v3626, %v3625
    %v3648 = vpack.c.b16 %v3628, %v3627
    %v3649 = vpack.c.b16 %v3630, %v3629
    %v3650 = vpack.c.b16 %v3632, %v3631
    %v3651 = vpack.c.b16 %v3634, %v3633
    %v3652 = vpack.c.b16 %v3636, %v3635
    %v3653 = vpack.c.b16 %v3638, %v3637
    %v3654 = vpack.c.b16 %v3640, %v3639
    %v3655 = vpack.c.b16 %v3642, %v3641
    %v3656 = vpack.c.b16 %v3644, %v3643
    %v3670 = vsel %vm118, %v3595, 0
    %3672 = vmatpush.bf16.msra.mxu0 %v3652
    %3673 = vmatpush.bf16.msra.mxu0 %v3651
    %3674 = vmatpush.bf16.msra.mxu0 %v3650
    %3675 = vmatpush.bf16.msra.mxu0 %v3649
    %3676 = vmatpush.bf16.msra.mxu0 %v3648
    %3677 = vmatpush.bf16.msra.mxu0 %v3647
    %3678 = vmatpush.bf16.msra.mxu0 %v3646
    %3679 = vmatpush.bf16.msra.mxu0 %v3645
    %3680 = vmatmul.bf16.gmra.mxu0 %v3594
    %v3681 = vpop.f32.mrf.mxu0
    %v3682 = vadd.f32 0.0, %v3681
    %v3683 = vpop.f32.mrf.mxu0
    %3684 = vdwg.mxu0
    %3685 = vmatpush.bf16.msra.mxu0 0
    %3686 = vmatpush.bf16.msra.mxu0 0
    %3687 = vmatpush.bf16.msra.mxu0 0
    %3688 = vmatpush.bf16.msra.mxu0 0
    %3689 = vmatpush.bf16.msra.mxu0 %v3656
    %3690 = vmatpush.bf16.msra.mxu0 %v3655
    %3691 = vmatpush.bf16.msra.mxu0 %v3654
    %3692 = vmatpush.bf16.msra.mxu0 %v3653
    %3693 = vmatmul.bf16.gmra.mxu0 %v3670
    %v3694 = vpop.f32.mrf.mxu0
    %v3695 = vadd.f32 %v3682, %v3694
    %v3696 = vpop.f32.mrf.mxu0
    %3697 = vdwg.mxu0
    %v3698 = vadd.f32 %v3569, %v3695
    %v3699 = vld [vmem:[%s2 + $0x4e0] sm:$0xf]
    %v3700 = vld [vmem:[%s2 + $0x4e4] sm:$0xf]
    %v3701 = vld [vmem:[%s2 + $0x4e8] sm:$0xf]
    %v3702 = vld [vmem:[%s2 + $0x4ec] sm:$0xf]
    %v3703 = vld [vmem:[%s2 + $0x4f0] sm:$0xf]
    %v3704 = vld [vmem:[%s2 + $0x4f4] sm:$0xf]
    %v3705 = vld [vmem:[%s2 + $0x4f8] sm:$0xf]
    %v3706 = vld [vmem:[%s2 + $0x4fc] sm:$0xf]
    %v3707 = vld [vmem:[%s2 + $0x500] sm:$0xf]
    %v3708 = vld [vmem:[%s2 + $0x504] sm:$0xf]
    %v3709 = vld [vmem:[%s2 + $0x508] sm:$0xf]
    %v3710 = vld [vmem:[%s2 + $0x50c] sm:$0xf]
    %v3711 = vld [vmem:[%s2 + $0x510] sm:$0xf]
    %v3712 = vld [vmem:[%s2 + $0x514] sm:$0xf]
    %v3713 = vld [vmem:[%s2 + $0x518] sm:$0xf]
    %v3714 = vld [vmem:[%s2 + $0x51c] sm:$0xf]
    %v3715 = vld [vmem:[%s2 + $0x520] sm:$0xf]
    %v3716 = vld [vmem:[%s2 + $0x524] sm:$0xf]
    %v3717 = vld [vmem:[%s2 + $0x528] sm:$0xf]
    %v3718 = vld [vmem:[%s2 + $0x52c] sm:$0xf]
    %v3719 = vld [vmem:[%s2 + $0x530] sm:$0xf]
    %v3720 = vld [vmem:[%s2 + $0x534] sm:$0xf]
    %v3721 = vld [vmem:[%s2 + $0x538] sm:$0xf]
    %v3722 = vld [vmem:[%s2 + $0x53c] sm:$0xf]
    %v3724 = vunpack.c.l.b16 %v3436
    %v3725 = vunpack.c.h.b16 %v3436
    %v3726 = vpack.c.b16 %v3724, %v3724
    %v3727 = vpack.c.b16 %v3725, %v3725
    %v3753 = vunpack.c.l.b16 %v3699
    %v3754 = vunpack.c.l.b16 %v3700
    %v3755 = vunpack.c.l.b16 %v3701
    %v3756 = vunpack.c.l.b16 %v3702
    %v3757 = vunpack.c.l.b16 %v3703
    %v3758 = vunpack.c.l.b16 %v3704
    %v3759 = vunpack.c.l.b16 %v3705
    %v3760 = vunpack.c.l.b16 %v3706
    %v3761 = vunpack.c.l.b16 %v3707
    %v3762 = vunpack.c.l.b16 %v3708
    %v3763 = vunpack.c.l.b16 %v3709
    %v3764 = vunpack.c.l.b16 %v3710
    %v3765 = vunpack.c.l.b16 %v3711
    %v3766 = vunpack.c.l.b16 %v3712
    %v3767 = vunpack.c.l.b16 %v3713
    %v3768 = vunpack.c.l.b16 %v3714
    %v3769 = vunpack.c.l.b16 %v3715
    %v3770 = vunpack.c.l.b16 %v3716
    %v3771 = vunpack.c.l.b16 %v3717
    %v3772 = vunpack.c.l.b16 %v3718
    %v3773 = vunpack.c.l.b16 %v3719
    %v3774 = vunpack.c.l.b16 %v3720
    %v3775 = vunpack.c.l.b16 %v3721
    %v3776 = vunpack.c.l.b16 %v3722
    %v3777 = vpack.c.b16 %v3754, %v3753
    %v3778 = vpack.c.b16 %v3756, %v3755
    %v3779 = vpack.c.b16 %v3758, %v3757
    %v3780 = vpack.c.b16 %v3760, %v3759
    %v3781 = vpack.c.b16 %v3762, %v3761
    %v3782 = vpack.c.b16 %v3764, %v3763
    %v3783 = vpack.c.b16 %v3766, %v3765
    %v3784 = vpack.c.b16 %v3768, %v3767
    %v3785 = vpack.c.b16 %v3770, %v3769
    %v3786 = vpack.c.b16 %v3772, %v3771
    %v3787 = vpack.c.b16 %v3774, %v3773
    %v3788 = vpack.c.b16 %v3776, %v3775
    %v3802 = vsel %vm118, %v3727, 0
    %3804 = vmatpush.bf16.msra.mxu0 %v3784
    %3805 = vmatpush.bf16.msra.mxu0 %v3783
    %3806 = vmatpush.bf16.msra.mxu0 %v3782
    %3807 = vmatpush.bf16.msra.mxu0 %v3781
    %3808 = vmatpush.bf16.msra.mxu0 %v3780
    %3809 = vmatpush.bf16.msra.mxu0 %v3779
    %3810 = vmatpush.bf16.msra.mxu0 %v3778
    %3811 = vmatpush.bf16.msra.mxu0 %v3777
    %3812 = vmatmul.bf16.gmra.mxu0 %v3726
    %v3813 = vpop.f32.mrf.mxu0
    %v3814 = vadd.f32 0.0, %v3813
    %v3815 = vpop.f32.mrf.mxu0
    %3816 = vdwg.mxu0
    %3817 = vmatpush.bf16.msra.mxu0 0
    %3818 = vmatpush.bf16.msra.mxu0 0
    %3819 = vmatpush.bf16.msra.mxu0 0
    %3820 = vmatpush.bf16.msra.mxu0 0
    %3821 = vmatpush.bf16.msra.mxu0 %v3788
    %3822 = vmatpush.bf16.msra.mxu0 %v3787
    %3823 = vmatpush.bf16.msra.mxu0 %v3786
    %3824 = vmatpush.bf16.msra.mxu0 %v3785
    %3825 = vmatmul.bf16.gmra.mxu0 %v3802
    %v3826 = vpop.f32.mrf.mxu0
    %v3827 = vadd.f32 %v3814, %v3826
    %v3828 = vpop.f32.mrf.mxu0
    %3829 = vdwg.mxu0
    %v3830 = vadd.f32 %v3698, %v3827
    %v3831 = vmax.f32 %v3830, 0.0
    %v3832 = vpack.c.bf16 %v3831, %v3831
    %v3833 = vld [vmem:[%s2 + $0x540] sm:$0xf]
    %v3834 = vld [vmem:[%s2 + $0x544] sm:$0xf]
    %v3835 = vld [vmem:[%s2 + $0x548] sm:$0xf]
    %v3836 = vld [vmem:[%s2 + $0x54c] sm:$0xf]
    %v3837 = vld [vmem:[%s2 + $0x550] sm:$0xf]
    %v3838 = vld [vmem:[%s2 + $0x554] sm:$0xf]
    %v3839 = vld [vmem:[%s2 + $0x558] sm:$0xf]
    %v3840 = vld [vmem:[%s2 + $0x55c] sm:$0xf]
    %v3841 = vld [vmem:[%s2 + $0x560] sm:$0xf]
    %v3842 = vld [vmem:[%s2 + $0x564] sm:$0xf]
    %v3843 = vld [vmem:[%s2 + $0x568] sm:$0xf]
    %v3844 = vld [vmem:[%s2 + $0x56c] sm:$0xf]
    %v3845 = vld [vmem:[%s6 + $0xe0] ss:$0 sm:$0xff]
    %v3858 = vunpack.c.l.b16 %v3833
    %v3859 = vunpack.c.l.b16 %v3834
    %v3860 = vunpack.c.l.b16 %v3835
    %v3861 = vunpack.c.l.b16 %v3836
    %v3862 = vunpack.c.l.b16 %v3837
    %v3863 = vunpack.c.l.b16 %v3838
    %v3864 = vunpack.c.l.b16 %v3839
    %v3865 = vunpack.c.l.b16 %v3840
    %v3866 = vunpack.c.l.b16 %v3841
    %v3867 = vunpack.c.l.b16 %v3842
    %v3868 = vunpack.c.l.b16 %v3843
    %v3869 = vunpack.c.l.b16 %v3844
    %v3870 = vpack.c.b16 %v3859, %v3858
    %v3871 = vpack.c.b16 %v3861, %v3860
    %v3872 = vpack.c.b16 %v3863, %v3862
    %v3873 = vpack.c.b16 %v3865, %v3864
    %v3874 = vpack.c.b16 %v3867, %v3866
    %v3875 = vpack.c.b16 %v3869, %v3868
    %v3883 = vsel %vm769, %v3832, 0
    %3885 = vmatpush.bf16.msra.mxu0 0
    %3886 = vmatpush.bf16.msra.mxu0 0
    %3887 = vmatpush.bf16.msra.mxu0 %v3875
    %3888 = vmatpush.bf16.msra.mxu0 %v3874
    %3889 = vmatpush.bf16.msra.mxu0 %v3873
    %3890 = vmatpush.bf16.msra.mxu0 %v3872
    %3891 = vmatpush.bf16.msra.mxu0 %v3871
    %3892 = vmatpush.bf16.msra.mxu0 %v3870
    %3893 = vmatmul.bf16.gmra.mxu0 %v3883
    %v3894 = vpop.f32.mrf.mxu0
    %v3895 = vadd.f32 %v3845, %v3894
    %v3896 = vpop.f32.mrf.mxu0
    %3897 = vdwg.mxu0
    %v3898 = vmax.f32 %v3895, 0.0
    %v3899 = vpack.c.bf16 %v3898, %v3898
    %v3900 = vld [vmem:[%s1 + $0x160] sm:$0xf]
    %v3901 = vld [vmem:[%s1 + $0x168] sm:$0x3]
    %v3904 = vunpack.c.l.b16 %v3900
    %v3905 = vunpack.c.l.b16 %v3901
    %v3906 = vpack.c.b16 %v3905, %v3904
    %vm3907 = vcmask 31744
    %v3909 = vsel %vm3907, %v3906, 0
    %vm3911 = vcmask 1041408
    %v3913 = vsel %vm3911, %v3899, 0
    %3915 = vmatpush.bf16.msra.mxu0 0
    %3916 = vmatpush.bf16.msra.mxu0 0
    %3917 = vmatpush.bf16.msra.mxu0 0
    %3918 = vmatpush.bf16.msra.mxu0 0
    %3919 = vmatpush.bf16.msra.mxu0 0
    %3920 = vmatpush.bf16.msra.mxu0 0
    %3921 = vmatpush.bf16.msra.mxu0 0
    %3922 = vmatpush.bf16.msra.mxu0 %v3913
    %3923 = vmatmul.bf16.gmra.mxu0 %v3909
    %v3924 = vpop.f32.mrf.mxu0
    %v3925 = vadd.f32 0.0, %v3924
    %v3926 = vpop.f32.mrf.mxu0
    %v3927 = vadd.f32 0.0, %v3926
    %3928 = vdwg.mxu0
    %v3929 = vpack.c.bf16 %v3925, %v3925
    %v3930 = vpack.c.bf16 %v3927, %v3927
    %v3931 = vld [vmem:[%s6 + $0xf0] ss:$0 sm:$0xff]
    %v3932 = vld [vmem:[%s2 + $0x570] sm:$0xf]
    %v3933 = vld [vmem:[%s2 + $0x574] sm:$0xf]
    %v3934 = vld [vmem:[%s2 + $0x578] sm:$0xf]
    %v3935 = vld [vmem:[%s2 + $0x57c] sm:$0xf]
    %v3936 = vld [vmem:[%s2 + $0x580] sm:$0xf]
    %v3937 = vld [vmem:[%s2 + $0x584] sm:$0xf]
    %v3938 = vld [vmem:[%s2 + $0x588] sm:$0xf]
    %v3939 = vld [vmem:[%s2 + $0x58c] sm:$0xf]
    %v3940 = vld [vmem:[%s2 + $0x590] sm:$0xf]
    %v3941 = vld [vmem:[%s2 + $0x594] sm:$0xf]
    %v3942 = vld [vmem:[%s2 + $0x598] sm:$0xf]
    %v3943 = vld [vmem:[%s2 + $0x59c] sm:$0xf]
    %v3956 = vunpack.c.l.b16 %v3932
    %v3957 = vunpack.c.l.b16 %v3933
    %v3958 = vunpack.c.l.b16 %v3934
    %v3959 = vunpack.c.l.b16 %v3935
    %v3960 = vunpack.c.l.b16 %v3936
    %v3961 = vunpack.c.l.b16 %v3937
    %v3962 = vunpack.c.l.b16 %v3938
    %v3963 = vunpack.c.l.b16 %v3939
    %v3964 = vunpack.c.l.b16 %v3940
    %v3965 = vunpack.c.l.b16 %v3941
    %v3966 = vunpack.c.l.b16 %v3942
    %v3967 = vunpack.c.l.b16 %v3943
    %v3968 = vpack.c.b16 %v3957, %v3956
    %v3969 = vpack.c.b16 %v3959, %v3958
    %v3970 = vpack.c.b16 %v3961, %v3960
    %v3971 = vpack.c.b16 %v3963, %v3962
    %v3972 = vpack.c.b16 %v3965, %v3964
    %v3973 = vpack.c.b16 %v3967, %v3966
    %v3981 = vsel %vm769, %v3929, 0
    %3983 = vmatpush.bf16.msra.mxu0 0
    %3984 = vmatpush.bf16.msra.mxu0 0
    %3985 = vmatpush.bf16.msra.mxu0 %v3973
    %3986 = vmatpush.bf16.msra.mxu0 %v3972
    %3987 = vmatpush.bf16.msra.mxu0 %v3971
    %3988 = vmatpush.bf16.msra.mxu0 %v3970
    %3989 = vmatpush.bf16.msra.mxu0 %v3969
    %3990 = vmatpush.bf16.msra.mxu0 %v3968
    %3991 = vmatmul.bf16.gmra.mxu0 %v3981
    %v3992 = vpop.f32.mrf.mxu0
    %v3993 = vadd.f32 0.0, %v3992
    %v3994 = vpop.f32.mrf.mxu0
    %3995 = vdwg.mxu0
    %v3996 = vadd.f32 %v3931, %v3993
    %v3997 = vld [vmem:[%s2 + $0x5a0] sm:$0xf]
    %v3998 = vld [vmem:[%s2 + $0x5a4] sm:$0xf]
    %v3999 = vld [vmem:[%s2 + $0x5a8] sm:$0xf]
    %v4000 = vld [vmem:[%s2 + $0x5ac] sm:$0xf]
    %v4001 = vld [vmem:[%s2 + $0x5b0] sm:$0xf]
    %v4002 = vld [vmem:[%s2 + $0x5b4] sm:$0xf]
    %v4003 = vld [vmem:[%s2 + $0x5b8] sm:$0xf]
    %v4004 = vld [vmem:[%s2 + $0x5bc] sm:$0xf]
    %v4005 = vld [vmem:[%s2 + $0x5c0] sm:$0xf]
    %v4006 = vld [vmem:[%s2 + $0x5c4] sm:$0xf]
    %v4007 = vld [vmem:[%s2 + $0x5c8] sm:$0xf]
    %v4008 = vld [vmem:[%s2 + $0x5cc] sm:$0xf]
    %v4010 = vunpack.c.l.b16 %v3929
    %v4011 = vpack.c.b16 %v4010, %v4010
    %v4012 = vrot.slane %v4011, 2
    %v4025 = vunpack.c.l.b16 %v3997
    %v4026 = vunpack.c.l.b16 %v3998
    %v4027 = vunpack.c.l.b16 %v3999
    %v4028 = vunpack.c.l.b16 %v4000
    %v4029 = vunpack.c.l.b16 %v4001
    %v4030 = vunpack.c.l.b16 %v4002
    %v4031 = vunpack.c.l.b16 %v4003
    %v4032 = vunpack.c.l.b16 %v4004
    %v4033 = vunpack.c.l.b16 %v4005
    %v4034 = vunpack.c.l.b16 %v4006
    %v4035 = vunpack.c.l.b16 %v4007
    %v4036 = vunpack.c.l.b16 %v4008
    %v4037 = vpack.c.b16 %v4026, %v4025
    %v4038 = vpack.c.b16 %v4028, %v4027
    %v4039 = vpack.c.b16 %v4030, %v4029
    %v4040 = vpack.c.b16 %v4032, %v4031
    %v4041 = vpack.c.b16 %v4034, %v4033
    %v4042 = vpack.c.b16 %v4036, %v4035
    %v4050 = vsel %vm769, %v4012, 0
    %4052 = vmatpush.bf16.msra.mxu0 0
    %4053 = vmatpush.bf16.msra.mxu0 0
    %4054 = vmatpush.bf16.msra.mxu0 %v4042
    %4055 = vmatpush.bf16.msra.mxu0 %v4041
    %4056 = vmatpush.bf16.msra.mxu0 %v4040
    %4057 = vmatpush.bf16.msra.mxu0 %v4039
    %4058 = vmatpush.bf16.msra.mxu0 %v4038
    %4059 = vmatpush.bf16.msra.mxu0 %v4037
    %4060 = vmatmul.bf16.gmra.mxu0 %v4050
    %v4061 = vpop.f32.mrf.mxu0
    %v4062 = vadd.f32 0.0, %v4061
    %v4063 = vpop.f32.mrf.mxu0
    %4064 = vdwg.mxu0
    %v4065 = vadd.f32 %v3996, %v4062
    %v4066 = vld [vmem:[%s2 + $0x5d0] sm:$0xf]
    %v4067 = vld [vmem:[%s2 + $0x5d4] sm:$0xf]
    %v4068 = vld [vmem:[%s2 + $0x5d8] sm:$0xf]
    %v4069 = vld [vmem:[%s2 + $0x5dc] sm:$0xf]
    %v4070 = vld [vmem:[%s2 + $0x5e0] sm:$0xf]
    %v4071 = vld [vmem:[%s2 + $0x5e4] sm:$0xf]
    %v4072 = vld [vmem:[%s2 + $0x5e8] sm:$0xf]
    %v4073 = vld [vmem:[%s2 + $0x5ec] sm:$0xf]
    %v4074 = vld [vmem:[%s2 + $0x5f0] sm:$0xf]
    %v4075 = vld [vmem:[%s2 + $0x5f4] sm:$0xf]
    %v4076 = vld [vmem:[%s2 + $0x5f8] sm:$0xf]
    %v4077 = vld [vmem:[%s2 + $0x5fc] sm:$0xf]
    %v4090 = vunpack.c.l.b16 %v4066
    %v4091 = vunpack.c.l.b16 %v4067
    %v4092 = vunpack.c.l.b16 %v4068
    %v4093 = vunpack.c.l.b16 %v4069
    %v4094 = vunpack.c.l.b16 %v4070
    %v4095 = vunpack.c.l.b16 %v4071
    %v4096 = vunpack.c.l.b16 %v4072
    %v4097 = vunpack.c.l.b16 %v4073
    %v4098 = vunpack.c.l.b16 %v4074
    %v4099 = vunpack.c.l.b16 %v4075
    %v4100 = vunpack.c.l.b16 %v4076
    %v4101 = vunpack.c.l.b16 %v4077
    %v4102 = vpack.c.b16 %v4091, %v4090
    %v4103 = vpack.c.b16 %v4093, %v4092
    %v4104 = vpack.c.b16 %v4095, %v4094
    %v4105 = vpack.c.b16 %v4097, %v4096
    %v4106 = vpack.c.b16 %v4099, %v4098
    %v4107 = vpack.c.b16 %v4101, %v4100
    %v4115 = vsel %vm769, %v3930, 0
    %4117 = vmatpush.bf16.msra.mxu0 0
    %4118 = vmatpush.bf16.msra.mxu0 0
    %4119 = vmatpush.bf16.msra.mxu0 %v4107
    %4120 = vmatpush.bf16.msra.mxu0 %v4106
    %4121 = vmatpush.bf16.msra.mxu0 %v4105
    %4122 = vmatpush.bf16.msra.mxu0 %v4104
    %4123 = vmatpush.bf16.msra.mxu0 %v4103
    %4124 = vmatpush.bf16.msra.mxu0 %v4102
    %4125 = vmatmul.bf16.gmra.mxu0 %v4115
    %v4126 = vpop.f32.mrf.mxu0
    %v4127 = vadd.f32 0.0, %v4126
    %v4128 = vpop.f32.mrf.mxu0
    %4129 = vdwg.mxu0
    %v4130 = vadd.f32 %v4065, %v4127
    %v4131 = vmax.f32 %v4130, 0.0
    %v4132 = vpack.c.bf16 %v4131, %v4131
    %v4133 = vld [vmem:[%s2 + $0x600] sm:$0xf]
    %v4134 = vld [vmem:[%s2 + $0x604] sm:$0xf]
    %v4135 = vld [vmem:[%s2 + $0x608] sm:$0xf]
    %v4136 = vld [vmem:[%s2 + $0x60c] sm:$0xf]
    %v4137 = vld [vmem:[%s2 + $0x610] sm:$0xf]
    %v4138 = vld [vmem:[%s2 + $0x614] sm:$0xf]
    %v4139 = vld [vmem:[%s2 + $0x618] sm:$0xf]
    %v4140 = vld [vmem:[%s2 + $0x61c] sm:$0xf]
    %v4141 = vld [vmem:[%s2 + $0x620] sm:$0xf]
    %v4142 = vld [vmem:[%s2 + $0x624] sm:$0xf]
    %v4143 = vld [vmem:[%s2 + $0x628] sm:$0xf]
    %v4144 = vld [vmem:[%s2 + $0x62c] sm:$0xf]
    %v4145 = vld [vmem:[%s6 + $0x100] ss:$0 sm:$0xff]
    %v4158 = vunpack.c.l.b16 %v4133
    %v4159 = vunpack.c.l.b16 %v4134
    %v4160 = vunpack.c.l.b16 %v4135
    %v4161 = vunpack.c.l.b16 %v4136
    %v4162 = vunpack.c.l.b16 %v4137
    %v4163 = vunpack.c.l.b16 %v4138
    %v4164 = vunpack.c.l.b16 %v4139
    %v4165 = vunpack.c.l.b16 %v4140
    %v4166 = vunpack.c.l.b16 %v4141
    %v4167 = vunpack.c.l.b16 %v4142
    %v4168 = vunpack.c.l.b16 %v4143
    %v4169 = vunpack.c.l.b16 %v4144
    %v4170 = vpack.c.b16 %v4159, %v4158
    %v4171 = vpack.c.b16 %v4161, %v4160
    %v4172 = vpack.c.b16 %v4163, %v4162
    %v4173 = vpack.c.b16 %v4165, %v4164
    %v4174 = vpack.c.b16 %v4167, %v4166
    %v4175 = vpack.c.b16 %v4169, %v4168
    %v4183 = vsel %vm769, %v4132, 0
    %4185 = vmatpush.bf16.msra.mxu0 0
    %4186 = vmatpush.bf16.msra.mxu0 0
    %4187 = vmatpush.bf16.msra.mxu0 %v4175
    %4188 = vmatpush.bf16.msra.mxu0 %v4174
    %4189 = vmatpush.bf16.msra.mxu0 %v4173
    %4190 = vmatpush.bf16.msra.mxu0 %v4172
    %4191 = vmatpush.bf16.msra.mxu0 %v4171
    %4192 = vmatpush.bf16.msra.mxu0 %v4170
    %4193 = vmatmul.bf16.gmra.mxu0 %v4183
    %v4194 = vpop.f32.mrf.mxu0
    %v4195 = vadd.f32 %v4145, %v4194
    %v4196 = vpop.f32.mrf.mxu0
    %4197 = vdwg.mxu0
    %v4198 = vmax.f32 %v4195, 0.0
    %v4199 = vpack.c.bf16 %v4198, %v4198
    %v4200 = vld [vmem:[%s5] sm:$0xff]
    %v4201 = vld [vmem:[%s5 + $0x8] sm:$0xff]
    %v4202 = vld [vmem:[%s5 + $0x10] sm:$0xff]
    %v4203 = vld [vmem:[%s5 + $0x18] sm:$0xff]
    %v4204 = vld [vmem:[%s5 + $0x20] sm:$0xff]
    %v4205 = vld [vmem:[%s5 + $0x28] sm:$0xff]
    %v4206 = vld [vmem:[%s5 + $0x30] sm:$0xff]
    %v4207 = vld [vmem:[%s5 + $0x38] sm:$0xff]
    %v4208 = vld [vmem:[%s5 + $0x40] sm:$0xff]
    %v4209 = vld [vmem:[%s5 + $0x48] sm:$0xff]
    %v4210 = vld [vmem:[%s5 + $0x50] sm:$0xff]
    %v4211 = vld [vmem:[%s5 + $0x58] sm:$0xff]
    %s4212 = scalar_lea.vmem %s6, 32
    %v4213 = vld [vmem:[%s4212] ss:$8 sm:$0x3]
    %v4215 = vperm.slane %v4213, 0
    %v4216 = vperm.slane %v4213, 1
    %v4231 = vunpack.c.l.b16 %v4200
    %v4232 = vunpack.c.h.b16 %v4200
    %v4233 = vunpack.c.l.b16 %v4201
    %v4234 = vunpack.c.h.b16 %v4201
    %v4235 = vunpack.c.l.b16 %v4202
    %v4236 = vunpack.c.h.b16 %v4202
    %v4237 = vunpack.c.l.b16 %v4203
    %v4238 = vunpack.c.h.b16 %v4203
    %v4239 = vunpack.c.l.b16 %v4204
    %v4240 = vunpack.c.h.b16 %v4204
    %v4241 = vunpack.c.l.b16 %v4205
    %v4242 = vunpack.c.h.b16 %v4205
    %v4243 = vunpack.c.l.b16 %v4206
    %v4244 = vunpack.c.h.b16 %v4206
    %v4245 = vunpack.c.l.b16 %v4207
    %v4246 = vunpack.c.h.b16 %v4207
    %v4247 = vunpack.c.l.b16 %v4208
    %v4248 = vunpack.c.h.b16 %v4208
    %v4249 = vunpack.c.l.b16 %v4209
    %v4250 = vunpack.c.h.b16 %v4209
    %v4251 = vunpack.c.l.b16 %v4210
    %v4252 = vunpack.c.h.b16 %v4210
    %v4253 = vunpack.c.l.b16 %v4211
    %v4254 = vunpack.c.h.b16 %v4211
    %v4255 = vpack.c.b16 %v4233, %v4231
    %v4256 = vpack.c.b16 %v4234, %v4232
    %v4257 = vpack.c.b16 %v4237, %v4235
    %v4258 = vpack.c.b16 %v4238, %v4236
    %v4259 = vpack.c.b16 %v4241, %v4239
    %v4260 = vpack.c.b16 %v4242, %v4240
    %v4261 = vpack.c.b16 %v4245, %v4243
    %v4262 = vpack.c.b16 %v4246, %v4244
    %v4263 = vpack.c.b16 %v4249, %v4247
    %v4264 = vpack.c.b16 %v4250, %v4248
    %v4265 = vpack.c.b16 %v4253, %v4251
    %v4266 = vpack.c.b16 %v4254, %v4252
    %v4280 = vsel %vm769, %v4199, 0
    %4282 = vmatpush.bf16.msra.mxu0 0
    %4283 = vmatpush.bf16.msra.mxu0 0
    %4284 = vmatpush.bf16.msra.mxu0 %v4265
    %4285 = vmatpush.bf16.msra.mxu0 %v4263
    %4286 = vmatpush.bf16.msra.mxu0 %v4261
    %4287 = vmatpush.bf16.msra.mxu0 %v4259
    %4288 = vmatpush.bf16.msra.mxu0 %v4257
    %4289 = vmatpush.bf16.msra.mxu0 %v4255
    %4290 = vmatmul.bf16.gmra.mxu0 %v4280
    %v4291 = vpop.f32.mrf.mxu0
    %v4292 = vadd.f32 %v4215, %v4291
    %v4293 = vpop.f32.mrf.mxu0
    %4294 = vdwg.mxu0
    %4295 = vmatpush.bf16.msra.mxu0 0
    %4296 = vmatpush.bf16.msra.mxu0 0
    %4297 = vmatpush.bf16.msra.mxu0 %v4266
    %4298 = vmatpush.bf16.msra.mxu0 %v4264
    %4299 = vmatpush.bf16.msra.mxu0 %v4262
    %4300 = vmatpush.bf16.msra.mxu0 %v4260
    %4301 = vmatpush.bf16.msra.mxu0 %v4258
    %4302 = vmatpush.bf16.msra.mxu0 %v4256
    %4303 = vmatmul.bf16.gmra.mxu0 %v4280
    %v4304 = vpop.f32.mrf.mxu0
    %v4305 = vadd.f32 %v4216, %v4304
    %v4306 = vpop.f32.mrf.mxu0
    %4307 = vdwg.mxu0
    %v4308 = vmax.f32 %v4292, 0.0
    %v4309 = vmax.f32 %v4305, 0.0
    %v4310 = vpack.c.bf16 %v4308, %v4308
    %v4311 = vpack.c.bf16 %v4309, %v4309
    %v4312 = vld [vmem:[%s3] sm:$0xf]
    %v4313 = vld [vmem:[%s3 + $0x4] sm:$0xf]
    %v4314 = vld [vmem:[%s3 + $0x8] sm:$0xf]
    %v4315 = vld [vmem:[%s3 + $0xc] sm:$0xf]
    %v4316 = vld [vmem:[%s3 + $0x10] sm:$0xf]
    %v4317 = vld [vmem:[%s3 + $0x14] sm:$0xf]
    %v4318 = vld [vmem:[%s3 + $0x18] sm:$0xf]
    %v4319 = vld [vmem:[%s3 + $0x1c] sm:$0xf]
    %v4320 = vld [vmem:[%s3 + $0x20] sm:$0xf]
    %v4321 = vld [vmem:[%s3 + $0x24] sm:$0xf]
    %v4322 = vld [vmem:[%s3 + $0x28] sm:$0xf]
    %v4323 = vld [vmem:[%s3 + $0x2c] sm:$0xf]
    %v4324 = vld [vmem:[%s3 + $0x30] sm:$0xf]
    %v4325 = vld [vmem:[%s3 + $0x34] sm:$0xf]
    %v4326 = vld [vmem:[%s3 + $0x38] sm:$0xf]
    %v4327 = vld [vmem:[%s3 + $0x3c] sm:$0xf]
    %v4328 = vld [vmem:[%s3 + $0x40] sm:$0xf]
    %v4329 = vld [vmem:[%s3 + $0x44] sm:$0xf]
    %v4330 = vld [vmem:[%s3 + $0x48] sm:$0xf]
    %v4331 = vld [vmem:[%s3 + $0x4c] sm:$0xf]
    %v4332 = vld [vmem:[%s3 + $0x50] sm:$0xf]
    %v4333 = vld [vmem:[%s3 + $0x54] sm:$0xf]
    %v4334 = vld [vmem:[%s3 + $0x58] sm:$0xf]
    %v4335 = vld [vmem:[%s3 + $0x5c] sm:$0xf]
    %v4336 = vld [vmem:[%s3 + $0x60] sm:$0xf]
    %v4337 = vld [vmem:[%s3 + $0x64] sm:$0xf]
    %v4338 = vld [vmem:[%s3 + $0x68] sm:$0xf]
    %v4339 = vld [vmem:[%s3 + $0x6c] sm:$0xf]
    %v4340 = vld [vmem:[%s3 + $0x70] sm:$0xf]
    %v4341 = vld [vmem:[%s3 + $0x74] sm:$0xf]
    %v4342 = vld [vmem:[%s3 + $0x78] sm:$0xf]
    %v4343 = vld [vmem:[%s3 + $0x7c] sm:$0xf]
    %v4376 = vunpack.c.l.b16 %v4312
    %v4377 = vunpack.c.l.b16 %v4313
    %v4378 = vunpack.c.l.b16 %v4314
    %v4379 = vunpack.c.l.b16 %v4315
    %v4380 = vunpack.c.l.b16 %v4316
    %v4381 = vunpack.c.l.b16 %v4317
    %v4382 = vunpack.c.l.b16 %v4318
    %v4383 = vunpack.c.l.b16 %v4319
    %v4384 = vunpack.c.l.b16 %v4320
    %v4385 = vunpack.c.l.b16 %v4321
    %v4386 = vunpack.c.l.b16 %v4322
    %v4387 = vunpack.c.l.b16 %v4323
    %v4388 = vunpack.c.l.b16 %v4324
    %v4389 = vunpack.c.l.b16 %v4325
    %v4390 = vunpack.c.l.b16 %v4326
    %v4391 = vunpack.c.l.b16 %v4327
    %v4392 = vunpack.c.l.b16 %v4328
    %v4393 = vunpack.c.l.b16 %v4329
    %v4394 = vunpack.c.l.b16 %v4330
    %v4395 = vunpack.c.l.b16 %v4331
    %v4396 = vunpack.c.l.b16 %v4332
    %v4397 = vunpack.c.l.b16 %v4333
    %v4398 = vunpack.c.l.b16 %v4334
    %v4399 = vunpack.c.l.b16 %v4335
    %v4400 = vunpack.c.l.b16 %v4336
    %v4401 = vunpack.c.l.b16 %v4337
    %v4402 = vunpack.c.l.b16 %v4338
    %v4403 = vunpack.c.l.b16 %v4339
    %v4404 = vunpack.c.l.b16 %v4340
    %v4405 = vunpack.c.l.b16 %v4341
    %v4406 = vunpack.c.l.b16 %v4342
    %v4407 = vunpack.c.l.b16 %v4343
    %v4408 = vpack.c.b16 %v4377, %v4376
    %v4409 = vpack.c.b16 %v4379, %v4378
    %v4410 = vpack.c.b16 %v4381, %v4380
    %v4411 = vpack.c.b16 %v4383, %v4382
    %v4412 = vpack.c.b16 %v4385, %v4384
    %v4413 = vpack.c.b16 %v4387, %v4386
    %v4414 = vpack.c.b16 %v4389, %v4388
    %v4415 = vpack.c.b16 %v4391, %v4390
    %v4416 = vpack.c.b16 %v4393, %v4392
    %v4417 = vpack.c.b16 %v4395, %v4394
    %v4418 = vpack.c.b16 %v4397, %v4396
    %v4419 = vpack.c.b16 %v4399, %v4398
    %v4420 = vpack.c.b16 %v4401, %v4400
    %v4421 = vpack.c.b16 %v4403, %v4402
    %v4422 = vpack.c.b16 %v4405, %v4404
    %v4423 = vpack.c.b16 %v4407, %v4406
    %4440 = vmatpush.bf16.msra.mxu0 %v4415
    %4441 = vmatpush.bf16.msra.mxu0 %v4414
    %4442 = vmatpush.bf16.msra.mxu0 %v4413
    %4443 = vmatpush.bf16.msra.mxu0 %v4412
    %4444 = vmatpush.bf16.msra.mxu0 %v4411
    %4445 = vmatpush.bf16.msra.mxu0 %v4410
    %4446 = vmatpush.bf16.msra.mxu0 %v4409
    %4447 = vmatpush.bf16.msra.mxu0 %v4408
    %4448 = vmatmul.bf16.gmra.mxu0 %v4310
    %v4449 = vpop.f32.mrf.mxu0
    %v4450 = vadd.f32 0.0, %v4449
    %v4451 = vpop.f32.mrf.mxu0
    %4452 = vdwg.mxu0
    %4453 = vmatpush.bf16.msra.mxu0 %v4423
    %4454 = vmatpush.bf16.msra.mxu0 %v4422
    %4455 = vmatpush.bf16.msra.mxu0 %v4421
    %4456 = vmatpush.bf16.msra.mxu0 %v4420
    %4457 = vmatpush.bf16.msra.mxu0 %v4419
    %4458 = vmatpush.bf16.msra.mxu0 %v4418
    %4459 = vmatpush.bf16.msra.mxu0 %v4417
    %4460 = vmatpush.bf16.msra.mxu0 %v4416
    %4461 = vmatmul.bf16.gmra.mxu0 %v4311
    %v4462 = vpop.f32.mrf.mxu0
    %v4463 = vadd.f32 %v4450, %v4462
    %v4464 = vpop.f32.mrf.mxu0
    %4465 = vdwg.mxu0
    %v4466 = vld [vmem:[%s6 + $0x30] ss:$0 sm:$0xff]
    %v4468 = vrot.slane %v4463, 1
    %v4470 = vadd.f32 %v4463, %v4468
    %v4471 = vadd.f32 %v4470, %v4466
    %v4472 = vsub.f32 0.0, %v4471
    %v4473 = vmul.f32 %v4472, 1.442695
    %v4474 = vpow.pop %v4473
    %v4475 = vadd.f32 %v4474, 1.0
    %v4476 = vrcp.pop %v4475
    %v4477 = vmul.f32 %v4475, %v4476
    %v4478 = vsub.f32 1.0, %v4477
    %v4479 = vmul.f32 %v4476, %v4478
    %v4480 = vadd.f32 %v4476, %v4479
    %vm4481 = vweird.f32 %v4475
    %vm4482 = vweird.f32 %v4476
    %vm4483 = vmor %vm4481, %vm4482
    %v4484 = vsel %vm4483, %v4476, %v4480
    %v4485 = vand.u32 2147483647, %v4475
    %vm4486 = vcmp.eq.f32.partialorder %v4485, 8.507059e+37
    %v4487 = vand.u32 %v4475, 2147483648
    %v4488 = vor.u32 1.1754944e-38, %v4487
    %v4489 = vsel %vm4486, %v4488, %v4484
    %v4490 = vmul.f32 1.0, %v4489
    %v4492 = vrot.slane %v4490, 1
    %vm4494 = vcmask 1040384
    %v4495 = vsel %vm4494, %v4490, %v4492
    %4496 = vst [vmem:[#allocation2] sm:$0x3] %v4495
    // Predicated region
    $region30: #{forward.1} parent=1 // pred_check
      _
    $region31: #{forward.1} parent=1 // pred_check_branch
      %4498 = sbr.rel (0) target = $region33
    $region32: #{forward.1} parent=1 // pred_region
      %4500 = vsyncadd [#allocation3], 0
      %s4502 = sshll.u32 [#allocation2], 4
      %s4503 = int_to_ptr.vmem [resolvable:$true] %s4502
      %s4504 = sshll.u32 %s7, 4
      %s4505 = int_to_ptr.hbm [resolvable:$true] %s4504
      %4507 = dma.vmem_to_hbm [thread:$0]  %s4503, 32, %s4505, [#allocation3]
    $region33: #{forward.1} parent=1 // pred_fallthru
      _
    // Predicated region
    $region34: #{forward.1} parent=1 // pred_check
      _
    $region35: #{forward.1} parent=1 // pred_check_branch
      %4509 = sbr.rel (0) target = $region37
    $region36: #{forward.1} parent=1 // pred_region
      %4511 = dma.done [#allocation3], 32
    $region37: #{forward.1} parent=1 // pred_fallthru
      _
    %4512 = vsyncpa [#allocation3], 1

</llo_original>
